<compile_context>
chip_gen: v6e
topology: v6e:2x2x1
jax: 0.10.0
libtpu: 0.0.40
codegen_flags: <defaults>
</compile_context>

<pallas_src>
import functools
import math

import jax
import jax.numpy as jnp
from jax import lax
from jax.experimental import pallas as pl
from jax.experimental.pallas import tpu as pltpu

LN_EPS = 1e-5


# ---------------------------------------------------------------------------
# In-kernel helpers (operate on VMEM-resident values)
# ---------------------------------------------------------------------------
def _residual_layernorm(z, resid, gamma, beta):
    """LayerNorm(z + resid) with PyTorch defaults (biased var, eps=1e-5). gamma/beta: [1,D]."""
    y = z + resid
    mean = jnp.mean(y, axis=-1, keepdims=True)
    var = jnp.mean(jnp.square(y - mean), axis=-1, keepdims=True)
    return (y - mean) * lax.rsqrt(var + LN_EPS) * gamma + beta


def _attention(q, k, v, num_head, attn_ref):
    """q: [Tq, D] f32; k, v: [Sk, D] f32.
    Heads are processed as static lane slices (no (1,0,2) relayout transposes).
    Writes softmax probs for head h into attn_ref[0, h] and returns ctx [Tq, D] f32."""
    _, d = q.shape
    dk = d // num_head
    # Fold 1/sqrt(dk) into Q once: O(Tq*D) instead of O(H*Tq*Sk).
    q_b = (q * (1.0 / math.sqrt(dk))).astype(jnp.bfloat16)
    k_b = k.astype(jnp.bfloat16)
    v_b = v.astype(jnp.bfloat16)

    ctx_heads = []
    for h in range(num_head):                      # static, unrolled head loop
        sl = slice(h * dk, (h + 1) * dk)
        # Q @ K^T via NT dimension numbers -> no transpose materialized.
        s = lax.dot_general(q_b[:, sl], k_b[:, sl],
                            dimension_numbers=(((1,), (1,)), ((), ())),
                            preferred_element_type=jnp.float32)        # [Tq, Sk] f32
        m = jnp.max(s, axis=-1, keepdims=True)
        e = jnp.exp(s - m)
        denom = jnp.sum(e, axis=-1, keepdims=True)
        p = e * pl.reciprocal(denom, approx=False)                     # exact: p is an output
        attn_ref[0, h] = p.astype(attn_ref.dtype)
        ctx_heads.append(jnp.dot(p.astype(jnp.bfloat16), v_b[:, sl],
                                 preferred_element_type=jnp.float32))  # [Tq, dk] f32
    return jnp.concatenate(ctx_heads, axis=-1)                         # [Tq, D] f32 (lane concat)


# ---------------------------------------------------------------------------
# Fused decoder-layer kernel: grid = (batch, query tile)
# ---------------------------------------------------------------------------
def _decoder_layer_kernel(
        dec_ref, enc_ref,
        s_wqkv, s_bqkv, s_wo, s_bo, s_g, s_be,
        c_wq, c_bq, c_wkv, c_bkv, c_wo, c_bo, c_g, c_be,
        f_w1, f_b1, f_w2, f_b2, f_g, f_be,
        out_ref, slf_attn_ref, enc_attn_ref,
        *, num_head, q_tile):
    sd = dec_ref.shape[1]
    d = dec_ref.shape[2]
    tq = q_tile

    x_full = dec_ref[0]                                   # bf16 [Sd, D] (K/V need all rows)

    # ---------------- self-attention ----------------
    if tq == sd:
        # Single query tile: one fused [Sd, D] @ [D, 3D] QKV projection (widest MXU pass).
        x_tile = x_full
        qkv = jnp.dot(x_full, s_wqkv[...],
                      preferred_element_type=jnp.float32) + s_bqkv[...]
        q_s, k_s, v_s = qkv[:, :d], qkv[:, d:2 * d], qkv[:, 2 * d:]
    else:
        # Query-tiled path: Q from this tile's rows, fused K|V from the full sequence.
        row0 = pl.multiple_of(pl.program_id(1) * tq, tq)
        x_tile = dec_ref[0, pl.ds(row0, tq), :]           # bf16 [tq, D]
        w = s_wqkv[...]
        bqkv = s_bqkv[...]
        q_s = jnp.dot(x_tile, w[:, :d], preferred_element_type=jnp.float32) + bqkv[:, :d]
        kv = jnp.dot(x_full, w[:, d:], preferred_element_type=jnp.float32) + bqkv[:, d:]
        k_s, v_s = kv[:, :d], kv[:, d:]

    resid = x_tile.astype(jnp.float32)
    ctx = _attention(q_s, k_s, v_s, num_head, slf_attn_ref)
    y = _residual_layernorm(
        jnp.dot(ctx.astype(jnp.bfloat16), s_wo[...],
                preferred_element_type=jnp.float32) + s_bo[...],
        resid, s_g[...], s_be[...])

    # ---------------- cross-attention (fused K|V projection) ----------------
    enc_x = enc_ref[0]                                    # bf16 [Se, D]
    q_c = jnp.dot(y.astype(jnp.bfloat16), c_wq[...],
                  preferred_element_type=jnp.float32) + c_bq[...]
    kv_c = jnp.dot(enc_x, c_wkv[...],
                   preferred_element_type=jnp.float32) + c_bkv[...]
    k_c, v_c = kv_c[:, :d], kv_c[:, d:]
    ctx = _attention(q_c, k_c, v_c, num_head, enc_attn_ref)
    y = _residual_layernorm(
        jnp.dot(ctx.astype(jnp.bfloat16), c_wo[...],
                preferred_element_type=jnp.float32) + c_bo[...],
        y, c_g[...], c_be[...])

    # ---------------- position-wise FFN ----------------
    h = jnp.dot(y.astype(jnp.bfloat16), f_w1[...],
                preferred_element_type=jnp.float32) + f_b1[...]
    h = jnp.maximum(h, 0.0)
    o = jnp.dot(h.astype(jnp.bfloat16), f_w2[...],
                preferred_element_type=jnp.float32) + f_b2[...]
    y = _residual_layernorm(o, y, f_g[...], f_be[...])

    out_ref[0] = y.astype(out_ref.dtype)


def _pick_q_tile(seq_len):
    for t in (512, 256, 128):
        if seq_len % t == 0:
            return t
    return seq_len


# ---------------------------------------------------------------------------
# Wrapper
# ---------------------------------------------------------------------------
def decoder_layer(dec_input, enc_output, params, num_head, *,
                  attn_dtype=jnp.bfloat16, q_tile=None):
    B, Sd, D = dec_input.shape
    Se = enc_output.shape[1]
    assert D % num_head == 0, "d_model must be divisible by n_head"
    out_dtype = dec_input.dtype

    tq = _pick_q_tile(Sd) if q_tile is None else q_tile
    assert Sd % tq == 0, "query tile must divide decoder sequence length"
    nq = Sd // tq

    sp, cp, fp = params["slf_attn"], params["enc_attn"], params["pos_ffn"]
    bf16 = lambda a: jnp.asarray(a, jnp.bfloat16)
    f32 = lambda a: jnp.asarray(a, jnp.float32)

    # Fuse Q|K|V into one [D, 3D] weight for self-attn and K|V into [D, 2D] for cross-attn,
    # so the projection phase is one/two wide MXU matmuls instead of three narrow ones.
    s_wqkv = bf16(jnp.concatenate([sp["wq"], sp["wk"], sp["wv"]], axis=1))
    s_bqkv = f32(jnp.concatenate([sp["bq"], sp["bk"], sp["bv"]], axis=1))
    c_wkv = bf16(jnp.concatenate([cp["wk"], cp["wv"]], axis=1))
    c_bkv = f32(jnp.concatenate([cp["bk"], cp["bv"]], axis=1))

    weight_args = [
        s_wqkv, s_bqkv, bf16(sp["wo"]), f32(sp["bo"]), f32(sp["gamma"]), f32(sp["beta"]),
        bf16(cp["wq"]), f32(cp["bq"]), c_wkv, c_bkv,
        bf16(cp["wo"]), f32(cp["bo"]), f32(cp["gamma"]), f32(cp["beta"]),
        bf16(fp["w1"]), f32(fp["b1"]), bf16(fp["w2"]), f32(fp["b2"]),
        f32(fp["gamma"]), f32(fp["beta"]),
    ]
    # Constant index maps -> each weight is DMA'd once and stays resident across the grid.
    weight_specs = [
        pl.BlockSpec(a.shape, lambda b, q, _n=a.ndim: (0,) * _n) for a in weight_args
    ]

    # Activations are DMA'd as bf16 (half the HBM bytes); f32 is restored in-kernel for the
    # residual / softmax / LayerNorm math.
    dec_b = dec_input.astype(jnp.bfloat16)
    enc_b = enc_output.astype(jnp.bfloat16)

    # Per-generation VMEM budget: ~3/4 of physical capacity, capped at 96 MiB
    # (v5e/v6e: 96 of 128 MiB; v7x: 48 of 64 MiB).
    try:
        vmem_cap = int(pltpu.get_tpu_info().vmem_capacity_bytes)
    except Exception:
        vmem_cap = 64 * 1024 * 1024
    vmem_limit = int(min(vmem_cap * 3 // 4, 96 * 1024 * 1024))

    out, slf_attn, enc_attn = pl.pallas_call(
        functools.partial(_decoder_layer_kernel, num_head=num_head, q_tile=tq),
        out_shape=(
            jax.ShapeDtypeStruct((B, Sd, D), out_dtype),
            jax.ShapeDtypeStruct((B, num_head, Sd, Sd), attn_dtype),
            jax.ShapeDtypeStruct((B, num_head, Sd, Se), attn_dtype),
        ),
        grid=(B, nq),
        in_specs=[
            # Full decoder sequence (Q tile is sliced in-kernel; self-attn K/V need all rows).
            pl.BlockSpec((1, Sd, D), lambda b, q: (b, 0, 0)),
            # Full encoder output (cross-attn K/V).
            pl.BlockSpec((1, Se, D), lambda b, q: (b, 0, 0)),
        ] + weight_specs,
        out_specs=(
            pl.BlockSpec((1, tq, D), lambda b, q: (b, q, 0)),
            pl.BlockSpec((1, num_head, tq, Sd), lambda b, q: (b, 0, q, 0)),
            pl.BlockSpec((1, num_head, tq, Se), lambda b, q: (b, 0, q, 0)),
        ),
        compiler_params=pltpu.CompilerParams(
            dimension_semantics=("parallel", "parallel"),
            vmem_limit_bytes=vmem_limit,
        ),
    )(dec_b, enc_b, *weight_args)
    return out, slf_attn, enc_attn


# ---------------------------------------------------------------------------
# Deterministic parameter init
# ---------------------------------------------------------------------------
def init_mha_params(key, d_model):
    ks = jax.random.split(key, 10)
    std = 0.02
    p = {}
    for i, name in enumerate(("q", "k", "v", "o")):
        p[f"w{name}"] = jax.random.normal(ks[2 * i], (d_model, d_model), jnp.float32) * std
        p[f"b{name}"] = jax.random.normal(ks[2 * i + 1], (1, d_model), jnp.float32) * std
    p["gamma"] = 1.0 + 0.1 * jax.random.normal(ks[8], (1, d_model), jnp.float32)
    p["beta"] = 0.02 * jax.random.normal(ks[9], (1, d_model), jnp.float32)
    return p


def init_ffn_params(key, d_model, d_inner):
    ks = jax.random.split(key, 6)
    std = 0.02
    return {
        "w1": jax.random.normal(ks[0], (d_model, d_inner), jnp.float32) * std,
        "b1": jax.random.normal(ks[1], (1, d_inner), jnp.float32) * std,
        "w2": jax.random.normal(ks[2], (d_inner, d_model), jnp.float32) * std,
        "b2": jax.random.normal(ks[3], (1, d_model), jnp.float32) * std,
        "gamma": 1.0 + 0.1 * jax.random.normal(ks[4], (1, d_model), jnp.float32),
        "beta": 0.02 * jax.random.normal(ks[5], (1, d_model), jnp.float32),
    }


# ---------------------------------------------------------------------------
# Pure-JAX f32 reference (for a loose numerical sanity check)
# ---------------------------------------------------------------------------
def _reference_decoder_layer(dec, enc, params, n_head):
    def ln(y, g, b):
        mean = jnp.mean(y, axis=-1, keepdims=True)
        var = jnp.mean(jnp.square(y - mean), axis=-1, keepdims=True)
        return (y - mean) * lax.rsqrt(var + LN_EPS) * g + b

    def softmax(s):
        e = jnp.exp(s - jnp.max(s, axis=-1, keepdims=True))
        return e / jnp.sum(e, axis=-1, keepdims=True)

    def mha(q_in, kv_in, p):
        B, Sq, D = q_in.shape
        Sk = kv_in.shape[1]
        dk = D // n_head
        q = q_in @ p["wq"] + p["bq"]
        k = kv_in @ p["wk"] + p["bk"]
        v = kv_in @ p["wv"] + p["bv"]
        qh = q.reshape(B, Sq, n_head, dk).transpose(0, 2, 1, 3)
        kh = k.reshape(B, Sk, n_head, dk).transpose(0, 2, 1, 3)
        vh = v.reshape(B, Sk, n_head, dk).transpose(0, 2, 1, 3)
        s = jnp.einsum("bhqd,bhkd->bhqk", qh, kh) / math.sqrt(dk)
        a = softmax(s)
        ctx = jnp.einsum("bhqk,bhkd->bhqd", a, vh).transpose(0, 2, 1, 3).reshape(B, Sq, D)
        o = ctx @ p["wo"] + p["bo"]
        return ln(o + q_in, p["gamma"], p["beta"]), a

    y, slf = mha(dec, dec, params["slf_attn"])
    y, ca = mha(y, enc, params["enc_attn"])
    fp = params["pos_ffn"]
    h = jnp.maximum(y @ fp["w1"] + fp["b1"], 0.0)
    o = h @ fp["w2"] + fp["b2"]
    out = ln(o + y, fp["gamma"], fp["beta"])
    return out, slf, ca


def _max_abs_diff(a, b):
    return float(jnp.max(jnp.abs(a.astype(jnp.float32) - b.astype(jnp.float32))))


if __name__ == "__main__":
    key = jax.random.PRNGKey(0)
    k_in, k_enc, k_slf, k_cross, k_ffn, k_in2, k_enc2 = jax.random.split(key, 7)

    d_model, d_inner, n_head = 128, 256, 4
    params = {
        "slf_attn": init_mha_params(k_slf, d_model),
        "enc_attn": init_mha_params(k_cross, d_model),
        "pos_ffn": init_ffn_params(k_ffn, d_model, d_inner),
    }

    # --- test 1: small shapes, single query tile -> fused [D,3D] QKV path ---
    B, S_dec, S_enc = 2, 16, 8
    dec_input = jax.random.normal(k_in, (B, S_dec, d_model), jnp.float32)
    enc_output = jax.random.normal(k_enc, (B, S_enc, d_model), jnp.float32)

    dec_out, slf_attn, enc_attn = decoder_layer(dec_input, enc_output, params, n_head)
    jax.block_until_ready((dec_out, slf_attn, enc_attn))

    assert dec_out.shape == (B, S_dec, d_model)
    assert slf_attn.shape == (B, n_head, S_dec, S_dec)
    assert enc_attn.shape == (B, n_head, S_dec, S_enc)

    ref_out, ref_slf, ref_ca = _reference_decoder_layer(dec_input, enc_output, params, n_head)
    assert _max_abs_diff(dec_out, ref_out) < 1e-1, "dec_output mismatch (tile path)"
    assert _max_abs_diff(slf_attn, ref_slf) < 5e-2, "self-attn map mismatch (tile path)"
    assert _max_abs_diff(enc_attn, ref_ca) < 5e-2, "cross-attn map mismatch (tile path)"

    # --- test 2: query-tiled grid path (Sq = 2 x 128 tiles) ---
    B2, S_dec2, S_enc2 = 2, 256, 64
    dec2 = jax.random.normal(k_in2, (B2, S_dec2, d_model), jnp.float32)
    enc2 = jax.random.normal(k_enc2, (B2, S_enc2, d_model), jnp.float32)

    out2, slf2, ca2 = decoder_layer(dec2, enc2, params, n_head, q_tile=128)
    jax.block_until_ready((out2, slf2, ca2))

    ref2_out, ref2_slf, ref2_ca = _reference_decoder_layer(dec2, enc2, params, n_head)
    assert _max_abs_diff(out2, ref2_out) < 1e-1, "dec_output mismatch (tiled path)"
    assert _max_abs_diff(slf2, ref2_slf) < 5e-2, "self-attn map mismatch (tiled path)"
    assert _max_abs_diff(ca2, ref2_ca) < 5e-2, "cross-attn map mismatch (tiled path)"

    print("KERNEL_OK")
</pallas_src>

<mosaic_0001>
module attributes {stable_mosaic.version = 11 : i64} {
  func.func @_decoder_layer_kernel(%arg0: i32, %arg1: i32, %arg2: memref<1x16x128xbf16, #tpu.memory_space<vmem>>, %arg3: memref<1x8x128xbf16, #tpu.memory_space<vmem>>, %arg4: memref<128x384xbf16, #tpu.memory_space<vmem>>, %arg5: memref<1x384xf32, #tpu.memory_space<vmem>>, %arg6: memref<128x128xbf16, #tpu.memory_space<vmem>>, %arg7: memref<1x128xf32, #tpu.memory_space<vmem>>, %arg8: memref<1x128xf32, #tpu.memory_space<vmem>>, %arg9: memref<1x128xf32, #tpu.memory_space<vmem>>, %arg10: memref<128x128xbf16, #tpu.memory_space<vmem>>, %arg11: memref<1x128xf32, #tpu.memory_space<vmem>>, %arg12: memref<128x256xbf16, #tpu.memory_space<vmem>>, %arg13: memref<1x256xf32, #tpu.memory_space<vmem>>, %arg14: memref<128x128xbf16, #tpu.memory_space<vmem>>, %arg15: memref<1x128xf32, #tpu.memory_space<vmem>>, %arg16: memref<1x128xf32, #tpu.memory_space<vmem>>, %arg17: memref<1x128xf32, #tpu.memory_space<vmem>>, %arg18: memref<128x256xbf16, #tpu.memory_space<vmem>>, %arg19: memref<1x256xf32, #tpu.memory_space<vmem>>, %arg20: memref<256x128xbf16, #tpu.memory_space<vmem>>, %arg21: memref<1x128xf32, #tpu.memory_space<vmem>>, %arg22: memref<1x128xf32, #tpu.memory_space<vmem>>, %arg23: memref<1x128xf32, #tpu.memory_space<vmem>>, %arg24: memref<1x16x128xf32, #tpu.memory_space<vmem>>, %arg25: memref<1x4x16x16xbf16, #tpu.memory_space<vmem>>, %arg26: memref<1x4x16x8xbf16, #tpu.memory_space<vmem>>) attributes {dimension_semantics = [#tpu.dimension_semantics<parallel>, #tpu.dimension_semantics<parallel>], iteration_bounds = array<i64: 2, 1>, scalar_prefetch = 0 : i64, scratch_operands = 0 : i64, tpu.core_type = #tpu.core_type<tc>, window_params = [{transform_indices = @transform_0, window_bounds = array<i64: 1, 16, 128>}, {transform_indices = @transform_1, window_bounds = array<i64: 1, 8, 128>}, {pipeline_mode = #tpu.pipeline_mode<synchronous>, transform_indices = @transform_2, window_bounds = array<i64: 128, 384>}, {pipeline_mode = #tpu.pipeline_mode<synchronous>, transform_indices = @transform_3, window_bounds = array<i64: 1, 384>}, {pipeline_mode = #tpu.pipeline_mode<synchronous>, transform_indices = @transform_4, window_bounds = array<i64: 128, 128>}, {pipeline_mode = #tpu.pipeline_mode<synchronous>, transform_indices = @transform_5, window_bounds = array<i64: 1, 128>}, {pipeline_mode = #tpu.pipeline_mode<synchronous>, transform_indices = @transform_6, window_bounds = array<i64: 1, 128>}, {pipeline_mode = #tpu.pipeline_mode<synchronous>, transform_indices = @transform_7, window_bounds = array<i64: 1, 128>}, {pipeline_mode = #tpu.pipeline_mode<synchronous>, transform_indices = @transform_8, window_bounds = array<i64: 128, 128>}, {pipeline_mode = #tpu.pipeline_mode<synchronous>, transform_indices = @transform_9, window_bounds = array<i64: 1, 128>}, {pipeline_mode = #tpu.pipeline_mode<synchronous>, transform_indices = @transform_10, window_bounds = array<i64: 128, 256>}, {pipeline_mode = #tpu.pipeline_mode<synchronous>, transform_indices = @transform_11, window_bounds = array<i64: 1, 256>}, {pipeline_mode = #tpu.pipeline_mode<synchronous>, transform_indices = @transform_12, window_bounds = array<i64: 128, 128>}, {pipeline_mode = #tpu.pipeline_mode<synchronous>, transform_indices = @transform_13, window_bounds = array<i64: 1, 128>}, {pipeline_mode = #tpu.pipeline_mode<synchronous>, transform_indices = @transform_14, window_bounds = array<i64: 1, 128>}, {pipeline_mode = #tpu.pipeline_mode<synchronous>, transform_indices = @transform_15, window_bounds = array<i64: 1, 128>}, {pipeline_mode = #tpu.pipeline_mode<synchronous>, transform_indices = @transform_16, window_bounds = array<i64: 128, 256>}, {pipeline_mode = #tpu.pipeline_mode<synchronous>, transform_indices = @transform_17, window_bounds = array<i64: 1, 256>}, {pipeline_mode = #tpu.pipeline_mode<synchronous>, transform_indices = @transform_18, window_bounds = array<i64: 256, 128>}, {pipeline_mode = #tpu.pipeline_mode<synchronous>, transform_indices = @transform_19, window_bounds = array<i64: 1, 128>}, {pipeline_mode = #tpu.pipeline_mode<synchronous>, transform_indices = @transform_20, window_bounds = array<i64: 1, 128>}, {pipeline_mode = #tpu.pipeline_mode<synchronous>, transform_indices = @transform_21, window_bounds = array<i64: 1, 128>}, {transform_indices = @transform_22, window_bounds = array<i64: 1, 16, 128>}, {transform_indices = @transform_23, window_bounds = array<i64: 1, 4, 16, 16>}, {transform_indices = @transform_24, window_bounds = array<i64: 1, 4, 16, 8>}]} {
    %c0 = arith.constant 0 : index
    %c0_0 = arith.constant 0 : index
    %c0_1 = arith.constant 0 : index
    %0 = vector.load %arg2[%c0, %c0_0, %c0_1] : memref<1x16x128xbf16, #tpu.memory_space<vmem>>, vector<1x16x128xbf16>
    %1 = vector.shape_cast %0 : vector<1x16x128xbf16> to vector<16x128xbf16>
    %c0_2 = arith.constant 0 : index
    %c0_3 = arith.constant 0 : index
    %2 = vector.load %arg4[%c0_2, %c0_3] : memref<128x384xbf16, #tpu.memory_space<vmem>>, vector<128x384xbf16>
    %cst = arith.constant dense<0.000000e+00> : vector<16x384xf32>
    %3 = tpu.matmul %1, %2, %cst {dimension_numbers = #tpu.dot_dimension_numbers<[1], [0], [0], [1], [0, 0, 1, 1], [], []>} : vector<16x128xbf16>, vector<128x384xbf16>, vector<16x384xf32> -> vector<16x384xf32>
    %c0_4 = arith.constant 0 : index
    %c0_5 = arith.constant 0 : index
    %4 = vector.load %arg5[%c0_4, %c0_5] : memref<1x384xf32, #tpu.memory_space<vmem>>, vector<1x384xf32>
    %5 = vector.broadcast %4 : vector<1x384xf32> to vector<16x384xf32>
    %6 = arith.addf %3, %5 : vector<16x384xf32>
    %7 = vector.extract_strided_slice %6 {offsets = [0, 0], sizes = [16, 128], strides = [1, 1]} : vector<16x384xf32> to vector<16x128xf32>
    %8 = vector.extract_strided_slice %6 {offsets = [0, 128], sizes = [16, 128], strides = [1, 1]} : vector<16x384xf32> to vector<16x128xf32>
    %9 = vector.extract_strided_slice %6 {offsets = [0, 256], sizes = [16, 128], strides = [1, 1]} : vector<16x384xf32> to vector<16x128xf32>
    %10 = arith.extf %1 : vector<16x128xbf16> to vector<16x128xf32>
    %cst_6 = arith.constant 0.176776692 : f32
    %11 = vector.broadcast %cst_6 : f32 to vector<16x128xf32>
    %12 = arith.mulf %7, %11 : vector<16x128xf32>
    %13 = arith.truncf %12 : vector<16x128xf32> to vector<16x128xbf16>
    %14 = arith.truncf %8 : vector<16x128xf32> to vector<16x128xbf16>
    %15 = arith.truncf %9 : vector<16x128xf32> to vector<16x128xbf16>
    %16 = vector.extract_strided_slice %13 {offsets = [0, 0], sizes = [16, 32], strides = [1, 1]} : vector<16x128xbf16> to vector<16x32xbf16>
    %17 = vector.extract_strided_slice %14 {offsets = [0, 0], sizes = [16, 32], strides = [1, 1]} : vector<16x128xbf16> to vector<16x32xbf16>
    %cst_7 = arith.constant dense<0.000000e+00> : vector<16x16xf32>
    %18 = tpu.matmul %16, %17, %cst_7 {dimension_numbers = #tpu.dot_dimension_numbers<[1], [1], [0], [0], [0, 0, 1, 0], [], []>} : vector<16x32xbf16>, vector<16x32xbf16>, vector<16x16xf32> -> vector<16x16xf32>
    %cst_8 = arith.constant dense<0xFF800000> : vector<16xf32>
    %19 = vector.multi_reduction <maximumf>, %18, %cst_8 [1] : vector<16x16xf32> to vector<16xf32>
    %20 = vector.shape_cast %19 : vector<16xf32> to vector<16x1xf32>
    %21 = vector.broadcast %20 : vector<16x1xf32> to vector<16x16xf32>
    %22 = arith.subf %18, %21 : vector<16x16xf32>
    %23 = math.exp %22 : vector<16x16xf32>
    %cst_9 = arith.constant dense<0.000000e+00> : vector<16xf32>
    %24 = vector.multi_reduction <add>, %23, %cst_9 [1] : vector<16x16xf32> to vector<16xf32>
    %25 = vector.shape_cast %24 : vector<16xf32> to vector<16x1xf32>
    %26 = tpu.reciprocal %25 : vector<16x1xf32> -> vector<16x1xf32>
    %27 = vector.broadcast %26 : vector<16x1xf32> to vector<16x16xf32>
    %28 = arith.mulf %23, %27 : vector<16x16xf32>
    %29 = arith.truncf %28 : vector<16x16xf32> to vector<16x16xbf16>
    %c0_10 = arith.constant 0 : index
    %c0_11 = arith.constant 0 : index
    %c0_12 = arith.constant 0 : index
    %c0_13 = arith.constant 0 : index
    %30 = vector.load %arg25[%c0_10, %c0_11, %c0_12, %c0_13] : memref<1x4x16x16xbf16, #tpu.memory_space<vmem>>, vector<1x1x16x16xbf16>
    %31 = vector.shape_cast %30 : vector<1x1x16x16xbf16> to vector<16x16xbf16>
    %32 = vector.shape_cast %29 : vector<16x16xbf16> to vector<1x1x16x16xbf16>
    tpu.vector_store %arg25[%c0_10, %c0_11, %c0_12, %c0_13], %32 {strides = array<i32>} : memref<1x4x16x16xbf16, #tpu.memory_space<vmem>>, vector<1x1x16x16xbf16>,
    %33 = arith.truncf %28 : vector<16x16xf32> to vector<16x16xbf16>
    %34 = vector.extract_strided_slice %15 {offsets = [0, 0], sizes = [16, 32], strides = [1, 1]} : vector<16x128xbf16> to vector<16x32xbf16>
    %cst_14 = arith.constant dense<0.000000e+00> : vector<16x32xf32>
    %35 = tpu.matmul %33, %34, %cst_14 {dimension_numbers = #tpu.dot_dimension_numbers<[1], [0], [0], [1], [0, 0, 1, 1], [], []>} : vector<16x16xbf16>, vector<16x32xbf16>, vector<16x32xf32> -> vector<16x32xf32>
    %36 = vector.extract_strided_slice %13 {offsets = [0, 32], sizes = [16, 32], strides = [1, 1]} : vector<16x128xbf16> to vector<16x32xbf16>
    %37 = vector.extract_strided_slice %14 {offsets = [0, 32], sizes = [16, 32], strides = [1, 1]} : vector<16x128xbf16> to vector<16x32xbf16>
    %cst_15 = arith.constant dense<0.000000e+00> : vector<16x16xf32>
    %38 = tpu.matmul %36, %37, %cst_15 {dimension_numbers = #tpu.dot_dimension_numbers<[1], [1], [0], [0], [0, 0, 1, 0], [], []>} : vector<16x32xbf16>, vector<16x32xbf16>, vector<16x16xf32> -> vector<16x16xf32>
    %cst_16 = arith.constant dense<0xFF800000> : vector<16xf32>
    %39 = vector.multi_reduction <maximumf>, %38, %cst_16 [1] : vector<16x16xf32> to vector<16xf32>
    %40 = vector.shape_cast %39 : vector<16xf32> to vector<16x1xf32>
    %41 = vector.broadcast %40 : vector<16x1xf32> to vector<16x16xf32>
    %42 = arith.subf %38, %41 : vector<16x16xf32>
    %43 = math.exp %42 : vector<16x16xf32>
    %cst_17 = arith.constant dense<0.000000e+00> : vector<16xf32>
    %44 = vector.multi_reduction <add>, %43, %cst_17 [1] : vector<16x16xf32> to vector<16xf32>
    %45 = vector.shape_cast %44 : vector<16xf32> to vector<16x1xf32>
    %46 = tpu.reciprocal %45 : vector<16x1xf32> -> vector<16x1xf32>
    %47 = vector.broadcast %46 : vector<16x1xf32> to vector<16x16xf32>
    %48 = arith.mulf %43, %47 : vector<16x16xf32>
    %49 = arith.truncf %48 : vector<16x16xf32> to vector<16x16xbf16>
    %c0_18 = arith.constant 0 : index
    %c1 = arith.constant 1 : index
    %c0_19 = arith.constant 0 : index
    %c0_20 = arith.constant 0 : index
    %50 = vector.load %arg25[%c0_18, %c1, %c0_19, %c0_20] : memref<1x4x16x16xbf16, #tpu.memory_space<vmem>>, vector<1x1x16x16xbf16>
    %51 = vector.shape_cast %50 : vector<1x1x16x16xbf16> to vector<16x16xbf16>
    %52 = vector.shape_cast %49 : vector<16x16xbf16> to vector<1x1x16x16xbf16>
    tpu.vector_store %arg25[%c0_18, %c1, %c0_19, %c0_20], %52 {strides = array<i32>} : memref<1x4x16x16xbf16, #tpu.memory_space<vmem>>, vector<1x1x16x16xbf16>,
    %53 = arith.truncf %48 : vector<16x16xf32> to vector<16x16xbf16>
    %54 = vector.extract_strided_slice %15 {offsets = [0, 32], sizes = [16, 32], strides = [1, 1]} : vector<16x128xbf16> to vector<16x32xbf16>
    %cst_21 = arith.constant dense<0.000000e+00> : vector<16x32xf32>
    %55 = tpu.matmul %53, %54, %cst_21 {dimension_numbers = #tpu.dot_dimension_numbers<[1], [0], [0], [1], [0, 0, 1, 1], [], []>} : vector<16x16xbf16>, vector<16x32xbf16>, vector<16x32xf32> -> vector<16x32xf32>
    %56 = vector.extract_strided_slice %13 {offsets = [0, 64], sizes = [16, 32], strides = [1, 1]} : vector<16x128xbf16> to vector<16x32xbf16>
    %57 = vector.extract_strided_slice %14 {offsets = [0, 64], sizes = [16, 32], strides = [1, 1]} : vector<16x128xbf16> to vector<16x32xbf16>
    %cst_22 = arith.constant dense<0.000000e+00> : vector<16x16xf32>
    %58 = tpu.matmul %56, %57, %cst_22 {dimension_numbers = #tpu.dot_dimension_numbers<[1], [1], [0], [0], [0, 0, 1, 0], [], []>} : vector<16x32xbf16>, vector<16x32xbf16>, vector<16x16xf32> -> vector<16x16xf32>
    %cst_23 = arith.constant dense<0xFF800000> : vector<16xf32>
    %59 = vector.multi_reduction <maximumf>, %58, %cst_23 [1] : vector<16x16xf32> to vector<16xf32>
    %60 = vector.shape_cast %59 : vector<16xf32> to vector<16x1xf32>
    %61 = vector.broadcast %60 : vector<16x1xf32> to vector<16x16xf32>
    %62 = arith.subf %58, %61 : vector<16x16xf32>
    %63 = math.exp %62 : vector<16x16xf32>
    %cst_24 = arith.constant dense<0.000000e+00> : vector<16xf32>
    %64 = vector.multi_reduction <add>, %63, %cst_24 [1] : vector<16x16xf32> to vector<16xf32>
    %65 = vector.shape_cast %64 : vector<16xf32> to vector<16x1xf32>
    %66 = tpu.reciprocal %65 : vector<16x1xf32> -> vector<16x1xf32>
    %67 = vector.broadcast %66 : vector<16x1xf32> to vector<16x16xf32>
    %68 = arith.mulf %63, %67 : vector<16x16xf32>
    %69 = arith.truncf %68 : vector<16x16xf32> to vector<16x16xbf16>
    %c0_25 = arith.constant 0 : index
    %c2 = arith.constant 2 : index
    %c0_26 = arith.constant 0 : index
    %c0_27 = arith.constant 0 : index
    %70 = vector.load %arg25[%c0_25, %c2, %c0_26, %c0_27] : memref<1x4x16x16xbf16, #tpu.memory_space<vmem>>, vector<1x1x16x16xbf16>
    %71 = vector.shape_cast %70 : vector<1x1x16x16xbf16> to vector<16x16xbf16>
    %72 = vector.shape_cast %69 : vector<16x16xbf16> to vector<1x1x16x16xbf16>
    tpu.vector_store %arg25[%c0_25, %c2, %c0_26, %c0_27], %72 {strides = array<i32>} : memref<1x4x16x16xbf16, #tpu.memory_space<vmem>>, vector<1x1x16x16xbf16>,
    %73 = arith.truncf %68 : vector<16x16xf32> to vector<16x16xbf16>
    %74 = vector.extract_strided_slice %15 {offsets = [0, 64], sizes = [16, 32], strides = [1, 1]} : vector<16x128xbf16> to vector<16x32xbf16>
    %cst_28 = arith.constant dense<0.000000e+00> : vector<16x32xf32>
    %75 = tpu.matmul %73, %74, %cst_28 {dimension_numbers = #tpu.dot_dimension_numbers<[1], [0], [0], [1], [0, 0, 1, 1], [], []>} : vector<16x16xbf16>, vector<16x32xbf16>, vector<16x32xf32> -> vector<16x32xf32>
    %76 = vector.extract_strided_slice %13 {offsets = [0, 96], sizes = [16, 32], strides = [1, 1]} : vector<16x128xbf16> to vector<16x32xbf16>
    %77 = vector.extract_strided_slice %14 {offsets = [0, 96], sizes = [16, 32], strides = [1, 1]} : vector<16x128xbf16> to vector<16x32xbf16>
    %cst_29 = arith.constant dense<0.000000e+00> : vector<16x16xf32>
    %78 = tpu.matmul %76, %77, %cst_29 {dimension_numbers = #tpu.dot_dimension_numbers<[1], [1], [0], [0], [0, 0, 1, 0], [], []>} : vector<16x32xbf16>, vector<16x32xbf16>, vector<16x16xf32> -> vector<16x16xf32>
    %cst_30 = arith.constant dense<0xFF800000> : vector<16xf32>
    %79 = vector.multi_reduction <maximumf>, %78, %cst_30 [1] : vector<16x16xf32> to vector<16xf32>
    %80 = vector.shape_cast %79 : vector<16xf32> to vector<16x1xf32>
    %81 = vector.broadcast %80 : vector<16x1xf32> to vector<16x16xf32>
    %82 = arith.subf %78, %81 : vector<16x16xf32>
    %83 = math.exp %82 : vector<16x16xf32>
    %cst_31 = arith.constant dense<0.000000e+00> : vector<16xf32>
    %84 = vector.multi_reduction <add>, %83, %cst_31 [1] : vector<16x16xf32> to vector<16xf32>
    %85 = vector.shape_cast %84 : vector<16xf32> to vector<16x1xf32>
    %86 = tpu.reciprocal %85 : vector<16x1xf32> -> vector<16x1xf32>
    %87 = vector.broadcast %86 : vector<16x1xf32> to vector<16x16xf32>
    %88 = arith.mulf %83, %87 : vector<16x16xf32>
    %89 = arith.truncf %88 : vector<16x16xf32> to vector<16x16xbf16>
    %c0_32 = arith.constant 0 : index
    %c3 = arith.constant 3 : index
    %c0_33 = arith.constant 0 : index
    %c0_34 = arith.constant 0 : index
    %90 = vector.load %arg25[%c0_32, %c3, %c0_33, %c0_34] : memref<1x4x16x16xbf16, #tpu.memory_space<vmem>>, vector<1x1x16x16xbf16>
    %91 = vector.shape_cast %90 : vector<1x1x16x16xbf16> to vector<16x16xbf16>
    %92 = vector.shape_cast %89 : vector<16x16xbf16> to vector<1x1x16x16xbf16>
    tpu.vector_store %arg25[%c0_32, %c3, %c0_33, %c0_34], %92 {strides = array<i32>} : memref<1x4x16x16xbf16, #tpu.memory_space<vmem>>, vector<1x1x16x16xbf16>,
    %93 = arith.truncf %88 : vector<16x16xf32> to vector<16x16xbf16>
    %94 = vector.extract_strided_slice %15 {offsets = [0, 96], sizes = [16, 32], strides = [1, 1]} : vector<16x128xbf16> to vector<16x32xbf16>
    %cst_35 = arith.constant dense<0.000000e+00> : vector<16x32xf32>
    %95 = tpu.matmul %93, %94, %cst_35 {dimension_numbers = #tpu.dot_dimension_numbers<[1], [0], [0], [1], [0, 0, 1, 1], [], []>} : vector<16x16xbf16>, vector<16x32xbf16>, vector<16x32xf32> -> vector<16x32xf32>
    %96 = tpu.concatenate %35, %55, %75, %95 in 1 : vector<16x32xf32>, vector<16x32xf32>, vector<16x32xf32>, vector<16x32xf32> -> vector<16x128xf32>
    %97 = arith.truncf %96 : vector<16x128xf32> to vector<16x128xbf16>
    %c0_36 = arith.constant 0 : index
    %c0_37 = arith.constant 0 : index
    %98 = vector.load %arg6[%c0_36, %c0_37] : memref<128x128xbf16, #tpu.memory_space<vmem>>, vector<128x128xbf16>
    %cst_38 = arith.constant dense<0.000000e+00> : vector<16x128xf32>
    %99 = tpu.matmul %97, %98, %cst_38 {dimension_numbers = #tpu.dot_dimension_numbers<[1], [0], [0], [1], [0, 0, 1, 1], [], []>} : vector<16x128xbf16>, vector<128x128xbf16>, vector<16x128xf32> -> vector<16x128xf32>
    %c0_39 = arith.constant 0 : index
    %c0_40 = arith.constant 0 : index
    %100 = vector.load %arg7[%c0_39, %c0_40] : memref<1x128xf32, #tpu.memory_space<vmem>>, vector<1x128xf32>
    %101 = vector.broadcast %100 : vector<1x128xf32> to vector<16x128xf32>
    %102 = arith.addf %99, %101 : vector<16x128xf32>
    %c0_41 = arith.constant 0 : index
    %c0_42 = arith.constant 0 : index
    %103 = vector.load %arg8[%c0_41, %c0_42] : memref<1x128xf32, #tpu.memory_space<vmem>>, vector<1x128xf32>
    %c0_43 = arith.constant 0 : index
    %c0_44 = arith.constant 0 : index
    %104 = vector.load %arg9[%c0_43, %c0_44] : memref<1x128xf32, #tpu.memory_space<vmem>>, vector<1x128xf32>
    %105 = arith.addf %102, %10 : vector<16x128xf32>
    %cst_45 = arith.constant dense<0.000000e+00> : vector<16xf32>
    %106 = vector.multi_reduction <add>, %105, %cst_45 [1] : vector<16x128xf32> to vector<16xf32>
    %107 = vector.shape_cast %106 : vector<16xf32> to vector<16x1xf32>
    %cst_46 = arith.constant 1.280000e+02 : f32
    %108 = vector.broadcast %cst_46 : f32 to vector<16x1xf32>
    %109 = arith.divf %107, %108 : vector<16x1xf32>
    %110 = vector.broadcast %109 : vector<16x1xf32> to vector<16x128xf32>
    %111 = arith.subf %105, %110 : vector<16x128xf32>
    %112 = arith.mulf %111, %111 : vector<16x128xf32>
    %cst_47 = arith.constant dense<0.000000e+00> : vector<16xf32>
    %113 = vector.multi_reduction <add>, %112, %cst_47 [1] : vector<16x128xf32> to vector<16xf32>
    %114 = vector.shape_cast %113 : vector<16xf32> to vector<16x1xf32>
    %cst_48 = arith.constant 1.280000e+02 : f32
    %115 = vector.broadcast %cst_48 : f32 to vector<16x1xf32>
    %116 = arith.divf %114, %115 : vector<16x1xf32>
    %117 = vector.broadcast %109 : vector<16x1xf32> to vector<16x128xf32>
    %118 = arith.subf %105, %117 : vector<16x128xf32>
    %cst_49 = arith.constant 9.99999974E-6 : f32
    %119 = vector.broadcast %cst_49 : f32 to vector<16x1xf32>
    %120 = arith.addf %116, %119 : vector<16x1xf32>
    %121 = math.rsqrt %120 : vector<16x1xf32>
    %122 = vector.broadcast %121 : vector<16x1xf32> to vector<16x128xf32>
    %123 = arith.mulf %118, %122 : vector<16x128xf32>
    %124 = vector.broadcast %103 : vector<1x128xf32> to vector<16x128xf32>
    %125 = arith.mulf %123, %124 : vector<16x128xf32>
    %126 = vector.broadcast %104 : vector<1x128xf32> to vector<16x128xf32>
    %127 = arith.addf %125, %126 : vector<16x128xf32>
    %c0_50 = arith.constant 0 : index
    %c0_51 = arith.constant 0 : index
    %c0_52 = arith.constant 0 : index
    %128 = vector.load %arg3[%c0_50, %c0_51, %c0_52] : memref<1x8x128xbf16, #tpu.memory_space<vmem>>, vector<1x8x128xbf16>
    %129 = vector.shape_cast %128 : vector<1x8x128xbf16> to vector<8x128xbf16>
    %130 = arith.truncf %127 : vector<16x128xf32> to vector<16x128xbf16>
    %c0_53 = arith.constant 0 : index
    %c0_54 = arith.constant 0 : index
    %131 = vector.load %arg10[%c0_53, %c0_54] : memref<128x128xbf16, #tpu.memory_space<vmem>>, vector<128x128xbf16>
    %cst_55 = arith.constant dense<0.000000e+00> : vector<16x128xf32>
    %132 = tpu.matmul %130, %131, %cst_55 {dimension_numbers = #tpu.dot_dimension_numbers<[1], [0], [0], [1], [0, 0, 1, 1], [], []>} : vector<16x128xbf16>, vector<128x128xbf16>, vector<16x128xf32> -> vector<16x128xf32>
    %c0_56 = arith.constant 0 : index
    %c0_57 = arith.constant 0 : index
    %133 = vector.load %arg11[%c0_56, %c0_57] : memref<1x128xf32, #tpu.memory_space<vmem>>, vector<1x128xf32>
    %134 = vector.broadcast %133 : vector<1x128xf32> to vector<16x128xf32>
    %135 = arith.addf %132, %134 : vector<16x128xf32>
    %c0_58 = arith.constant 0 : index
    %c0_59 = arith.constant 0 : index
    %136 = vector.load %arg12[%c0_58, %c0_59] : memref<128x256xbf16, #tpu.memory_space<vmem>>, vector<128x256xbf16>
    %cst_60 = arith.constant dense<0.000000e+00> : vector<8x256xf32>
    %137 = tpu.matmul %129, %136, %cst_60 {dimension_numbers = #tpu.dot_dimension_numbers<[1], [0], [0], [1], [0, 0, 1, 1], [], []>} : vector<8x128xbf16>, vector<128x256xbf16>, vector<8x256xf32> -> vector<8x256xf32>
    %c0_61 = arith.constant 0 : index
    %c0_62 = arith.constant 0 : index
    %138 = vector.load %arg13[%c0_61, %c0_62] : memref<1x256xf32, #tpu.memory_space<vmem>>, vector<1x256xf32>
    %139 = vector.broadcast %138 : vector<1x256xf32> to vector<8x256xf32>
    %140 = arith.addf %137, %139 : vector<8x256xf32>
    %141 = vector.extract_strided_slice %140 {offsets = [0, 0], sizes = [8, 128], strides = [1, 1]} : vector<8x256xf32> to vector<8x128xf32>
    %142 = vector.extract_strided_slice %140 {offsets = [0, 128], sizes = [8, 128], strides = [1, 1]} : vector<8x256xf32> to vector<8x128xf32>
    %cst_63 = arith.constant 0.176776692 : f32
    %143 = vector.broadcast %cst_63 : f32 to vector<16x128xf32>
    %144 = arith.mulf %135, %143 : vector<16x128xf32>
    %145 = arith.truncf %144 : vector<16x128xf32> to vector<16x128xbf16>
    %146 = arith.truncf %141 : vector<8x128xf32> to vector<8x128xbf16>
    %147 = arith.truncf %142 : vector<8x128xf32> to vector<8x128xbf16>
    %148 = vector.extract_strided_slice %145 {offsets = [0, 0], sizes = [16, 32], strides = [1, 1]} : vector<16x128xbf16> to vector<16x32xbf16>
    %149 = vector.extract_strided_slice %146 {offsets = [0, 0], sizes = [8, 32], strides = [1, 1]} : vector<8x128xbf16> to vector<8x32xbf16>
    %cst_64 = arith.constant dense<0.000000e+00> : vector<16x8xf32>
    %150 = tpu.matmul %148, %149, %cst_64 {dimension_numbers = #tpu.dot_dimension_numbers<[1], [1], [0], [0], [0, 0, 1, 0], [], []>} : vector<16x32xbf16>, vector<8x32xbf16>, vector<16x8xf32> -> vector<16x8xf32>
    %cst_65 = arith.constant dense<0xFF800000> : vector<16xf32>
    %151 = vector.multi_reduction <maximumf>, %150, %cst_65 [1] : vector<16x8xf32> to vector<16xf32>
    %152 = vector.shape_cast %151 : vector<16xf32> to vector<16x1xf32>
    %153 = vector.broadcast %152 : vector<16x1xf32> to vector<16x8xf32>
    %154 = arith.subf %150, %153 : vector<16x8xf32>
    %155 = math.exp %154 : vector<16x8xf32>
    %cst_66 = arith.constant dense<0.000000e+00> : vector<16xf32>
    %156 = vector.multi_reduction <add>, %155, %cst_66 [1] : vector<16x8xf32> to vector<16xf32>
    %157 = vector.shape_cast %156 : vector<16xf32> to vector<16x1xf32>
    %158 = tpu.reciprocal %157 : vector<16x1xf32> -> vector<16x1xf32>
    %159 = vector.broadcast %158 : vector<16x1xf32> to vector<16x8xf32>
    %160 = arith.mulf %155, %159 : vector<16x8xf32>
    %161 = arith.truncf %160 : vector<16x8xf32> to vector<16x8xbf16>
    %c0_67 = arith.constant 0 : index
    %c0_68 = arith.constant 0 : index
    %c0_69 = arith.constant 0 : index
    %c0_70 = arith.constant 0 : index
    %162 = vector.load %arg26[%c0_67, %c0_68, %c0_69, %c0_70] : memref<1x4x16x8xbf16, #tpu.memory_space<vmem>>, vector<1x1x16x8xbf16>
    %163 = vector.shape_cast %162 : vector<1x1x16x8xbf16> to vector<16x8xbf16>
    %164 = vector.shape_cast %161 : vector<16x8xbf16> to vector<1x1x16x8xbf16>
    tpu.vector_store %arg26[%c0_67, %c0_68, %c0_69, %c0_70], %164 {strides = array<i32>} : memref<1x4x16x8xbf16, #tpu.memory_space<vmem>>, vector<1x1x16x8xbf16>,
    %165 = arith.truncf %160 : vector<16x8xf32> to vector<16x8xbf16>
    %166 = vector.extract_strided_slice %147 {offsets = [0, 0], sizes = [8, 32], strides = [1, 1]} : vector<8x128xbf16> to vector<8x32xbf16>
    %cst_71 = arith.constant dense<0.000000e+00> : vector<16x32xf32>
    %167 = tpu.matmul %165, %166, %cst_71 {dimension_numbers = #tpu.dot_dimension_numbers<[1], [0], [0], [1], [0, 0, 1, 1], [], []>} : vector<16x8xbf16>, vector<8x32xbf16>, vector<16x32xf32> -> vector<16x32xf32>
    %168 = vector.extract_strided_slice %145 {offsets = [0, 32], sizes = [16, 32], strides = [1, 1]} : vector<16x128xbf16> to vector<16x32xbf16>
    %169 = vector.extract_strided_slice %146 {offsets = [0, 32], sizes = [8, 32], strides = [1, 1]} : vector<8x128xbf16> to vector<8x32xbf16>
    %cst_72 = arith.constant dense<0.000000e+00> : vector<16x8xf32>
    %170 = tpu.matmul %168, %169, %cst_72 {dimension_numbers = #tpu.dot_dimension_numbers<[1], [1], [0], [0], [0, 0, 1, 0], [], []>} : vector<16x32xbf16>, vector<8x32xbf16>, vector<16x8xf32> -> vector<16x8xf32>
    %cst_73 = arith.constant dense<0xFF800000> : vector<16xf32>
    %171 = vector.multi_reduction <maximumf>, %170, %cst_73 [1] : vector<16x8xf32> to vector<16xf32>
    %172 = vector.shape_cast %171 : vector<16xf32> to vector<16x1xf32>
    %173 = vector.broadcast %172 : vector<16x1xf32> to vector<16x8xf32>
    %174 = arith.subf %170, %173 : vector<16x8xf32>
    %175 = math.exp %174 : vector<16x8xf32>
    %cst_74 = arith.constant dense<0.000000e+00> : vector<16xf32>
    %176 = vector.multi_reduction <add>, %175, %cst_74 [1] : vector<16x8xf32> to vector<16xf32>
    %177 = vector.shape_cast %176 : vector<16xf32> to vector<16x1xf32>
    %178 = tpu.reciprocal %177 : vector<16x1xf32> -> vector<16x1xf32>
    %179 = vector.broadcast %178 : vector<16x1xf32> to vector<16x8xf32>
    %180 = arith.mulf %175, %179 : vector<16x8xf32>
    %181 = arith.truncf %180 : vector<16x8xf32> to vector<16x8xbf16>
    %c0_75 = arith.constant 0 : index
    %c1_76 = arith.constant 1 : index
    %c0_77 = arith.constant 0 : index
    %c0_78 = arith.constant 0 : index
    %182 = vector.load %arg26[%c0_75, %c1_76, %c0_77, %c0_78] : memref<1x4x16x8xbf16, #tpu.memory_space<vmem>>, vector<1x1x16x8xbf16>
    %183 = vector.shape_cast %182 : vector<1x1x16x8xbf16> to vector<16x8xbf16>
    %184 = vector.shape_cast %181 : vector<16x8xbf16> to vector<1x1x16x8xbf16>
    tpu.vector_store %arg26[%c0_75, %c1_76, %c0_77, %c0_78], %184 {strides = array<i32>} : memref<1x4x16x8xbf16, #tpu.memory_space<vmem>>, vector<1x1x16x8xbf16>,
    %185 = arith.truncf %180 : vector<16x8xf32> to vector<16x8xbf16>
    %186 = vector.extract_strided_slice %147 {offsets = [0, 32], sizes = [8, 32], strides = [1, 1]} : vector<8x128xbf16> to vector<8x32xbf16>
    %cst_79 = arith.constant dense<0.000000e+00> : vector<16x32xf32>
    %187 = tpu.matmul %185, %186, %cst_79 {dimension_numbers = #tpu.dot_dimension_numbers<[1], [0], [0], [1], [0, 0, 1, 1], [], []>} : vector<16x8xbf16>, vector<8x32xbf16>, vector<16x32xf32> -> vector<16x32xf32>
    %188 = vector.extract_strided_slice %145 {offsets = [0, 64], sizes = [16, 32], strides = [1, 1]} : vector<16x128xbf16> to vector<16x32xbf16>
    %189 = vector.extract_strided_slice %146 {offsets = [0, 64], sizes = [8, 32], strides = [1, 1]} : vector<8x128xbf16> to vector<8x32xbf16>
    %cst_80 = arith.constant dense<0.000000e+00> : vector<16x8xf32>
    %190 = tpu.matmul %188, %189, %cst_80 {dimension_numbers = #tpu.dot_dimension_numbers<[1], [1], [0], [0], [0, 0, 1, 0], [], []>} : vector<16x32xbf16>, vector<8x32xbf16>, vector<16x8xf32> -> vector<16x8xf32>
    %cst_81 = arith.constant dense<0xFF800000> : vector<16xf32>
    %191 = vector.multi_reduction <maximumf>, %190, %cst_81 [1] : vector<16x8xf32> to vector<16xf32>
    %192 = vector.shape_cast %191 : vector<16xf32> to vector<16x1xf32>
    %193 = vector.broadcast %192 : vector<16x1xf32> to vector<16x8xf32>
    %194 = arith.subf %190, %193 : vector<16x8xf32>
    %195 = math.exp %194 : vector<16x8xf32>
    %cst_82 = arith.constant dense<0.000000e+00> : vector<16xf32>
    %196 = vector.multi_reduction <add>, %195, %cst_82 [1] : vector<16x8xf32> to vector<16xf32>
    %197 = vector.shape_cast %196 : vector<16xf32> to vector<16x1xf32>
    %198 = tpu.reciprocal %197 : vector<16x1xf32> -> vector<16x1xf32>
    %199 = vector.broadcast %198 : vector<16x1xf32> to vector<16x8xf32>
    %200 = arith.mulf %195, %199 : vector<16x8xf32>
    %201 = arith.truncf %200 : vector<16x8xf32> to vector<16x8xbf16>
    %c0_83 = arith.constant 0 : index
    %c2_84 = arith.constant 2 : index
    %c0_85 = arith.constant 0 : index
    %c0_86 = arith.constant 0 : index
    %202 = vector.load %arg26[%c0_83, %c2_84, %c0_85, %c0_86] : memref<1x4x16x8xbf16, #tpu.memory_space<vmem>>, vector<1x1x16x8xbf16>
    %203 = vector.shape_cast %202 : vector<1x1x16x8xbf16> to vector<16x8xbf16>
    %204 = vector.shape_cast %201 : vector<16x8xbf16> to vector<1x1x16x8xbf16>
    tpu.vector_store %arg26[%c0_83, %c2_84, %c0_85, %c0_86], %204 {strides = array<i32>} : memref<1x4x16x8xbf16, #tpu.memory_space<vmem>>, vector<1x1x16x8xbf16>,
    %205 = arith.truncf %200 : vector<16x8xf32> to vector<16x8xbf16>
    %206 = vector.extract_strided_slice %147 {offsets = [0, 64], sizes = [8, 32], strides = [1, 1]} : vector<8x128xbf16> to vector<8x32xbf16>
    %cst_87 = arith.constant dense<0.000000e+00> : vector<16x32xf32>
    %207 = tpu.matmul %205, %206, %cst_87 {dimension_numbers = #tpu.dot_dimension_numbers<[1], [0], [0], [1], [0, 0, 1, 1], [], []>} : vector<16x8xbf16>, vector<8x32xbf16>, vector<16x32xf32> -> vector<16x32xf32>
    %208 = vector.extract_strided_slice %145 {offsets = [0, 96], sizes = [16, 32], strides = [1, 1]} : vector<16x128xbf16> to vector<16x32xbf16>
    %209 = vector.extract_strided_slice %146 {offsets = [0, 96], sizes = [8, 32], strides = [1, 1]} : vector<8x128xbf16> to vector<8x32xbf16>
    %cst_88 = arith.constant dense<0.000000e+00> : vector<16x8xf32>
    %210 = tpu.matmul %208, %209, %cst_88 {dimension_numbers = #tpu.dot_dimension_numbers<[1], [1], [0], [0], [0, 0, 1, 0], [], []>} : vector<16x32xbf16>, vector<8x32xbf16>, vector<16x8xf32> -> vector<16x8xf32>
    %cst_89 = arith.constant dense<0xFF800000> : vector<16xf32>
    %211 = vector.multi_reduction <maximumf>, %210, %cst_89 [1] : vector<16x8xf32> to vector<16xf32>
    %212 = vector.shape_cast %211 : vector<16xf32> to vector<16x1xf32>
    %213 = vector.broadcast %212 : vector<16x1xf32> to vector<16x8xf32>
    %214 = arith.subf %210, %213 : vector<16x8xf32>
    %215 = math.exp %214 : vector<16x8xf32>
    %cst_90 = arith.constant dense<0.000000e+00> : vector<16xf32>
    %216 = vector.multi_reduction <add>, %215, %cst_90 [1] : vector<16x8xf32> to vector<16xf32>
    %217 = vector.shape_cast %216 : vector<16xf32> to vector<16x1xf32>
    %218 = tpu.reciprocal %217 : vector<16x1xf32> -> vector<16x1xf32>
    %219 = vector.broadcast %218 : vector<16x1xf32> to vector<16x8xf32>
    %220 = arith.mulf %215, %219 : vector<16x8xf32>
    %221 = arith.truncf %220 : vector<16x8xf32> to vector<16x8xbf16>
    %c0_91 = arith.constant 0 : index
    %c3_92 = arith.constant 3 : index
    %c0_93 = arith.constant 0 : index
    %c0_94 = arith.constant 0 : index
    %222 = vector.load %arg26[%c0_91, %c3_92, %c0_93, %c0_94] : memref<1x4x16x8xbf16, #tpu.memory_space<vmem>>, vector<1x1x16x8xbf16>
    %223 = vector.shape_cast %222 : vector<1x1x16x8xbf16> to vector<16x8xbf16>
    %224 = vector.shape_cast %221 : vector<16x8xbf16> to vector<1x1x16x8xbf16>
    tpu.vector_store %arg26[%c0_91, %c3_92, %c0_93, %c0_94], %224 {strides = array<i32>} : memref<1x4x16x8xbf16, #tpu.memory_space<vmem>>, vector<1x1x16x8xbf16>,
    %225 = arith.truncf %220 : vector<16x8xf32> to vector<16x8xbf16>
    %226 = vector.extract_strided_slice %147 {offsets = [0, 96], sizes = [8, 32], strides = [1, 1]} : vector<8x128xbf16> to vector<8x32xbf16>
    %cst_95 = arith.constant dense<0.000000e+00> : vector<16x32xf32>
    %227 = tpu.matmul %225, %226, %cst_95 {dimension_numbers = #tpu.dot_dimension_numbers<[1], [0], [0], [1], [0, 0, 1, 1], [], []>} : vector<16x8xbf16>, vector<8x32xbf16>, vector<16x32xf32> -> vector<16x32xf32>
    %228 = tpu.concatenate %167, %187, %207, %227 in 1 : vector<16x32xf32>, vector<16x32xf32>, vector<16x32xf32>, vector<16x32xf32> -> vector<16x128xf32>
    %229 = arith.truncf %228 : vector<16x128xf32> to vector<16x128xbf16>
    %c0_96 = arith.constant 0 : index
    %c0_97 = arith.constant 0 : index
    %230 = vector.load %arg14[%c0_96, %c0_97] : memref<128x128xbf16, #tpu.memory_space<vmem>>, vector<128x128xbf16>
    %cst_98 = arith.constant dense<0.000000e+00> : vector<16x128xf32>
    %231 = tpu.matmul %229, %230, %cst_98 {dimension_numbers = #tpu.dot_dimension_numbers<[1], [0], [0], [1], [0, 0, 1, 1], [], []>} : vector<16x128xbf16>, vector<128x128xbf16>, vector<16x128xf32> -> vector<16x128xf32>
    %c0_99 = arith.constant 0 : index
    %c0_100 = arith.constant 0 : index
    %232 = vector.load %arg15[%c0_99, %c0_100] : memref<1x128xf32, #tpu.memory_space<vmem>>, vector<1x128xf32>
    %233 = vector.broadcast %232 : vector<1x128xf32> to vector<16x128xf32>
    %234 = arith.addf %231, %233 : vector<16x128xf32>
    %c0_101 = arith.constant 0 : index
    %c0_102 = arith.constant 0 : index
    %235 = vector.load %arg16[%c0_101, %c0_102] : memref<1x128xf32, #tpu.memory_space<vmem>>, vector<1x128xf32>
    %c0_103 = arith.constant 0 : index
    %c0_104 = arith.constant 0 : index
    %236 = vector.load %arg17[%c0_103, %c0_104] : memref<1x128xf32, #tpu.memory_space<vmem>>, vector<1x128xf32>
    %237 = arith.addf %234, %127 : vector<16x128xf32>
    %cst_105 = arith.constant dense<0.000000e+00> : vector<16xf32>
    %238 = vector.multi_reduction <add>, %237, %cst_105 [1] : vector<16x128xf32> to vector<16xf32>
    %239 = vector.shape_cast %238 : vector<16xf32> to vector<16x1xf32>
    %cst_106 = arith.constant 1.280000e+02 : f32
    %240 = vector.broadcast %cst_106 : f32 to vector<16x1xf32>
    %241 = arith.divf %239, %240 : vector<16x1xf32>
    %242 = vector.broadcast %241 : vector<16x1xf32> to vector<16x128xf32>
    %243 = arith.subf %237, %242 : vector<16x128xf32>
    %244 = arith.mulf %243, %243 : vector<16x128xf32>
    %cst_107 = arith.constant dense<0.000000e+00> : vector<16xf32>
    %245 = vector.multi_reduction <add>, %244, %cst_107 [1] : vector<16x128xf32> to vector<16xf32>
    %246 = vector.shape_cast %245 : vector<16xf32> to vector<16x1xf32>
    %cst_108 = arith.constant 1.280000e+02 : f32
    %247 = vector.broadcast %cst_108 : f32 to vector<16x1xf32>
    %248 = arith.divf %246, %247 : vector<16x1xf32>
    %249 = vector.broadcast %241 : vector<16x1xf32> to vector<16x128xf32>
    %250 = arith.subf %237, %249 : vector<16x128xf32>
    %cst_109 = arith.constant 9.99999974E-6 : f32
    %251 = vector.broadcast %cst_109 : f32 to vector<16x1xf32>
    %252 = arith.addf %248, %251 : vector<16x1xf32>
    %253 = math.rsqrt %252 : vector<16x1xf32>
    %254 = vector.broadcast %253 : vector<16x1xf32> to vector<16x128xf32>
    %255 = arith.mulf %250, %254 : vector<16x128xf32>
    %256 = vector.broadcast %235 : vector<1x128xf32> to vector<16x128xf32>
    %257 = arith.mulf %255, %256 : vector<16x128xf32>
    %258 = vector.broadcast %236 : vector<1x128xf32> to vector<16x128xf32>
    %259 = arith.addf %257, %258 : vector<16x128xf32>
    %260 = arith.truncf %259 : vector<16x128xf32> to vector<16x128xbf16>
    %c0_110 = arith.constant 0 : index
    %c0_111 = arith.constant 0 : index
    %261 = vector.load %arg18[%c0_110, %c0_111] : memref<128x256xbf16, #tpu.memory_space<vmem>>, vector<128x256xbf16>
    %cst_112 = arith.constant dense<0.000000e+00> : vector<16x256xf32>
    %262 = tpu.matmul %260, %261, %cst_112 {dimension_numbers = #tpu.dot_dimension_numbers<[1], [0], [0], [1], [0, 0, 1, 1], [], []>} : vector<16x128xbf16>, vector<128x256xbf16>, vector<16x256xf32> -> vector<16x256xf32>
    %c0_113 = arith.constant 0 : index
    %c0_114 = arith.constant 0 : index
    %263 = vector.load %arg19[%c0_113, %c0_114] : memref<1x256xf32, #tpu.memory_space<vmem>>, vector<1x256xf32>
    %264 = vector.broadcast %263 : vector<1x256xf32> to vector<16x256xf32>
    %265 = arith.addf %262, %264 : vector<16x256xf32>
    %cst_115 = arith.constant 0.000000e+00 : f32
    %266 = vector.broadcast %cst_115 : f32 to vector<16x256xf32>
    %267 = arith.maximumf %265, %266 : vector<16x256xf32>
    %268 = arith.truncf %267 : vector<16x256xf32> to vector<16x256xbf16>
    %c0_116 = arith.constant 0 : index
    %c0_117 = arith.constant 0 : index
    %269 = vector.load %arg20[%c0_116, %c0_117] : memref<256x128xbf16, #tpu.memory_space<vmem>>, vector<256x128xbf16>
    %cst_118 = arith.constant dense<0.000000e+00> : vector<16x128xf32>
    %270 = tpu.matmul %268, %269, %cst_118 {dimension_numbers = #tpu.dot_dimension_numbers<[1], [0], [0], [1], [0, 0, 1, 1], [], []>} : vector<16x256xbf16>, vector<256x128xbf16>, vector<16x128xf32> -> vector<16x128xf32>
    %c0_119 = arith.constant 0 : index
    %c0_120 = arith.constant 0 : index
    %271 = vector.load %arg21[%c0_119, %c0_120] : memref<1x128xf32, #tpu.memory_space<vmem>>, vector<1x128xf32>
    %272 = vector.broadcast %271 : vector<1x128xf32> to vector<16x128xf32>
    %273 = arith.addf %270, %272 : vector<16x128xf32>
    %c0_121 = arith.constant 0 : index
    %c0_122 = arith.constant 0 : index
    %274 = vector.load %arg22[%c0_121, %c0_122] : memref<1x128xf32, #tpu.memory_space<vmem>>, vector<1x128xf32>
    %c0_123 = arith.constant 0 : index
    %c0_124 = arith.constant 0 : index
    %275 = vector.load %arg23[%c0_123, %c0_124] : memref<1x128xf32, #tpu.memory_space<vmem>>, vector<1x128xf32>
    %276 = arith.addf %273, %259 : vector<16x128xf32>
    %cst_125 = arith.constant dense<0.000000e+00> : vector<16xf32>
    %277 = vector.multi_reduction <add>, %276, %cst_125 [1] : vector<16x128xf32> to vector<16xf32>
    %278 = vector.shape_cast %277 : vector<16xf32> to vector<16x1xf32>
    %cst_126 = arith.constant 1.280000e+02 : f32
    %279 = vector.broadcast %cst_126 : f32 to vector<16x1xf32>
    %280 = arith.divf %278, %279 : vector<16x1xf32>
    %281 = vector.broadcast %280 : vector<16x1xf32> to vector<16x128xf32>
    %282 = arith.subf %276, %281 : vector<16x128xf32>
    %283 = arith.mulf %282, %282 : vector<16x128xf32>
    %cst_127 = arith.constant dense<0.000000e+00> : vector<16xf32>
    %284 = vector.multi_reduction <add>, %283, %cst_127 [1] : vector<16x128xf32> to vector<16xf32>
    %285 = vector.shape_cast %284 : vector<16xf32> to vector<16x1xf32>
    %cst_128 = arith.constant 1.280000e+02 : f32
    %286 = vector.broadcast %cst_128 : f32 to vector<16x1xf32>
    %287 = arith.divf %285, %286 : vector<16x1xf32>
    %288 = vector.broadcast %280 : vector<16x1xf32> to vector<16x128xf32>
    %289 = arith.subf %276, %288 : vector<16x128xf32>
    %cst_129 = arith.constant 9.99999974E-6 : f32
    %290 = vector.broadcast %cst_129 : f32 to vector<16x1xf32>
    %291 = arith.addf %287, %290 : vector<16x1xf32>
    %292 = math.rsqrt %291 : vector<16x1xf32>
    %293 = vector.broadcast %292 : vector<16x1xf32> to vector<16x128xf32>
    %294 = arith.mulf %289, %293 : vector<16x128xf32>
    %295 = vector.broadcast %274 : vector<1x128xf32> to vector<16x128xf32>
    %296 = arith.mulf %294, %295 : vector<16x128xf32>
    %297 = vector.broadcast %275 : vector<1x128xf32> to vector<16x128xf32>
    %298 = arith.addf %296, %297 : vector<16x128xf32>
    %c0_130 = arith.constant 0 : index
    %c0_131 = arith.constant 0 : index
    %c0_132 = arith.constant 0 : index
    %299 = vector.load %arg24[%c0_130, %c0_131, %c0_132] : memref<1x16x128xf32, #tpu.memory_space<vmem>>, vector<1x16x128xf32>
    %300 = vector.shape_cast %299 : vector<1x16x128xf32> to vector<16x128xf32>
    %301 = vector.shape_cast %298 : vector<16x128xf32> to vector<1x16x128xf32>
    tpu.vector_store %arg24[%c0_130, %c0_131, %c0_132], %301 {strides = array<i32>} : memref<1x16x128xf32, #tpu.memory_space<vmem>>, vector<1x16x128xf32>,
    return
  }
  func.func @transform_0(%arg0: i32, %arg1: i32) -> (i32, i32, i32) {
    %c0_i32 = arith.constant 0 : i32
    %c0_i32_0 = arith.constant 0 : i32
    %c0_i32_1 = arith.constant 0 : i32
    return %arg0, %c0_i32, %c0_i32_0 : i32, i32, i32
  }
  func.func @transform_1(%arg0: i32, %arg1: i32) -> (i32, i32, i32) {
    %c0_i32 = arith.constant 0 : i32
    %c0_i32_0 = arith.constant 0 : i32
    %c0_i32_1 = arith.constant 0 : i32
    return %arg0, %c0_i32, %c0_i32_0 : i32, i32, i32
  }
  func.func @transform_2(%arg0: i32, %arg1: i32) -> (i32, i32) {
    %c0_i32 = arith.constant 0 : i32
    %c0_i32_0 = arith.constant 0 : i32
    %c0_i32_1 = arith.constant 0 : i32
    return %c0_i32, %c0_i32_0 : i32, i32
  }
  func.func @transform_3(%arg0: i32, %arg1: i32) -> (i32, i32) {
    %c0_i32 = arith.constant 0 : i32
    %c0_i32_0 = arith.constant 0 : i32
    %c0_i32_1 = arith.constant 0 : i32
    return %c0_i32, %c0_i32_0 : i32, i32
  }
  func.func @transform_4(%arg0: i32, %arg1: i32) -> (i32, i32) {
    %c0_i32 = arith.constant 0 : i32
    %c0_i32_0 = arith.constant 0 : i32
    %c0_i32_1 = arith.constant 0 : i32
    return %c0_i32, %c0_i32_0 : i32, i32
  }
  func.func @transform_5(%arg0: i32, %arg1: i32) -> (i32, i32) {
    %c0_i32 = arith.constant 0 : i32
    %c0_i32_0 = arith.constant 0 : i32
    %c0_i32_1 = arith.constant 0 : i32
    return %c0_i32, %c0_i32_0 : i32, i32
  }
  func.func @transform_6(%arg0: i32, %arg1: i32) -> (i32, i32) {
    %c0_i32 = arith.constant 0 : i32
    %c0_i32_0 = arith.constant 0 : i32
    %c0_i32_1 = arith.constant 0 : i32
    return %c0_i32, %c0_i32_0 : i32, i32
  }
  func.func @transform_7(%arg0: i32, %arg1: i32) -> (i32, i32) {
    %c0_i32 = arith.constant 0 : i32
    %c0_i32_0 = arith.constant 0 : i32
    %c0_i32_1 = arith.constant 0 : i32
    return %c0_i32, %c0_i32_0 : i32, i32
  }
  func.func @transform_8(%arg0: i32, %arg1: i32) -> (i32, i32) {
    %c0_i32 = arith.constant 0 : i32
    %c0_i32_0 = arith.constant 0 : i32
    %c0_i32_1 = arith.constant 0 : i32
    return %c0_i32, %c0_i32_0 : i32, i32
  }
  func.func @transform_9(%arg0: i32, %arg1: i32) -> (i32, i32) {
    %c0_i32 = arith.constant 0 : i32
    %c0_i32_0 = arith.constant 0 : i32
    %c0_i32_1 = arith.constant 0 : i32
    return %c0_i32, %c0_i32_0 : i32, i32
  }
  func.func @transform_10(%arg0: i32, %arg1: i32) -> (i32, i32) {
    %c0_i32 = arith.constant 0 : i32
    %c0_i32_0 = arith.constant 0 : i32
    %c0_i32_1 = arith.constant 0 : i32
    return %c0_i32, %c0_i32_0 : i32, i32
  }
  func.func @transform_11(%arg0: i32, %arg1: i32) -> (i32, i32) {
    %c0_i32 = arith.constant 0 : i32
    %c0_i32_0 = arith.constant 0 : i32
    %c0_i32_1 = arith.constant 0 : i32
    return %c0_i32, %c0_i32_0 : i32, i32
  }
  func.func @transform_12(%arg0: i32, %arg1: i32) -> (i32, i32) {
    %c0_i32 = arith.constant 0 : i32
    %c0_i32_0 = arith.constant 0 : i32
    %c0_i32_1 = arith.constant 0 : i32
    return %c0_i32, %c0_i32_0 : i32, i32
  }
  func.func @transform_13(%arg0: i32, %arg1: i32) -> (i32, i32) {
    %c0_i32 = arith.constant 0 : i32
    %c0_i32_0 = arith.constant 0 : i32
    %c0_i32_1 = arith.constant 0 : i32
    return %c0_i32, %c0_i32_0 : i32, i32
  }
  func.func @transform_14(%arg0: i32, %arg1: i32) -> (i32, i32) {
    %c0_i32 = arith.constant 0 : i32
    %c0_i32_0 = arith.constant 0 : i32
    %c0_i32_1 = arith.constant 0 : i32
    return %c0_i32, %c0_i32_0 : i32, i32
  }
  func.func @transform_15(%arg0: i32, %arg1: i32) -> (i32, i32) {
    %c0_i32 = arith.constant 0 : i32
    %c0_i32_0 = arith.constant 0 : i32
    %c0_i32_1 = arith.constant 0 : i32
    return %c0_i32, %c0_i32_0 : i32, i32
  }
  func.func @transform_16(%arg0: i32, %arg1: i32) -> (i32, i32) {
    %c0_i32 = arith.constant 0 : i32
    %c0_i32_0 = arith.constant 0 : i32
    %c0_i32_1 = arith.constant 0 : i32
    return %c0_i32, %c0_i32_0 : i32, i32
  }
  func.func @transform_17(%arg0: i32, %arg1: i32) -> (i32, i32) {
    %c0_i32 = arith.constant 0 : i32
    %c0_i32_0 = arith.constant 0 : i32
    %c0_i32_1 = arith.constant 0 : i32
    return %c0_i32, %c0_i32_0 : i32, i32
  }
  func.func @transform_18(%arg0: i32, %arg1: i32) -> (i32, i32) {
    %c0_i32 = arith.constant 0 : i32
    %c0_i32_0 = arith.constant 0 : i32
    %c0_i32_1 = arith.constant 0 : i32
    return %c0_i32, %c0_i32_0 : i32, i32
  }
  func.func @transform_19(%arg0: i32, %arg1: i32) -> (i32, i32) {
    %c0_i32 = arith.constant 0 : i32
    %c0_i32_0 = arith.constant 0 : i32
    %c0_i32_1 = arith.constant 0 : i32
    return %c0_i32, %c0_i32_0 : i32, i32
  }
  func.func @transform_20(%arg0: i32, %arg1: i32) -> (i32, i32) {
    %c0_i32 = arith.constant 0 : i32
    %c0_i32_0 = arith.constant 0 : i32
    %c0_i32_1 = arith.constant 0 : i32
    return %c0_i32, %c0_i32_0 : i32, i32
  }
  func.func @transform_21(%arg0: i32, %arg1: i32) -> (i32, i32) {
    %c0_i32 = arith.constant 0 : i32
    %c0_i32_0 = arith.constant 0 : i32
    %c0_i32_1 = arith.constant 0 : i32
    return %c0_i32, %c0_i32_0 : i32, i32
  }
  func.func @transform_22(%arg0: i32, %arg1: i32) -> (i32, i32, i32) {
    %c0_i32 = arith.constant 0 : i32
    %c0_i32_0 = arith.constant 0 : i32
    return %arg0, %arg1, %c0_i32 : i32, i32, i32
  }
  func.func @transform_23(%arg0: i32, %arg1: i32) -> (i32, i32, i32, i32) {
    %c0_i32 = arith.constant 0 : i32
    %c0_i32_0 = arith.constant 0 : i32
    %c0_i32_1 = arith.constant 0 : i32
    return %arg0, %c0_i32, %arg1, %c0_i32_0 : i32, i32, i32, i32
  }
  func.func @transform_24(%arg0: i32, %arg1: i32) -> (i32, i32, i32, i32) {
    %c0_i32 = arith.constant 0 : i32
    %c0_i32_0 = arith.constant 0 : i32
    %c0_i32_1 = arith.constant 0 : i32
    return %arg0, %c0_i32, %arg1, %c0_i32_0 : i32, i32, i32, i32
  }
}

</mosaic_0001>

<llo_original>
// kernel: tpu_custom_call.1
$region0: #{tpu_custom_call.1}
  #allocation0 [shape = 'u32[]', space=smem, size = 0x4, offset = 0x4, fixed_abs, tag = 'smem constant byte address 0x4 - core index']
  #allocation1 [shape = 'u32[144,128]{1,0:T(1,128)}', space=vmem, size = 0x12000, scoped, tag = 'internal scratch']
  %s0 = inlined_call_operand.hbm [shape: bf16[2,16,128], index: 0, kind: input, shape index: {}]
  %s1 = inlined_call_operand.hbm [shape: bf16[2,8,128], index: 1, kind: input, shape index: {}]
  %s2 = inlined_call_operand.hbm [shape: bf16[128,384], index: 2, kind: input, shape index: {}]
  %s3 = inlined_call_operand.vmem [shape: f32[1,384], index: 3, kind: input, shape index: {}]
  %s4 = inlined_call_operand.hbm [shape: bf16[128,128], index: 4, kind: input, shape index: {}]
  %s5 = inlined_call_operand.vmem [shape: f32[1,128], index: 5, kind: input, shape index: {}]
  %s6 = inlined_call_operand.vmem [shape: f32[1,128], index: 6, kind: input, shape index: {}]
  %s7 = inlined_call_operand.vmem [shape: f32[1,128], index: 7, kind: input, shape index: {}]
  %s8 = inlined_call_operand.hbm [shape: bf16[128,128], index: 8, kind: input, shape index: {}]
  %s9 = inlined_call_operand.vmem [shape: f32[1,128], index: 9, kind: input, shape index: {}]
  %s10 = inlined_call_operand.hbm [shape: bf16[128,256], index: 10, kind: input, shape index: {}]
  %s11 = inlined_call_operand.vmem [shape: f32[1,256], index: 11, kind: input, shape index: {}]
  %s12 = inlined_call_operand.hbm [shape: bf16[128,128], index: 12, kind: input, shape index: {}]
  %s13 = inlined_call_operand.vmem [shape: f32[1,128], index: 13, kind: input, shape index: {}]
  %s14 = inlined_call_operand.vmem [shape: f32[1,128], index: 14, kind: input, shape index: {}]
  %s15 = inlined_call_operand.vmem [shape: f32[1,128], index: 15, kind: input, shape index: {}]
  %s16 = inlined_call_operand.hbm [shape: bf16[128,256], index: 16, kind: input, shape index: {}]
  %s17 = inlined_call_operand.vmem [shape: f32[1,256], index: 17, kind: input, shape index: {}]
  %s18 = inlined_call_operand.hbm [shape: bf16[256,128], index: 18, kind: input, shape index: {}]
  %s19 = inlined_call_operand.vmem [shape: f32[1,128], index: 19, kind: input, shape index: {}]
  %s20 = inlined_call_operand.vmem [shape: f32[1,128], index: 20, kind: input, shape index: {}]
  %s21 = inlined_call_operand.vmem [shape: f32[1,128], index: 21, kind: input, shape index: {}]
  %s22 = inlined_call_operand.hbm [shape: f32[2,16,128], index: 22, kind: output, shape index: {0}]
  %s23 = inlined_call_operand.hbm [shape: bf16[2,4,16,16], index: 23, kind: output, shape index: {1}]
  %s24 = inlined_call_operand.vmem [shape: bf16[2,4,16,8], index: 24, kind: output, shape index: {2}]
  %25 = xla_tuple %s22, %s23, %s24
  %s26 = sld [smem:[#allocation0]]
  $region173: #{tpu_custom_call.1} parent=0
    _
  %s28 = ssub.s32 1, %s26
  %s29 = scalar_select 0, %s28, %s26
  $region1: #{tpu_custom_call.1} parent=0
    #allocation2 [shape = 'u8[8192]{0}', space=vmem, size = 0x2000, scoped, tag = 'input window, operand 0']
    #allocation3 [shape = 's32[2]{0}', space=sflag, size = 0x8, scoped, tag = 'scoped memory for tpu_custom_call.1']
    #allocation4 [shape = 's32[2]{0}', space=sflag, size = 0x8, scoped, tag = 'scoped memory for tpu_custom_call.1']
    #allocation5 [shape = 'u8[4096]{0}', space=vmem, size = 0x1000, scoped, tag = 'input window, operand 1']
    #allocation6 [shape = 's32[2]{0}', space=sflag, size = 0x8, scoped, tag = 'scoped memory for tpu_custom_call.1']
    #allocation7 [shape = 'u8[98304]{0}', space=vmem, size = 0x18000, scoped, tag = 'input window, operand 2, single buffered']
    #allocation8 [shape = 'u8[32768]{0}', space=vmem, size = 0x8000, scoped, tag = 'input window, operand 4, single buffered']
    #allocation9 [shape = 's32[1]{0}', space=sflag, size = 0x4, scoped, tag = 'scoped memory for tpu_custom_call.1']
    #allocation10 [shape = 'u8[32768]{0}', space=vmem, size = 0x8000, scoped, tag = 'input window, operand 8, single buffered']
    #allocation11 [shape = 'u8[65536]{0}', space=vmem, size = 0x10000, scoped, tag = 'input window, operand 10, single buffered']
    #allocation12 [shape = 's32[1]{0}', space=sflag, size = 0x4, scoped, tag = 'scoped memory for tpu_custom_call.1']
    #allocation13 [shape = 'u8[32768]{0}', space=vmem, size = 0x8000, scoped, tag = 'input window, operand 12, single buffered']
    #allocation14 [shape = 'u8[65536]{0}', space=vmem, size = 0x10000, scoped, tag = 'input window, operand 16, single buffered']
    #allocation15 [shape = 's32[1]{0}', space=sflag, size = 0x4, scoped, tag = 'scoped memory for tpu_custom_call.1']
    #allocation16 [shape = 'u8[65536]{0}', space=vmem, size = 0x10000, scoped, tag = 'input window, operand 18, single buffered']
    #allocation17 [shape = 'u8[16384]{0}', space=vmem, size = 0x4000, scoped, tag = 'output window, operand 0']
    #allocation18 [shape = 'u8[32768]{0}', space=vmem, size = 0x8000, scoped, tag = 'output window, operand 1']
    #allocation19 [shape = 's32[2]{0}', space=sflag, size = 0x8, scoped, tag = 'scoped memory for tpu_custom_call.1']
    %30 = vsyncpa [#allocation3], 0
    %s31 = scalar_lea.sflag [#allocation3], 1
    %32 = vsyncpa %s31, 0
    %33 = vsyncpa [#allocation6], 0
    %s34 = scalar_lea.sflag [#allocation6], 1
    %35 = vsyncpa %s34, 0
    %36 = vsyncpa [#allocation9], 0
    %37 = vsyncpa [#allocation12], 0
    %38 = vsyncpa [#allocation15], 0
    %39 = vsyncpa [#allocation4], 0
    %s40 = scalar_lea.sflag [#allocation4], 1
    %41 = vsyncpa %s40, 0
    %42 = vsyncpa [#allocation19], 0
    %s43 = scalar_lea.sflag [#allocation19], 1
    %44 = vsyncpa %s43, 0
    loop: start=0, step=1, limit=4
    $region2: #{tpu_custom_call.1} parent=1 // loop_pre_header
      _
    $region3: #{tpu_custom_call.1} parent=1 // loop_header
      %s46 = sphi 0, %s50
      %p47 = scmp.ge.s32.totalorder %s46, 4
      %s53 = sphi 0, %s65
      %s54 = sphi 0, %s61
      %s55 = sphi 0, %s53
      %s56 = sphi 0, %s54
      %s57 = sphi 0, %s55
      %s58 = sphi 0, %s56
      %s68 = sphi 0, %s70
      %s71 = sphi 0, %s68
      %s72 = sphi 0, %s71
      %s88 = sphi 0, %s72
      %s94 = sphi 0, %s96
      %s97 = sphi 0, %s94
      %s98 = sphi 0, %s97
      %s114 = sphi 0, %s98
      %s118 = sphi 0, %s118
      %s120 = sphi 0, %s118
      %s121 = sphi 0, %s120
      %s135 = sphi 0, %s121
      %s139 = sphi 0, %s139
      %s141 = sphi 0, %s139
      %s142 = sphi 0, %s141
      %s156 = sphi 0, %s142
      %s160 = sphi 0, %s160
      %s162 = sphi 0, %s160
      %s163 = sphi 0, %s162
      %s177 = sphi 0, %s163
      %s181 = sphi 0, %s181
      %s183 = sphi 0, %s181
      %s184 = sphi 0, %s183
      %s198 = sphi 0, %s184
      %s202 = sphi 0, %s202
      %s204 = sphi 0, %s202
      %s205 = sphi 0, %s204
      %s219 = sphi 0, %s205
      %s223 = sphi 0, %s223
      %s225 = sphi 0, %s223
      %s226 = sphi 0, %s225
      %s240 = sphi 0, %s226
      %s244 = sphi 0, %s244
      %s246 = sphi 0, %s244
      %s247 = sphi 0, %s246
      %s261 = sphi 0, %s247
      %s265 = sphi 0, %s265
      %s267 = sphi 0, %s265
      %s268 = sphi 0, %s267
      %s282 = sphi 0, %s268
      %s286 = sphi 0, %s286
      %s288 = sphi 0, %s286
      %s289 = sphi 0, %s288
      %s303 = sphi 0, %s289
      %s307 = sphi 0, %s307
      %s309 = sphi 0, %s307
      %s310 = sphi 0, %s309
      %s324 = sphi 0, %s310
      %s328 = sphi 0, %s328
      %s330 = sphi 0, %s328
      %s331 = sphi 0, %s330
      %s345 = sphi 0, %s331
      %s349 = sphi 0, %s349
      %s351 = sphi 0, %s349
      %s352 = sphi 0, %s351
      %s366 = sphi 0, %s352
      %s370 = sphi 0, %s370
      %s372 = sphi 0, %s370
      %s373 = sphi 0, %s372
      %s387 = sphi 0, %s373
      %s391 = sphi 0, %s391
      %s393 = sphi 0, %s391
      %s394 = sphi 0, %s393
      %s408 = sphi 0, %s394
      %s412 = sphi 0, %s412
      %s414 = sphi 0, %s412
      %s415 = sphi 0, %s414
      %s429 = sphi 0, %s415
      %s433 = sphi 0, %s433
      %s435 = sphi 0, %s433
      %s436 = sphi 0, %s435
      %s450 = sphi 0, %s436
      %s454 = sphi 0, %s454
      %s456 = sphi 0, %s454
      %s457 = sphi 0, %s456
      %s471 = sphi 0, %s457
      %s475 = sphi 0, %s475
      %s477 = sphi 0, %s475
      %s478 = sphi 0, %s477
      %s492 = sphi 0, %s478
      %s496 = sphi 0, %s496
      %s498 = sphi 0, %s496
      %s499 = sphi 0, %s498
      %s513 = sphi 0, %s499
      %s517 = sphi 0, %s517
      %s519 = sphi 0, %s517
      %s520 = sphi 0, %s519
      %s534 = sphi 0, %s520
      %s542 = sphi 0, %s544
      %s545 = sphi 0, %s542
      %s546 = sphi 0, %s545
      %s562 = sphi 0, %s546
      %s570 = sphi 0, %s572
      %s573 = sphi 0, %s570
      %s574 = sphi 0, %s573
      %s590 = sphi 0, %s574
      %s598 = sphi 0, %s600
      %s601 = sphi 0, %s598
      %s602 = sphi 0, %s601
      %s618 = sphi 0, %s602
    $region4: #{tpu_custom_call.1} parent=1 // loop_header_branch
      %49 = sbr.rel (%p47) target = $region8
    $region5: #{tpu_custom_call.1} parent=1 // loop_body
      %s51 = ssub.s32 %s46, 1
      %s52 = ssub.s32 %s46, 2
      %s59 = sadd.s32 1, %s54
      %p60 = scmp.ge.s32.totalorder %s59, 1
      %s61 = scalar_select %p60, 0, %s59
      %s62 = sadd.s32 1, %s53
      %s63 = scalar_select %p60, %s62, %s53
      %p64 = scmp.ge.s32.totalorder %s63, 2
      %s65 = scalar_select %p64, 0, %s63
      %s66 = ssub.s32 %s53, %s65
      %p67 = scmp.eq.s32.totalorder %s66, 0
      %s69 = sadd.s32 %s68, 1
      %s70 = scalar_select %p67, %s68, %s69
      %p73 = pneg %p67
      %p74 = scmp.eq.s32.totalorder %s46, 1
      %p75 = por %p73, %p74
      %p76 = scmp.ne.s32.totalorder %s68, %s71
      %p77 = scmp.eq.s32.totalorder %s46, 0
      %p78 = por %p76, %p77
      %p79 = scmp.ne.s32.totalorder %s68, %s71
      %p80 = scmp.eq.s32.totalorder %s51, 1
      %p81 = por %p79, %p80
      %p82 = scmp.ne.s32.totalorder %s71, %s72
      %p83 = scmp.eq.s32.totalorder %s51, 0
      %p84 = por %p82, %p83
      %p85 = scmp.ne.s32.totalorder %s71, %s72
      %p86 = scmp.eq.s32.totalorder %s52, 1
      %p87 = por %p85, %p86
      %p89 = scmp.ne.s32.totalorder %s72, %s88
      %p90 = scmp.eq.s32.totalorder %s52, 0
      %p91 = por %p89, %p90
      %s92 = ssub.s32 %s53, %s65
      %p93 = scmp.eq.s32.totalorder %s92, 0
      %s95 = sadd.s32 %s94, 1
      %s96 = scalar_select %p93, %s94, %s95
      %p99 = pneg %p93
      %p100 = scmp.eq.s32.totalorder %s46, 1
      %p101 = por %p99, %p100
      %p102 = scmp.ne.s32.totalorder %s94, %s97
      %p103 = scmp.eq.s32.totalorder %s46, 0
      %p104 = por %p102, %p103
      %p105 = scmp.ne.s32.totalorder %s94, %s97
      %p106 = scmp.eq.s32.totalorder %s51, 1
      %p107 = por %p105, %p106
      %p108 = scmp.ne.s32.totalorder %s97, %s98
      %p109 = scmp.eq.s32.totalorder %s51, 0
      %p110 = por %p108, %p109
      %p111 = scmp.ne.s32.totalorder %s97, %s98
      %p112 = scmp.eq.s32.totalorder %s52, 1
      %p113 = por %p111, %p112
      %p115 = scmp.ne.s32.totalorder %s98, %s114
      %p116 = scmp.eq.s32.totalorder %s52, 0
      %p117 = por %p115, %p116
      %s119 = sadd.s32 %s118, 1
      %p122 = scmp.eq.s32.totalorder %s46, 1
      %p123 = scmp.ne.s32.totalorder %s118, %s120
      %p124 = scmp.eq.s32.totalorder %s46, 0
      %p125 = por %p123, %p124
      %p126 = scmp.ne.s32.totalorder %s118, %s120
      %p127 = scmp.eq.s32.totalorder %s51, 1
      %p128 = por %p126, %p127
      %p129 = scmp.ne.s32.totalorder %s120, %s121
      %p130 = scmp.eq.s32.totalorder %s51, 0
      %p131 = por %p129, %p130
      %p132 = scmp.ne.s32.totalorder %s120, %s121
      %p133 = scmp.eq.s32.totalorder %s52, 1
      %p134 = por %p132, %p133
      %p136 = scmp.ne.s32.totalorder %s121, %s135
      %p137 = scmp.eq.s32.totalorder %s52, 0
      %p138 = por %p136, %p137
      %s140 = sadd.s32 %s139, 1
      %p143 = scmp.eq.s32.totalorder %s46, 1
      %p144 = scmp.ne.s32.totalorder %s139, %s141
      %p145 = scmp.eq.s32.totalorder %s46, 0
      %p146 = por %p144, %p145
      %p147 = scmp.ne.s32.totalorder %s139, %s141
      %p148 = scmp.eq.s32.totalorder %s51, 1
      %p149 = por %p147, %p148
      %p150 = scmp.ne.s32.totalorder %s141, %s142
      %p151 = scmp.eq.s32.totalorder %s51, 0
      %p152 = por %p150, %p151
      %p153 = scmp.ne.s32.totalorder %s141, %s142
      %p154 = scmp.eq.s32.totalorder %s52, 1
      %p155 = por %p153, %p154
      %p157 = scmp.ne.s32.totalorder %s142, %s156
      %p158 = scmp.eq.s32.totalorder %s52, 0
      %p159 = por %p157, %p158
      %s161 = sadd.s32 %s160, 1
      %p164 = scmp.eq.s32.totalorder %s46, 1
      %p165 = scmp.ne.s32.totalorder %s160, %s162
      %p166 = scmp.eq.s32.totalorder %s46, 0
      %p167 = por %p165, %p166
      %p168 = scmp.ne.s32.totalorder %s160, %s162
      %p169 = scmp.eq.s32.totalorder %s51, 1
      %p170 = por %p168, %p169
      %p171 = scmp.ne.s32.totalorder %s162, %s163
      %p172 = scmp.eq.s32.totalorder %s51, 0
      %p173 = por %p171, %p172
      %p174 = scmp.ne.s32.totalorder %s162, %s163
      %p175 = scmp.eq.s32.totalorder %s52, 1
      %p176 = por %p174, %p175
      %p178 = scmp.ne.s32.totalorder %s163, %s177
      %p179 = scmp.eq.s32.totalorder %s52, 0
      %p180 = por %p178, %p179
      %s182 = sadd.s32 %s181, 1
      %p185 = scmp.eq.s32.totalorder %s46, 1
      %p186 = scmp.ne.s32.totalorder %s181, %s183
      %p187 = scmp.eq.s32.totalorder %s46, 0
      %p188 = por %p186, %p187
      %p189 = scmp.ne.s32.totalorder %s181, %s183
      %p190 = scmp.eq.s32.totalorder %s51, 1
      %p191 = por %p189, %p190
      %p192 = scmp.ne.s32.totalorder %s183, %s184
      %p193 = scmp.eq.s32.totalorder %s51, 0
      %p194 = por %p192, %p193
      %p195 = scmp.ne.s32.totalorder %s183, %s184
      %p196 = scmp.eq.s32.totalorder %s52, 1
      %p197 = por %p195, %p196
      %p199 = scmp.ne.s32.totalorder %s184, %s198
      %p200 = scmp.eq.s32.totalorder %s52, 0
      %p201 = por %p199, %p200
      %s203 = sadd.s32 %s202, 1
      %p206 = scmp.eq.s32.totalorder %s46, 1
      %p207 = scmp.ne.s32.totalorder %s202, %s204
      %p208 = scmp.eq.s32.totalorder %s46, 0
      %p209 = por %p207, %p208
      %p210 = scmp.ne.s32.totalorder %s202, %s204
      %p211 = scmp.eq.s32.totalorder %s51, 1
      %p212 = por %p210, %p211
      %p213 = scmp.ne.s32.totalorder %s204, %s205
      %p214 = scmp.eq.s32.totalorder %s51, 0
      %p215 = por %p213, %p214
      %p216 = scmp.ne.s32.totalorder %s204, %s205
      %p217 = scmp.eq.s32.totalorder %s52, 1
      %p218 = por %p216, %p217
      %p220 = scmp.ne.s32.totalorder %s205, %s219
      %p221 = scmp.eq.s32.totalorder %s52, 0
      %p222 = por %p220, %p221
      %s224 = sadd.s32 %s223, 1
      %p227 = scmp.eq.s32.totalorder %s46, 1
      %p228 = scmp.ne.s32.totalorder %s223, %s225
      %p229 = scmp.eq.s32.totalorder %s46, 0
      %p230 = por %p228, %p229
      %p231 = scmp.ne.s32.totalorder %s223, %s225
      %p232 = scmp.eq.s32.totalorder %s51, 1
      %p233 = por %p231, %p232
      %p234 = scmp.ne.s32.totalorder %s225, %s226
      %p235 = scmp.eq.s32.totalorder %s51, 0
      %p236 = por %p234, %p235
      %p237 = scmp.ne.s32.totalorder %s225, %s226
      %p238 = scmp.eq.s32.totalorder %s52, 1
      %p239 = por %p237, %p238
      %p241 = scmp.ne.s32.totalorder %s226, %s240
      %p242 = scmp.eq.s32.totalorder %s52, 0
      %p243 = por %p241, %p242
      %s245 = sadd.s32 %s244, 1
      %p248 = scmp.eq.s32.totalorder %s46, 1
      %p249 = scmp.ne.s32.totalorder %s244, %s246
      %p250 = scmp.eq.s32.totalorder %s46, 0
      %p251 = por %p249, %p250
      %p252 = scmp.ne.s32.totalorder %s244, %s246
      %p253 = scmp.eq.s32.totalorder %s51, 1
      %p254 = por %p252, %p253
      %p255 = scmp.ne.s32.totalorder %s246, %s247
      %p256 = scmp.eq.s32.totalorder %s51, 0
      %p257 = por %p255, %p256
      %p258 = scmp.ne.s32.totalorder %s246, %s247
      %p259 = scmp.eq.s32.totalorder %s52, 1
      %p260 = por %p258, %p259
      %p262 = scmp.ne.s32.totalorder %s247, %s261
      %p263 = scmp.eq.s32.totalorder %s52, 0
      %p264 = por %p262, %p263
      %s266 = sadd.s32 %s265, 1
      %p269 = scmp.eq.s32.totalorder %s46, 1
      %p270 = scmp.ne.s32.totalorder %s265, %s267
      %p271 = scmp.eq.s32.totalorder %s46, 0
      %p272 = por %p270, %p271
      %p273 = scmp.ne.s32.totalorder %s265, %s267
      %p274 = scmp.eq.s32.totalorder %s51, 1
      %p275 = por %p273, %p274
      %p276 = scmp.ne.s32.totalorder %s267, %s268
      %p277 = scmp.eq.s32.totalorder %s51, 0
      %p278 = por %p276, %p277
      %p279 = scmp.ne.s32.totalorder %s267, %s268
      %p280 = scmp.eq.s32.totalorder %s52, 1
      %p281 = por %p279, %p280
      %p283 = scmp.ne.s32.totalorder %s268, %s282
      %p284 = scmp.eq.s32.totalorder %s52, 0
      %p285 = por %p283, %p284
      %s287 = sadd.s32 %s286, 1
      %p290 = scmp.eq.s32.totalorder %s46, 1
      %p291 = scmp.ne.s32.totalorder %s286, %s288
      %p292 = scmp.eq.s32.totalorder %s46, 0
      %p293 = por %p291, %p292
      %p294 = scmp.ne.s32.totalorder %s286, %s288
      %p295 = scmp.eq.s32.totalorder %s51, 1
      %p296 = por %p294, %p295
      %p297 = scmp.ne.s32.totalorder %s288, %s289
      %p298 = scmp.eq.s32.totalorder %s51, 0
      %p299 = por %p297, %p298
      %p300 = scmp.ne.s32.totalorder %s288, %s289
      %p301 = scmp.eq.s32.totalorder %s52, 1
      %p302 = por %p300, %p301
      %p304 = scmp.ne.s32.totalorder %s289, %s303
      %p305 = scmp.eq.s32.totalorder %s52, 0
      %p306 = por %p304, %p305
      %s308 = sadd.s32 %s307, 1
      %p311 = scmp.eq.s32.totalorder %s46, 1
      %p312 = scmp.ne.s32.totalorder %s307, %s309
      %p313 = scmp.eq.s32.totalorder %s46, 0
      %p314 = por %p312, %p313
      %p315 = scmp.ne.s32.totalorder %s307, %s309
      %p316 = scmp.eq.s32.totalorder %s51, 1
      %p317 = por %p315, %p316
      %p318 = scmp.ne.s32.totalorder %s309, %s310
      %p319 = scmp.eq.s32.totalorder %s51, 0
      %p320 = por %p318, %p319
      %p321 = scmp.ne.s32.totalorder %s309, %s310
      %p322 = scmp.eq.s32.totalorder %s52, 1
      %p323 = por %p321, %p322
      %p325 = scmp.ne.s32.totalorder %s310, %s324
      %p326 = scmp.eq.s32.totalorder %s52, 0
      %p327 = por %p325, %p326
      %s329 = sadd.s32 %s328, 1
      %p332 = scmp.eq.s32.totalorder %s46, 1
      %p333 = scmp.ne.s32.totalorder %s328, %s330
      %p334 = scmp.eq.s32.totalorder %s46, 0
      %p335 = por %p333, %p334
      %p336 = scmp.ne.s32.totalorder %s328, %s330
      %p337 = scmp.eq.s32.totalorder %s51, 1
      %p338 = por %p336, %p337
      %p339 = scmp.ne.s32.totalorder %s330, %s331
      %p340 = scmp.eq.s32.totalorder %s51, 0
      %p341 = por %p339, %p340
      %p342 = scmp.ne.s32.totalorder %s330, %s331
      %p343 = scmp.eq.s32.totalorder %s52, 1
      %p344 = por %p342, %p343
      %p346 = scmp.ne.s32.totalorder %s331, %s345
      %p347 = scmp.eq.s32.totalorder %s52, 0
      %p348 = por %p346, %p347
      %s350 = sadd.s32 %s349, 1
      %p353 = scmp.eq.s32.totalorder %s46, 1
      %p354 = scmp.ne.s32.totalorder %s349, %s351
      %p355 = scmp.eq.s32.totalorder %s46, 0
      %p356 = por %p354, %p355
      %p357 = scmp.ne.s32.totalorder %s349, %s351
      %p358 = scmp.eq.s32.totalorder %s51, 1
      %p359 = por %p357, %p358
      %p360 = scmp.ne.s32.totalorder %s351, %s352
      %p361 = scmp.eq.s32.totalorder %s51, 0
      %p362 = por %p360, %p361
      %p363 = scmp.ne.s32.totalorder %s351, %s352
      %p364 = scmp.eq.s32.totalorder %s52, 1
      %p365 = por %p363, %p364
      %p367 = scmp.ne.s32.totalorder %s352, %s366
      %p368 = scmp.eq.s32.totalorder %s52, 0
      %p369 = por %p367, %p368
      %s371 = sadd.s32 %s370, 1
      %p374 = scmp.eq.s32.totalorder %s46, 1
      %p375 = scmp.ne.s32.totalorder %s370, %s372
      %p376 = scmp.eq.s32.totalorder %s46, 0
      %p377 = por %p375, %p376
      %p378 = scmp.ne.s32.totalorder %s370, %s372
      %p379 = scmp.eq.s32.totalorder %s51, 1
      %p380 = por %p378, %p379
      %p381 = scmp.ne.s32.totalorder %s372, %s373
      %p382 = scmp.eq.s32.totalorder %s51, 0
      %p383 = por %p381, %p382
      %p384 = scmp.ne.s32.totalorder %s372, %s373
      %p385 = scmp.eq.s32.totalorder %s52, 1
      %p386 = por %p384, %p385
      %p388 = scmp.ne.s32.totalorder %s373, %s387
      %p389 = scmp.eq.s32.totalorder %s52, 0
      %p390 = por %p388, %p389
      %s392 = sadd.s32 %s391, 1
      %p395 = scmp.eq.s32.totalorder %s46, 1
      %p396 = scmp.ne.s32.totalorder %s391, %s393
      %p397 = scmp.eq.s32.totalorder %s46, 0
      %p398 = por %p396, %p397
      %p399 = scmp.ne.s32.totalorder %s391, %s393
      %p400 = scmp.eq.s32.totalorder %s51, 1
      %p401 = por %p399, %p400
      %p402 = scmp.ne.s32.totalorder %s393, %s394
      %p403 = scmp.eq.s32.totalorder %s51, 0
      %p404 = por %p402, %p403
      %p405 = scmp.ne.s32.totalorder %s393, %s394
      %p406 = scmp.eq.s32.totalorder %s52, 1
      %p407 = por %p405, %p406
      %p409 = scmp.ne.s32.totalorder %s394, %s408
      %p410 = scmp.eq.s32.totalorder %s52, 0
      %p411 = por %p409, %p410
      %s413 = sadd.s32 %s412, 1
      %p416 = scmp.eq.s32.totalorder %s46, 1
      %p417 = scmp.ne.s32.totalorder %s412, %s414
      %p418 = scmp.eq.s32.totalorder %s46, 0
      %p419 = por %p417, %p418
      %p420 = scmp.ne.s32.totalorder %s412, %s414
      %p421 = scmp.eq.s32.totalorder %s51, 1
      %p422 = por %p420, %p421
      %p423 = scmp.ne.s32.totalorder %s414, %s415
      %p424 = scmp.eq.s32.totalorder %s51, 0
      %p425 = por %p423, %p424
      %p426 = scmp.ne.s32.totalorder %s414, %s415
      %p427 = scmp.eq.s32.totalorder %s52, 1
      %p428 = por %p426, %p427
      %p430 = scmp.ne.s32.totalorder %s415, %s429
      %p431 = scmp.eq.s32.totalorder %s52, 0
      %p432 = por %p430, %p431
      %s434 = sadd.s32 %s433, 1
      %p437 = scmp.eq.s32.totalorder %s46, 1
      %p438 = scmp.ne.s32.totalorder %s433, %s435
      %p439 = scmp.eq.s32.totalorder %s46, 0
      %p440 = por %p438, %p439
      %p441 = scmp.ne.s32.totalorder %s433, %s435
      %p442 = scmp.eq.s32.totalorder %s51, 1
      %p443 = por %p441, %p442
      %p444 = scmp.ne.s32.totalorder %s435, %s436
      %p445 = scmp.eq.s32.totalorder %s51, 0
      %p446 = por %p444, %p445
      %p447 = scmp.ne.s32.totalorder %s435, %s436
      %p448 = scmp.eq.s32.totalorder %s52, 1
      %p449 = por %p447, %p448
      %p451 = scmp.ne.s32.totalorder %s436, %s450
      %p452 = scmp.eq.s32.totalorder %s52, 0
      %p453 = por %p451, %p452
      %s455 = sadd.s32 %s454, 1
      %p458 = scmp.eq.s32.totalorder %s46, 1
      %p459 = scmp.ne.s32.totalorder %s454, %s456
      %p460 = scmp.eq.s32.totalorder %s46, 0
      %p461 = por %p459, %p460
      %p462 = scmp.ne.s32.totalorder %s454, %s456
      %p463 = scmp.eq.s32.totalorder %s51, 1
      %p464 = por %p462, %p463
      %p465 = scmp.ne.s32.totalorder %s456, %s457
      %p466 = scmp.eq.s32.totalorder %s51, 0
      %p467 = por %p465, %p466
      %p468 = scmp.ne.s32.totalorder %s456, %s457
      %p469 = scmp.eq.s32.totalorder %s52, 1
      %p470 = por %p468, %p469
      %p472 = scmp.ne.s32.totalorder %s457, %s471
      %p473 = scmp.eq.s32.totalorder %s52, 0
      %p474 = por %p472, %p473
      %s476 = sadd.s32 %s475, 1
      %p479 = scmp.eq.s32.totalorder %s46, 1
      %p480 = scmp.ne.s32.totalorder %s475, %s477
      %p481 = scmp.eq.s32.totalorder %s46, 0
      %p482 = por %p480, %p481
      %p483 = scmp.ne.s32.totalorder %s475, %s477
      %p484 = scmp.eq.s32.totalorder %s51, 1
      %p485 = por %p483, %p484
      %p486 = scmp.ne.s32.totalorder %s477, %s478
      %p487 = scmp.eq.s32.totalorder %s51, 0
      %p488 = por %p486, %p487
      %p489 = scmp.ne.s32.totalorder %s477, %s478
      %p490 = scmp.eq.s32.totalorder %s52, 1
      %p491 = por %p489, %p490
      %p493 = scmp.ne.s32.totalorder %s478, %s492
      %p494 = scmp.eq.s32.totalorder %s52, 0
      %p495 = por %p493, %p494
      %s497 = sadd.s32 %s496, 1
      %p500 = scmp.eq.s32.totalorder %s46, 1
      %p501 = scmp.ne.s32.totalorder %s496, %s498
      %p502 = scmp.eq.s32.totalorder %s46, 0
      %p503 = por %p501, %p502
      %p504 = scmp.ne.s32.totalorder %s496, %s498
      %p505 = scmp.eq.s32.totalorder %s51, 1
      %p506 = por %p504, %p505
      %p507 = scmp.ne.s32.totalorder %s498, %s499
      %p508 = scmp.eq.s32.totalorder %s51, 0
      %p509 = por %p507, %p508
      %p510 = scmp.ne.s32.totalorder %s498, %s499
      %p511 = scmp.eq.s32.totalorder %s52, 1
      %p512 = por %p510, %p511
      %p514 = scmp.ne.s32.totalorder %s499, %s513
      %p515 = scmp.eq.s32.totalorder %s52, 0
      %p516 = por %p514, %p515
      %s518 = sadd.s32 %s517, 1
      %p521 = scmp.eq.s32.totalorder %s46, 1
      %p522 = scmp.ne.s32.totalorder %s517, %s519
      %p523 = scmp.eq.s32.totalorder %s46, 0
      %p524 = por %p522, %p523
      %p525 = scmp.ne.s32.totalorder %s517, %s519
      %p526 = scmp.eq.s32.totalorder %s51, 1
      %p527 = por %p525, %p526
      %p528 = scmp.ne.s32.totalorder %s519, %s520
      %p529 = scmp.eq.s32.totalorder %s51, 0
      %p530 = por %p528, %p529
      %p531 = scmp.ne.s32.totalorder %s519, %s520
      %p532 = scmp.eq.s32.totalorder %s52, 1
      %p533 = por %p531, %p532
      %p535 = scmp.ne.s32.totalorder %s520, %s534
      %p536 = scmp.eq.s32.totalorder %s52, 0
      %p537 = por %p535, %p536
      %s538 = ssub.s32 %s53, %s65
      %s539 = ssub.s32 %s54, %s61
      %s540 = sor.u32 %s538, %s539
      %p541 = scmp.eq.s32.totalorder %s540, 0
      %s543 = sadd.s32 %s542, 1
      %s544 = scalar_select %p541, %s542, %s543
      %p547 = pneg %p541
      %p548 = scmp.eq.s32.totalorder %s46, 1
      %p549 = por %p547, %p548
      %p550 = scmp.ne.s32.totalorder %s542, %s545
      %p551 = scmp.eq.s32.totalorder %s46, 0
      %p552 = por %p550, %p551
      %p553 = scmp.ne.s32.totalorder %s542, %s545
      %p554 = scmp.eq.s32.totalorder %s51, 1
      %p555 = por %p553, %p554
      %p556 = scmp.ne.s32.totalorder %s545, %s546
      %p557 = scmp.eq.s32.totalorder %s51, 0
      %p558 = por %p556, %p557
      %p559 = scmp.ne.s32.totalorder %s545, %s546
      %p560 = scmp.eq.s32.totalorder %s52, 1
      %p561 = por %p559, %p560
      %p563 = scmp.ne.s32.totalorder %s546, %s562
      %p564 = scmp.eq.s32.totalorder %s52, 0
      %p565 = por %p563, %p564
      %s566 = ssub.s32 %s53, %s65
      %s567 = ssub.s32 %s54, %s61
      %s568 = sor.u32 %s566, %s567
      %p569 = scmp.eq.s32.totalorder %s568, 0
      %s571 = sadd.s32 %s570, 1
      %s572 = scalar_select %p569, %s570, %s571
      %p575 = pneg %p569
      %p576 = scmp.eq.s32.totalorder %s46, 1
      %p577 = por %p575, %p576
      %p578 = scmp.ne.s32.totalorder %s570, %s573
      %p579 = scmp.eq.s32.totalorder %s46, 0
      %p580 = por %p578, %p579
      %p581 = scmp.ne.s32.totalorder %s570, %s573
      %p582 = scmp.eq.s32.totalorder %s51, 1
      %p583 = por %p581, %p582
      %p584 = scmp.ne.s32.totalorder %s573, %s574
      %p585 = scmp.eq.s32.totalorder %s51, 0
      %p586 = por %p584, %p585
      %p587 = scmp.ne.s32.totalorder %s573, %s574
      %p588 = scmp.eq.s32.totalorder %s52, 1
      %p589 = por %p587, %p588
      %p591 = scmp.ne.s32.totalorder %s574, %s590
      %p592 = scmp.eq.s32.totalorder %s52, 0
      %p593 = por %p591, %p592
      %s594 = ssub.s32 %s53, %s65
      %s595 = ssub.s32 %s54, %s61
      %s596 = sor.u32 %s594, %s595
      %p597 = scmp.eq.s32.totalorder %s596, 0
      %s599 = sadd.s32 %s598, 1
      %s600 = scalar_select %p597, %s598, %s599
      %p603 = pneg %p597
      %p604 = scmp.eq.s32.totalorder %s46, 1
      %p605 = por %p603, %p604
      %p606 = scmp.ne.s32.totalorder %s598, %s601
      %p607 = scmp.eq.s32.totalorder %s46, 0
      %p608 = por %p606, %p607
      %p609 = scmp.ne.s32.totalorder %s598, %s601
      %p610 = scmp.eq.s32.totalorder %s51, 1
      %p611 = por %p609, %p610
      %p612 = scmp.ne.s32.totalorder %s601, %s602
      %p613 = scmp.eq.s32.totalorder %s51, 0
      %p614 = por %p612, %p613
      %p615 = scmp.ne.s32.totalorder %s601, %s602
      %p616 = scmp.eq.s32.totalorder %s52, 1
      %p617 = por %p615, %p616
      %p619 = scmp.ne.s32.totalorder %s602, %s618
      %p620 = scmp.eq.s32.totalorder %s52, 0
      %p621 = por %p619, %p620
      %p622 = scmp.le.s32.totalorder 1, %s46
      %p623 = scmp.lt.s32.totalorder %s46, 3
      %p624 = pnand %p622, %p623
      %p625 = pneg %p624
      // Predicated region
      $region9: #{tpu_custom_call.1} parent=5 // pred_check
        _
      $region10: #{tpu_custom_call.1} parent=5 // pred_check_branch
        %627 = sbr.rel (%p624) target = $region12
      $region11: #{tpu_custom_call.1} parent=5 // pred_region
        %s628 = ssub.s32 %s46, 1
        // Predicated region
        $region13: #{tpu_custom_call.1} parent=11 // pred_check
          %p629 = pneg %p131
        $region14: #{tpu_custom_call.1} parent=11 // pred_check_branch
          %631 = sbr.rel (%p629) target = $region16
        $region15: #{tpu_custom_call.1} parent=11 // pred_region
          %s633 = ssub.s32 3072, 3072
          %634 = vsyncadd [#allocation6], %s633
          %s635 = sshll.u32 [#allocation7], 4
          %s636 = int_to_ptr.vmem [resolvable:$true] %s635
          %641 = dma.hbm_to_vmem [thread:$0]  %s2, 3072, %s636, [#allocation6], 192, 192, 12
        $region16: #{tpu_custom_call.1} parent=11 // pred_fallthru
          _
        // Predicated region
        $region17: #{tpu_custom_call.1} parent=11 // pred_check
          %p642 = pneg %p152
        $region18: #{tpu_custom_call.1} parent=11 // pred_check_branch
          %644 = sbr.rel (%p642) target = $region20
        $region19: #{tpu_custom_call.1} parent=11 // pred_region
          _
        $region20: #{tpu_custom_call.1} parent=11 // pred_fallthru
          _
        // Predicated region
        $region21: #{tpu_custom_call.1} parent=11 // pred_check
          %p645 = pneg %p173
        $region22: #{tpu_custom_call.1} parent=11 // pred_check_branch
          %647 = sbr.rel (%p645) target = $region24
        $region23: #{tpu_custom_call.1} parent=11 // pred_region
          %s649 = ssub.s32 1024, 1024
          %650 = vsyncadd [#allocation9], %s649
          %s651 = sshll.u32 [#allocation8], 4
          %s652 = int_to_ptr.vmem [resolvable:$true] %s651
          %657 = dma.hbm_to_vmem [thread:$0]  %s4, 1024, %s652, [#allocation9], 64, 64, 4
        $region24: #{tpu_custom_call.1} parent=11 // pred_fallthru
          _
        // Predicated region
        $region25: #{tpu_custom_call.1} parent=11 // pred_check
          %p658 = pneg %p194
        $region26: #{tpu_custom_call.1} parent=11 // pred_check_branch
          %660 = sbr.rel (%p658) target = $region28
        $region27: #{tpu_custom_call.1} parent=11 // pred_region
          _
        $region28: #{tpu_custom_call.1} parent=11 // pred_fallthru
          _
        // Predicated region
        $region29: #{tpu_custom_call.1} parent=11 // pred_check
          %p661 = pneg %p215
        $region30: #{tpu_custom_call.1} parent=11 // pred_check_branch
          %663 = sbr.rel (%p661) target = $region32
        $region31: #{tpu_custom_call.1} parent=11 // pred_region
          _
        $region32: #{tpu_custom_call.1} parent=11 // pred_fallthru
          _
        // Predicated region
        $region33: #{tpu_custom_call.1} parent=11 // pred_check
          %p664 = pneg %p236
        $region34: #{tpu_custom_call.1} parent=11 // pred_check_branch
          %666 = sbr.rel (%p664) target = $region36
        $region35: #{tpu_custom_call.1} parent=11 // pred_region
          _
        $region36: #{tpu_custom_call.1} parent=11 // pred_fallthru
          _
        // Predicated region
        $region37: #{tpu_custom_call.1} parent=11 // pred_check
          %p667 = pneg %p257
        $region38: #{tpu_custom_call.1} parent=11 // pred_check_branch
          %669 = sbr.rel (%p667) target = $region40
        $region39: #{tpu_custom_call.1} parent=11 // pred_region
          %s671 = ssub.s32 1024, 1024
          %672 = vsyncadd [#allocation9], %s671
          %s673 = sshll.u32 [#allocation10], 4
          %s674 = int_to_ptr.vmem [resolvable:$true] %s673
          %679 = dma.hbm_to_vmem [thread:$0]  %s8, 1024, %s674, [#allocation9], 64, 64, 4
        $region40: #{tpu_custom_call.1} parent=11 // pred_fallthru
          _
        // Predicated region
        $region41: #{tpu_custom_call.1} parent=11 // pred_check
          %p680 = pneg %p278
        $region42: #{tpu_custom_call.1} parent=11 // pred_check_branch
          %682 = sbr.rel (%p680) target = $region44
        $region43: #{tpu_custom_call.1} parent=11 // pred_region
          _
        $region44: #{tpu_custom_call.1} parent=11 // pred_fallthru
          _
        // Predicated region
        $region45: #{tpu_custom_call.1} parent=11 // pred_check
          %p683 = pneg %p299
        $region46: #{tpu_custom_call.1} parent=11 // pred_check_branch
          %685 = sbr.rel (%p683) target = $region48
        $region47: #{tpu_custom_call.1} parent=11 // pred_region
          %s687 = ssub.s32 2048, 2048
          %688 = vsyncadd [#allocation12], %s687
          %s689 = sshll.u32 [#allocation11], 4
          %s690 = int_to_ptr.vmem [resolvable:$true] %s689
          %695 = dma.hbm_to_vmem [thread:$0]  %s10, 2048, %s690, [#allocation12], 128, 128, 8
        $region48: #{tpu_custom_call.1} parent=11 // pred_fallthru
          _
        // Predicated region
        $region49: #{tpu_custom_call.1} parent=11 // pred_check
          %p696 = pneg %p320
        $region50: #{tpu_custom_call.1} parent=11 // pred_check_branch
          %698 = sbr.rel (%p696) target = $region52
        $region51: #{tpu_custom_call.1} parent=11 // pred_region
          _
        $region52: #{tpu_custom_call.1} parent=11 // pred_fallthru
          _
        // Predicated region
        $region53: #{tpu_custom_call.1} parent=11 // pred_check
          %p699 = pneg %p341
        $region54: #{tpu_custom_call.1} parent=11 // pred_check_branch
          %701 = sbr.rel (%p699) target = $region56
        $region55: #{tpu_custom_call.1} parent=11 // pred_region
          %s703 = ssub.s32 1024, 1024
          %704 = vsyncadd [#allocation12], %s703
          %s705 = sshll.u32 [#allocation13], 4
          %s706 = int_to_ptr.vmem [resolvable:$true] %s705
          %711 = dma.hbm_to_vmem [thread:$0]  %s12, 1024, %s706, [#allocation12], 64, 64, 4
        $region56: #{tpu_custom_call.1} parent=11 // pred_fallthru
          _
        // Predicated region
        $region57: #{tpu_custom_call.1} parent=11 // pred_check
          %p712 = pneg %p362
        $region58: #{tpu_custom_call.1} parent=11 // pred_check_branch
          %714 = sbr.rel (%p712) target = $region60
        $region59: #{tpu_custom_call.1} parent=11 // pred_region
          _
        $region60: #{tpu_custom_call.1} parent=11 // pred_fallthru
          _
        // Predicated region
        $region61: #{tpu_custom_call.1} parent=11 // pred_check
          %p715 = pneg %p383
        $region62: #{tpu_custom_call.1} parent=11 // pred_check_branch
          %717 = sbr.rel (%p715) target = $region64
        $region63: #{tpu_custom_call.1} parent=11 // pred_region
          _
        $region64: #{tpu_custom_call.1} parent=11 // pred_fallthru
          _
        // Predicated region
        $region65: #{tpu_custom_call.1} parent=11 // pred_check
          %p718 = pneg %p404
        $region66: #{tpu_custom_call.1} parent=11 // pred_check_branch
          %720 = sbr.rel (%p718) target = $region68
        $region67: #{tpu_custom_call.1} parent=11 // pred_region
          _
        $region68: #{tpu_custom_call.1} parent=11 // pred_fallthru
          _
        // Predicated region
        $region69: #{tpu_custom_call.1} parent=11 // pred_check
          %p721 = pneg %p425
        $region70: #{tpu_custom_call.1} parent=11 // pred_check_branch
          %723 = sbr.rel (%p721) target = $region72
        $region71: #{tpu_custom_call.1} parent=11 // pred_region
          %s725 = ssub.s32 2048, 2048
          %726 = vsyncadd [#allocation15], %s725
          %s727 = sshll.u32 [#allocation14], 4
          %s728 = int_to_ptr.vmem [resolvable:$true] %s727
          %733 = dma.hbm_to_vmem [thread:$0]  %s16, 2048, %s728, [#allocation15], 128, 128, 8
        $region72: #{tpu_custom_call.1} parent=11 // pred_fallthru
          _
        // Predicated region
        $region73: #{tpu_custom_call.1} parent=11 // pred_check
          %p734 = pneg %p446
        $region74: #{tpu_custom_call.1} parent=11 // pred_check_branch
          %736 = sbr.rel (%p734) target = $region76
        $region75: #{tpu_custom_call.1} parent=11 // pred_region
          _
        $region76: #{tpu_custom_call.1} parent=11 // pred_fallthru
          _
        // Predicated region
        $region77: #{tpu_custom_call.1} parent=11 // pred_check
          %p737 = pneg %p467
        $region78: #{tpu_custom_call.1} parent=11 // pred_check_branch
          %739 = sbr.rel (%p737) target = $region80
        $region79: #{tpu_custom_call.1} parent=11 // pred_region
          %s741 = ssub.s32 2048, 2048
          %742 = vsyncadd [#allocation15], %s741
          %s743 = sshll.u32 [#allocation16], 4
          %s744 = int_to_ptr.vmem [resolvable:$true] %s743
          %749 = dma.hbm_to_vmem [thread:$0]  %s18, 2048, %s744, [#allocation15], 64, 64, 4
        $region80: #{tpu_custom_call.1} parent=11 // pred_fallthru
          _
        // Predicated region
        $region81: #{tpu_custom_call.1} parent=11 // pred_check
          %p750 = pneg %p488
        $region82: #{tpu_custom_call.1} parent=11 // pred_check_branch
          %752 = sbr.rel (%p750) target = $region84
        $region83: #{tpu_custom_call.1} parent=11 // pred_region
          _
        $region84: #{tpu_custom_call.1} parent=11 // pred_fallthru
          _
        // Predicated region
        $region85: #{tpu_custom_call.1} parent=11 // pred_check
          %p753 = pneg %p509
        $region86: #{tpu_custom_call.1} parent=11 // pred_check_branch
          %755 = sbr.rel (%p753) target = $region88
        $region87: #{tpu_custom_call.1} parent=11 // pred_region
          _
        $region88: #{tpu_custom_call.1} parent=11 // pred_fallthru
          _
        // Predicated region
        $region89: #{tpu_custom_call.1} parent=11 // pred_check
          %p756 = pneg %p530
        $region90: #{tpu_custom_call.1} parent=11 // pred_check_branch
          %758 = sbr.rel (%p756) target = $region92
        $region91: #{tpu_custom_call.1} parent=11 // pred_region
          _
        $region92: #{tpu_custom_call.1} parent=11 // pred_fallthru
          _
      $region12: #{tpu_custom_call.1} parent=5 // pred_fallthru
        _
      %p759 = scmp.lt.s32.totalorder %s46, 2
      // Predicated region
      $region93: #{tpu_custom_call.1} parent=5 // pred_check
        %p760 = pneg %p759
      $region94: #{tpu_custom_call.1} parent=5 // pred_check_branch
        %762 = sbr.rel (%p760) target = $region96
      $region95: #{tpu_custom_call.1} parent=5 // pred_region
        // Predicated region
        $region97: #{tpu_custom_call.1} parent=95 // pred_check
          %p763 = pneg %p78
        $region98: #{tpu_custom_call.1} parent=95 // pred_check_branch
          %765 = sbr.rel (%p763) target = $region100
        $region99: #{tpu_custom_call.1} parent=95 // pred_region
          %s766 = sand.u32 %s68, 1
          %s767 = scalar_lea.sflag [#allocation3], %s766
          %s768 = sand.u32 %s68, 1
          %s769 = smul.addr %s768, 8
          %s770 = scalar_lea.vmem [#allocation2], %s769
          %s772 = ssub.s32 128, 128
          %773 = vsyncadd %s767, %s772
          %s774 = smul.addr %s53, 2
          %s775 = smul.addr %s774, 64
          %s776 = scalar_lea.hbm %s0, %s775
          %s777 = sshll.u32 %s770, 4
          %s778 = int_to_ptr.vmem [resolvable:$true] %s777
          %783 = dma.hbm_to_vmem [thread:$0]  %s776, 128, %s778, %s767, 64, 64, 4
        $region100: #{tpu_custom_call.1} parent=95 // pred_fallthru
          _
        // Predicated region
        $region101: #{tpu_custom_call.1} parent=95 // pred_check
          %p784 = pneg %p104
        $region102: #{tpu_custom_call.1} parent=95 // pred_check_branch
          %786 = sbr.rel (%p784) target = $region104
        $region103: #{tpu_custom_call.1} parent=95 // pred_region
          %s787 = sand.u32 %s46, 1
          %s788 = scalar_lea.sflag [#allocation6], %s787
          %s789 = sand.u32 %s94, 1
          %s790 = smul.addr %s789, 4
          %s791 = scalar_lea.vmem [#allocation5], %s790
          %s793 = ssub.s32 64, 64
          %794 = vsyncadd %s788, %s793
          %s795 = smul.addr %s53, 64
          %s796 = scalar_lea.hbm %s1, %s795
          %s798 = sshll.u32 %s791, 4
          %s799 = int_to_ptr.vmem [resolvable:$true] %s798
          %801 = dma.hbm_to_vmem [thread:$0]  %s796, 64, %s799, %s788
        $region104: #{tpu_custom_call.1} parent=95 // pred_fallthru
          _
      $region96: #{tpu_custom_call.1} parent=5 // pred_fallthru
        _
      %p802 = scmp.le.s32.totalorder 1, %s46
      %p803 = scmp.lt.s32.totalorder %s46, 3
      %p804 = pnand %p802, %p803
      %p805 = pneg %p804
      // Predicated region
      $region105: #{tpu_custom_call.1} parent=5 // pred_check
        _
      $region106: #{tpu_custom_call.1} parent=5 // pred_check_branch
        %807 = sbr.rel (%p804) target = $region108
      $region107: #{tpu_custom_call.1} parent=5 // pred_region
        %s808 = ssub.s32 %s46, 1
        %s809 = sand.u32 %s71, 1
        %s810 = scalar_lea.sflag [#allocation3], %s809
        %s811 = sand.u32 %s71, 1
        %s812 = smul.addr %s811, 8
        %s813 = scalar_lea.vmem [#allocation2], %s812
        // Predicated region
        $region109: #{tpu_custom_call.1} parent=107 // pred_check
          %p814 = pneg %p84
        $region110: #{tpu_custom_call.1} parent=107 // pred_check_branch
          %816 = sbr.rel (%p814) target = $region112
        $region111: #{tpu_custom_call.1} parent=107 // pred_region
          %817 = dma.done %s810, 128
        $region112: #{tpu_custom_call.1} parent=107 // pred_fallthru
          _
        %s818 = sand.u32 %s51, 1
        %s819 = scalar_lea.sflag [#allocation6], %s818
        %s820 = sand.u32 %s97, 1
        %s821 = smul.addr %s820, 4
        %s822 = scalar_lea.vmem [#allocation5], %s821
        // Predicated region
        $region113: #{tpu_custom_call.1} parent=107 // pred_check
          %p823 = pneg %p110
        $region114: #{tpu_custom_call.1} parent=107 // pred_check_branch
          %825 = sbr.rel (%p823) target = $region116
        $region115: #{tpu_custom_call.1} parent=107 // pred_region
          %826 = dma.done %s819, 64
        $region116: #{tpu_custom_call.1} parent=107 // pred_fallthru
          _
        // Predicated region
        $region117: #{tpu_custom_call.1} parent=107 // pred_check
          %p827 = pneg %p131
        $region118: #{tpu_custom_call.1} parent=107 // pred_check_branch
          %829 = sbr.rel (%p827) target = $region120
        $region119: #{tpu_custom_call.1} parent=107 // pred_region
          %830 = dma.done [#allocation6], 3072
        $region120: #{tpu_custom_call.1} parent=107 // pred_fallthru
          _
        // Predicated region
        $region121: #{tpu_custom_call.1} parent=107 // pred_check
          %p831 = pneg %p173
        $region122: #{tpu_custom_call.1} parent=107 // pred_check_branch
          %833 = sbr.rel (%p831) target = $region124
        $region123: #{tpu_custom_call.1} parent=107 // pred_region
          %834 = dma.done [#allocation9], 1024
        $region124: #{tpu_custom_call.1} parent=107 // pred_fallthru
          _
        // Predicated region
        $region125: #{tpu_custom_call.1} parent=107 // pred_check
          %p835 = pneg %p257
        $region126: #{tpu_custom_call.1} parent=107 // pred_check_branch
          %837 = sbr.rel (%p835) target = $region128
        $region127: #{tpu_custom_call.1} parent=107 // pred_region
          %838 = dma.done [#allocation9], 1024
        $region128: #{tpu_custom_call.1} parent=107 // pred_fallthru
          _
        // Predicated region
        $region129: #{tpu_custom_call.1} parent=107 // pred_check
          %p839 = pneg %p299
        $region130: #{tpu_custom_call.1} parent=107 // pred_check_branch
          %841 = sbr.rel (%p839) target = $region132
        $region131: #{tpu_custom_call.1} parent=107 // pred_region
          %842 = dma.done [#allocation12], 2048
        $region132: #{tpu_custom_call.1} parent=107 // pred_fallthru
          _
        // Predicated region
        $region133: #{tpu_custom_call.1} parent=107 // pred_check
          %p843 = pneg %p341
        $region134: #{tpu_custom_call.1} parent=107 // pred_check_branch
          %845 = sbr.rel (%p843) target = $region136
        $region135: #{tpu_custom_call.1} parent=107 // pred_region
          %846 = dma.done [#allocation12], 1024
        $region136: #{tpu_custom_call.1} parent=107 // pred_fallthru
          _
        // Predicated region
        $region137: #{tpu_custom_call.1} parent=107 // pred_check
          %p847 = pneg %p425
        $region138: #{tpu_custom_call.1} parent=107 // pred_check_branch
          %849 = sbr.rel (%p847) target = $region140
        $region139: #{tpu_custom_call.1} parent=107 // pred_region
          %850 = dma.done [#allocation15], 2048
        $region140: #{tpu_custom_call.1} parent=107 // pred_fallthru
          _
        // Predicated region
        $region141: #{tpu_custom_call.1} parent=107 // pred_check
          %p851 = pneg %p467
        $region142: #{tpu_custom_call.1} parent=107 // pred_check_branch
          %853 = sbr.rel (%p851) target = $region144
        $region143: #{tpu_custom_call.1} parent=107 // pred_region
          %854 = dma.done [#allocation15], 2048
        $region144: #{tpu_custom_call.1} parent=107 // pred_fallthru
          _
        %s855 = sand.u32 %s71, 1
        %s856 = scalar_lea.sflag [#allocation3], %s855
        %s857 = sand.u32 %s71, 1
        %s858 = smul.addr %s857, 8
        %s859 = scalar_lea.vmem [#allocation2], %s858
        %p860 = pneg %p84
        %p861 = pneg %p81
        %s862 = sand.u32 %s51, 1
        %s863 = scalar_lea.sflag [#allocation6], %s862
        %s864 = sand.u32 %s97, 1
        %s865 = smul.addr %s864, 4
        %s866 = scalar_lea.vmem [#allocation5], %s865
        %p867 = pneg %p110
        %p868 = pneg %p107
        %p869 = pneg %p131
        %p870 = pneg %p128
        %p871 = pneg %p152
        %p872 = pneg %p149
        %p873 = pneg %p173
        %p874 = pneg %p170
        %p875 = pneg %p194
        %p876 = pneg %p191
        %p877 = pneg %p215
        %p878 = pneg %p212
        %p879 = pneg %p236
        %p880 = pneg %p233
        %p881 = pneg %p257
        %p882 = pneg %p254
        %p883 = pneg %p278
        %p884 = pneg %p275
        %p885 = pneg %p299
        %p886 = pneg %p296
        %p887 = pneg %p320
        %p888 = pneg %p317
        %p889 = pneg %p341
        %p890 = pneg %p338
        %p891 = pneg %p362
        %p892 = pneg %p359
        %p893 = pneg %p383
        %p894 = pneg %p380
        %p895 = pneg %p404
        %p896 = pneg %p401
        %p897 = pneg %p425
        %p898 = pneg %p422
        %p899 = pneg %p446
        %p900 = pneg %p443
        %p901 = pneg %p467
        %p902 = pneg %p464
        %p903 = pneg %p488
        %p904 = pneg %p485
        %p905 = pneg %p509
        %p906 = pneg %p506
        %p907 = pneg %p530
        %p908 = pneg %p527
        %p909 = pneg %p558
        %p910 = pneg %p555
        %s911 = sand.u32 %s545, 1
        %s912 = scalar_lea.sflag [#allocation4], %s911
        %s913 = sand.u32 %s545, 1
        %s914 = smul.addr %s913, 16
        %s915 = scalar_lea.vmem [#allocation17], %s914
        %p916 = pneg %p586
        %p917 = pneg %p583
        %s918 = sand.u32 %s573, 1
        %s919 = scalar_lea.sflag [#allocation19], %s918
        %s920 = sand.u32 %s573, 1
        %s921 = smul.addr %s920, 32
        %s922 = scalar_lea.vmem [#allocation18], %s921
        %p923 = pneg %p614
        %p924 = pneg %p611
        %s925 = smul.u32 2, %s56
        %p926 = scmp.lt.s32.totalorder %s55, 1
        %s927 = scalar_select %p926, %s55, 1
        %p928 = scmp.lt.s32.totalorder %s925, 1
        %s929 = scalar_select %p928, %s925, 1
        %s930 = smul.addr %s927, 8
        %s931 = sadd.s32 %s929, %s930
        %s932 = smul.addr %s931, 4
        %s933 = scalar_lea.vmem %s24, %s932
        %s934 = smul.u32 2, %s56
        %s935 = smul.u32 2, %s56
        %s936 = smul.u32 2, %s56
        %p937 = scmp.lt.s32.totalorder %s55, 1
        %s938 = scalar_select %p937, %s55, 1
        %p939 = scmp.lt.s32.totalorder %s936, 1
        %s940 = scalar_select %p939, %s936, 1
        %s941 = smul.addr %s938, 8
        %s942 = sadd.s32 %s940, %s941
        %s943 = smul.addr %s942, 4
        %s944 = scalar_lea.vmem %s24, %s943
        %s945 = smul.u32 2, %s56
        %v947 = vld [vmem:[%s813] sm:$0xf]
        %v948 = vld [vmem:[%s813 + $0x4] sm:$0xf]
        %v949 = vld [vmem:[#allocation7] sm:$0xff]
        %v950 = vld [vmem:[#allocation7 + $0x8] sm:$0xf]
        %v951 = vld [vmem:[#allocation7 + $0xc] sm:$0xff]
        %v952 = vld [vmem:[#allocation7 + $0x14] sm:$0xf]
        %v953 = vld [vmem:[#allocation7 + $0x18] sm:$0xff]
        %v954 = vld [vmem:[#allocation7 + $0x20] sm:$0xf]
        %v955 = vld [vmem:[#allocation7 + $0x24] sm:$0xff]
        %v956 = vld [vmem:[#allocation7 + $0x2c] sm:$0xf]
        %v957 = vld [vmem:[#allocation7 + $0x30] sm:$0xff]
        %v958 = vld [vmem:[#allocation7 + $0x38] sm:$0xf]
        %v959 = vld [vmem:[#allocation7 + $0x3c] sm:$0xff]
        %v960 = vld [vmem:[#allocation7 + $0x44] sm:$0xf]
        %v961 = vld [vmem:[#allocation7 + $0x48] sm:$0xff]
        %v962 = vld [vmem:[#allocation7 + $0x50] sm:$0xf]
        %v963 = vld [vmem:[#allocation7 + $0x54] sm:$0xff]
        %v964 = vld [vmem:[#allocation7 + $0x5c] sm:$0xf]
        %v965 = vld [vmem:[#allocation7 + $0x60] sm:$0xff]
        %v966 = vld [vmem:[#allocation7 + $0x68] sm:$0xf]
        %v967 = vld [vmem:[#allocation7 + $0x6c] sm:$0xff]
        %v968 = vld [vmem:[#allocation7 + $0x74] sm:$0xf]
        %v969 = vld [vmem:[#allocation7 + $0x78] sm:$0xff]
        %v970 = vld [vmem:[#allocation7 + $0x80] sm:$0xf]
        %v971 = vld [vmem:[#allocation7 + $0x84] sm:$0xff]
        %v972 = vld [vmem:[#allocation7 + $0x8c] sm:$0xf]
        %v973 = vld [vmem:[#allocation7 + $0x90] sm:$0xff]
        %v974 = vld [vmem:[#allocation7 + $0x98] sm:$0xf]
        %v975 = vld [vmem:[#allocation7 + $0x9c] sm:$0xff]
        %v976 = vld [vmem:[#allocation7 + $0xa4] sm:$0xf]
        %v977 = vld [vmem:[#allocation7 + $0xa8] sm:$0xff]
        %v978 = vld [vmem:[#allocation7 + $0xb0] sm:$0xf]
        %v979 = vld [vmem:[#allocation7 + $0xb4] sm:$0xff]
        %v980 = vld [vmem:[#allocation7 + $0xbc] sm:$0xf]
        %v981 = vld [vmem:[%s3] sm:$0x7]
        %v983 = vlaneseq
        %v984 = vshrl.u32 %v983, 7
        %v985 = vsub.s32 0, %v984
        %v986 = vrot.slane %v981, %v985
        %v987 = vlaneseq
        %v988 = vshrl.u32 %v987, 7
        %v989 = vsub.s32 1, %v988
        %v990 = vrot.slane %v981, %v989
        %v991 = vlaneseq
        %v992 = vshrl.u32 %v991, 7
        %v993 = vsub.s32 2, %v992
        %v994 = vrot.slane %v981, %v993
        %v1000 = vunpack.c.l.b16 %v947
        %v1001 = vunpack.c.l.b16 %v948
        %v1002 = vpack.c.b16 %v1001, %v1000
        %v1036 = vunpack.c.l.b16 %v949
        %v1037 = vunpack.c.h.b16 %v949
        %v1038 = vunpack.c.l.b16 %v950
        %v1039 = vunpack.c.l.b16 %v951
        %v1040 = vunpack.c.h.b16 %v951
        %v1041 = vunpack.c.l.b16 %v952
        %v1042 = vunpack.c.l.b16 %v953
        %v1043 = vunpack.c.h.b16 %v953
        %v1044 = vunpack.c.l.b16 %v954
        %v1045 = vunpack.c.l.b16 %v955
        %v1046 = vunpack.c.h.b16 %v955
        %v1047 = vunpack.c.l.b16 %v956
        %v1048 = vunpack.c.l.b16 %v957
        %v1049 = vunpack.c.h.b16 %v957
        %v1050 = vunpack.c.l.b16 %v958
        %v1051 = vunpack.c.l.b16 %v959
        %v1052 = vunpack.c.h.b16 %v959
        %v1053 = vunpack.c.l.b16 %v960
        %v1054 = vunpack.c.l.b16 %v961
        %v1055 = vunpack.c.h.b16 %v961
        %v1056 = vunpack.c.l.b16 %v962
        %v1057 = vunpack.c.l.b16 %v963
        %v1058 = vunpack.c.h.b16 %v963
        %v1059 = vunpack.c.l.b16 %v964
        %v1060 = vunpack.c.l.b16 %v965
        %v1061 = vunpack.c.h.b16 %v965
        %v1062 = vunpack.c.l.b16 %v966
        %v1063 = vunpack.c.l.b16 %v967
        %v1064 = vunpack.c.h.b16 %v967
        %v1065 = vunpack.c.l.b16 %v968
        %v1066 = vunpack.c.l.b16 %v969
        %v1067 = vunpack.c.h.b16 %v969
        %v1068 = vunpack.c.l.b16 %v970
        %v1069 = vunpack.c.l.b16 %v971
        %v1070 = vunpack.c.h.b16 %v971
        %v1071 = vunpack.c.l.b16 %v972
        %v1072 = vunpack.c.l.b16 %v973
        %v1073 = vunpack.c.h.b16 %v973
        %v1074 = vunpack.c.l.b16 %v974
        %v1075 = vunpack.c.l.b16 %v975
        %v1076 = vunpack.c.h.b16 %v975
        %v1077 = vunpack.c.l.b16 %v976
        %v1078 = vunpack.c.l.b16 %v977
        %v1079 = vunpack.c.h.b16 %v977
        %v1080 = vunpack.c.l.b16 %v978
        %v1081 = vunpack.c.l.b16 %v979
        %v1082 = vunpack.c.h.b16 %v979
        %v1083 = vunpack.c.l.b16 %v980
        %v1084 = vpack.c.b16 %v1039, %v1036
        %v1085 = vpack.c.b16 %v1040, %v1037
        %v1086 = vpack.c.b16 %v1041, %v1038
        %v1087 = vpack.c.b16 %v1045, %v1042
        %v1088 = vpack.c.b16 %v1046, %v1043
        %v1089 = vpack.c.b16 %v1047, %v1044
        %v1090 = vpack.c.b16 %v1051, %v1048
        %v1091 = vpack.c.b16 %v1052, %v1049
        %v1092 = vpack.c.b16 %v1053, %v1050
        %v1093 = vpack.c.b16 %v1057, %v1054
        %v1094 = vpack.c.b16 %v1058, %v1055
        %v1095 = vpack.c.b16 %v1059, %v1056
        %v1096 = vpack.c.b16 %v1063, %v1060
        %v1097 = vpack.c.b16 %v1064, %v1061
        %v1098 = vpack.c.b16 %v1065, %v1062
        %v1099 = vpack.c.b16 %v1069, %v1066
        %v1100 = vpack.c.b16 %v1070, %v1067
        %v1101 = vpack.c.b16 %v1071, %v1068
        %v1102 = vpack.c.b16 %v1075, %v1072
        %v1103 = vpack.c.b16 %v1076, %v1073
        %v1104 = vpack.c.b16 %v1077, %v1074
        %v1105 = vpack.c.b16 %v1081, %v1078
        %v1106 = vpack.c.b16 %v1082, %v1079
        %v1107 = vpack.c.b16 %v1083, %v1080
        %1132 = vmatprep.subr.bf16.mxu0 %v1106
        %1133 = vmatpush1.bf16.msra.mxu0 %v1105
        %1134 = vmatprep.subr.bf16.mxu0 %v1103
        %1135 = vmatpush1.bf16.msra.mxu0 %v1102
        %1136 = vmatprep.subr.bf16.mxu0 %v1100
        %1137 = vmatpush1.bf16.msra.mxu0 %v1099
        %1138 = vmatprep.subr.bf16.mxu0 %v1097
        %1139 = vmatpush1.bf16.msra.mxu0 %v1096
        %1140 = vmatprep.subr.bf16.mxu0 %v1094
        %1141 = vmatpush1.bf16.msra.mxu0 %v1093
        %1142 = vmatprep.subr.bf16.mxu0 %v1091
        %1143 = vmatpush1.bf16.msra.mxu0 %v1090
        %1144 = vmatprep.subr.bf16.mxu0 %v1088
        %1145 = vmatpush1.bf16.msra.mxu0 %v1087
        %1146 = vmatprep.subr.bf16.mxu0 %v1085
        %1147 = vmatpush1.bf16.msra.mxu0 %v1084
        %1148 = vmatprep.subr.bf16.mxu0 0
        %1149 = vmatpush2.bf16.msra.mxu0 0
        %1150 = vmatprep.subr.bf16.mxu0 0
        %1151 = vmatpush2.bf16.msra.mxu0 0
        %1152 = vmatprep.subr.bf16.mxu0 0
        %1153 = vmatpush2.bf16.msra.mxu0 0
        %1154 = vmatprep.subr.bf16.mxu0 0
        %1155 = vmatpush2.bf16.msra.mxu0 0
        %1156 = vmatprep.subr.bf16.mxu0 0
        %1157 = vmatpush2.bf16.msra.mxu0 0
        %1158 = vmatprep.subr.bf16.mxu0 0
        %1159 = vmatpush2.bf16.msra.mxu0 0
        %1160 = vmatprep.subr.bf16.mxu0 0
        %1161 = vmatpush2.bf16.msra.mxu0 0
        %1162 = vmatprep.subr.bf16.mxu0 0
        %1163 = vmatpush2.bf16.msra.mxu0 0
        %1164 = vmatprep.mubr.bf16.mxu0 0
        %1165 = vmatmul.mubr.bf16.gmra.mxu0 %v1002
        %v1166 = vpop.f32.mrf.mxu0
        %v1167 = vadd.f32 %v986, %v1166
        %v1168 = vpop.f32.mrf.mxu0
        %v1169 = vadd.f32 %v990, %v1168
        %v1170 = vpop.f32.mrf.mxu0
        %v1171 = vadd.f32 %v986, %v1170
        %v1172 = vpop.f32.mrf.mxu0
        %v1173 = vadd.f32 %v990, %v1172
        %1174 = vdwg.mxu0
        %1175 = vmatprep.subr.bf16.mxu0 0
        %1176 = vmatpush1.bf16.msra.mxu0 %v1107
        %1177 = vmatprep.subr.bf16.mxu0 0
        %1178 = vmatpush1.bf16.msra.mxu0 %v1104
        %1179 = vmatprep.subr.bf16.mxu0 0
        %1180 = vmatpush1.bf16.msra.mxu0 %v1101
        %1181 = vmatprep.subr.bf16.mxu0 0
        %1182 = vmatpush1.bf16.msra.mxu0 %v1098
        %1183 = vmatprep.subr.bf16.mxu0 0
        %1184 = vmatpush1.bf16.msra.mxu0 %v1095
        %1185 = vmatprep.subr.bf16.mxu0 0
        %1186 = vmatpush1.bf16.msra.mxu0 %v1092
        %1187 = vmatprep.subr.bf16.mxu0 0
        %1188 = vmatpush1.bf16.msra.mxu0 %v1089
        %1189 = vmatprep.subr.bf16.mxu0 0
        %1190 = vmatpush1.bf16.msra.mxu0 %v1086
        %1191 = vmatprep.subr.bf16.mxu0 0
        %1192 = vmatpush2.bf16.msra.mxu0 0
        %1193 = vmatprep.subr.bf16.mxu0 0
        %1194 = vmatpush2.bf16.msra.mxu0 0
        %1195 = vmatprep.subr.bf16.mxu0 0
        %1196 = vmatpush2.bf16.msra.mxu0 0
        %1197 = vmatprep.subr.bf16.mxu0 0
        %1198 = vmatpush2.bf16.msra.mxu0 0
        %1199 = vmatprep.subr.bf16.mxu0 0
        %1200 = vmatpush2.bf16.msra.mxu0 0
        %1201 = vmatprep.subr.bf16.mxu0 0
        %1202 = vmatpush2.bf16.msra.mxu0 0
        %1203 = vmatprep.subr.bf16.mxu0 0
        %1204 = vmatpush2.bf16.msra.mxu0 0
        %1205 = vmatprep.subr.bf16.mxu0 0
        %1206 = vmatpush2.bf16.msra.mxu0 0
        %1207 = vmatprep.mubr.bf16.mxu0 0
        %1208 = vmatmul.mubr.bf16.gmra.mxu0 %v1002
        %v1209 = vpop.f32.mrf.mxu0
        %v1210 = vadd.f32 %v994, %v1209
        %v1211 = vpop.f32.mrf.mxu0
        %v1212 = vpop.f32.mrf.mxu0
        %v1213 = vadd.f32 %v994, %v1212
        %v1214 = vpop.f32.mrf.mxu0
        %1215 = vdwg.mxu0
        %v1216 = vunpack.c.l.bf16 %v947
        %v1217 = vunpack.c.l.bf16 %v948
        %v1218 = vmul.f32 %v1167, 0.17677669
        %v1219 = vmul.f32 %v1171, 0.17677669
        %v1220 = vpack.c.bf16 %v1219, %v1218
        %v1221 = vpack.c.bf16 %v1173, %v1169
        %v1222 = vpack.c.bf16 %v1213, %v1210
        %vm1223 = vcmask 261120
        %v1225 = vsel %vm1223, %v1220, 0
        %v1228 = vsel %vm1223, %v1221, 0
        %1230 = vmatprep.subr.bf16.mxu0 0
        %1231 = vmatpush1.bf16.xpose.msra.mxu0 0
        %1232 = vmatprep.subr.bf16.mxu0 0
        %1233 = vmatpush1.bf16.xpose.msra.mxu0 0
        %1234 = vmatprep.subr.bf16.mxu0 0
        %1235 = vmatpush1.bf16.xpose.msra.mxu0 0
        %1236 = vmatprep.subr.bf16.mxu0 0
        %1237 = vmatpush1.bf16.xpose.msra.mxu0 0
        %1238 = vmatprep.subr.bf16.mxu0 0
        %1239 = vmatpush1.bf16.xpose.msra.mxu0 0
        %1240 = vmatprep.subr.bf16.mxu0 0
        %1241 = vmatpush1.bf16.xpose.msra.mxu0 0
        %1242 = vmatprep.subr.bf16.mxu0 0
        %1243 = vmatpush1.bf16.xpose.msra.mxu0 0
        %1244 = vmatprep.subr.bf16.mxu0 0
        %1245 = vmatpush1.bf16.xpose.msra.mxu0 %v1228
        %1246 = vmatprep.subr.bf16.mxu0 0
        %1247 = vmatpush2.bf16.xpose.msra.mxu0 0
        %1248 = vmatprep.subr.bf16.mxu0 0
        %1249 = vmatpush2.bf16.xpose.msra.mxu0 0
        %1250 = vmatprep.subr.bf16.mxu0 0
        %1251 = vmatpush2.bf16.xpose.msra.mxu0 0
        %1252 = vmatprep.subr.bf16.mxu0 0
        %1253 = vmatpush2.bf16.xpose.msra.mxu0 0
        %1254 = vmatprep.subr.bf16.mxu0 0
        %1255 = vmatpush2.bf16.xpose.msra.mxu0 0
        %1256 = vmatprep.subr.bf16.mxu0 0
        %1257 = vmatpush2.bf16.xpose.msra.mxu0 0
        %1258 = vmatprep.subr.bf16.mxu0 0
        %1259 = vmatpush2.bf16.xpose.msra.mxu0 0
        %1260 = vmatprep.subr.bf16.mxu0 0
        %1261 = vmatpush2.bf16.xpose.msra.mxu0 0
        %1262 = vmatprep.mubr.bf16.mxu0 0
        %1263 = vmatmul.mubr.bf16.gmra.mxu0 %v1225
        %v1264 = vpop.f32.mrf.mxu0
        %v1265 = vadd.f32 0.0, %v1264
        %v1266 = vpop.f32.mrf.mxu0
        %v1267 = vpop.f32.mrf.mxu0
        %v1268 = vadd.f32 0.0, %v1267
        %v1269 = vpop.f32.mrf.mxu0
        %1270 = vdwg.mxu0
        %vm1271 = vcmask 130048
        %v1272 = vsel %vm1271, %v1265, -inf
        %1273 = vmax.xlane.f32.xlu0 %v1272
        %v1274 = vpop.xlane.xlu0 %1273
        %v1275 = vsel %vm1271, %v1268, -inf
        %1276 = vmax.xlane.f32.xlu0 %v1275
        %v1277 = vpop.xlane.xlu0 %1276
        %v1278 = vsub.f32 %v1265, %v1274
        %v1279 = vsub.f32 %v1268, %v1277
        %v1280 = vmul.f32 %v1278, 1.442695
        %v1281 = vpow.pop %v1280
        %v1282 = vmul.f32 %v1279, 1.442695
        %v1283 = vpow.pop %v1282
        %v1284 = vsel %vm1271, %v1281, 0.0
        %1285 = vadd.xlane.f32.xlu0 %v1284
        %v1286 = vpop.xlane.xlu0 %1285
        %v1287 = vsel %vm1271, %v1283, 0.0
        %1288 = vadd.xlane.f32.xlu0 %v1287
        %v1289 = vpop.xlane.xlu0 %1288
        %v1290 = vrcp.pop %v1286
        %v1291 = vrcp.pop %v1289
        %v1292 = vmul.f32 %v1281, %v1290
        %v1293 = vmul.f32 %v1283, %v1291
        %v1294 = vpack.c.bf16 %v1293, %v1292
        %v1296 = vunpack.c.l.b16 %v1294
        %v1297 = vunpack.c.h.b16 %v1294
        %v1298 = vpack.c.b16 %v1296, %v1296
        %v1299 = vpack.c.b16 %v1297, %v1297
        %vm1302 = vcmask 125952
        %1303 = vst.msk [vmem:[%s922] sm:$0xf] %vm1302, %v1298
        %1304 = vst.msk [vmem:[%s922 + $0x4] sm:$0xf] %vm1302, %v1299
        %v1306 = vsel %vm1271, %v1294, 0
        %1308 = vmatprep.subr.bf16.mxu0 0
        %1309 = vmatpush1.bf16.msra.mxu0 0
        %1310 = vmatprep.subr.bf16.mxu0 0
        %1311 = vmatpush1.bf16.msra.mxu0 0
        %1312 = vmatprep.subr.bf16.mxu0 0
        %1313 = vmatpush1.bf16.msra.mxu0 0
        %1314 = vmatprep.subr.bf16.mxu0 0
        %1315 = vmatpush1.bf16.msra.mxu0 0
        %1316 = vmatprep.subr.bf16.mxu0 0
        %1317 = vmatpush1.bf16.msra.mxu0 0
        %1318 = vmatprep.subr.bf16.mxu0 0
        %1319 = vmatpush1.bf16.msra.mxu0 0
        %1320 = vmatprep.subr.bf16.mxu0 0
        %1321 = vmatpush1.bf16.msra.mxu0 0
        %1322 = vmatprep.subr.bf16.mxu0 0
        %1323 = vmatpush1.bf16.msra.mxu0 %v1222
        %1324 = vmatprep.subr.bf16.mxu0 0
        %1325 = vmatpush2.bf16.msra.mxu0 0
        %1326 = vmatprep.subr.bf16.mxu0 0
        %1327 = vmatpush2.bf16.msra.mxu0 0
        %1328 = vmatprep.subr.bf16.mxu0 0
        %1329 = vmatpush2.bf16.msra.mxu0 0
        %1330 = vmatprep.subr.bf16.mxu0 0
        %1331 = vmatpush2.bf16.msra.mxu0 0
        %1332 = vmatprep.subr.bf16.mxu0 0
        %1333 = vmatpush2.bf16.msra.mxu0 0
        %1334 = vmatprep.subr.bf16.mxu0 0
        %1335 = vmatpush2.bf16.msra.mxu0 0
        %1336 = vmatprep.subr.bf16.mxu0 0
        %1337 = vmatpush2.bf16.msra.mxu0 0
        %1338 = vmatprep.subr.bf16.mxu0 0
        %1339 = vmatpush2.bf16.msra.mxu0 0
        %1340 = vmatprep.mubr.bf16.mxu0 0
        %1341 = vmatmul.mubr.bf16.gmra.mxu0 %v1306
        %v1342 = vpop.f32.mrf.mxu0
        %v1343 = vadd.f32 0.0, %v1342
        %v1344 = vpop.f32.mrf.mxu0
        %v1345 = vpop.f32.mrf.mxu0
        %v1346 = vadd.f32 0.0, %v1345
        %v1347 = vpop.f32.mrf.mxu0
        %1348 = vdwg.mxu0
        %1350 = vrot.lane.b32.xlu0 %v1220, 96
        %v1351 = vpop.permute.xlu0 %1350
        %1353 = vrot.lane.b32.xlu0 %v1221, 96
        %v1354 = vpop.permute.xlu0 %1353
        %v1356 = vsel %vm1223, %v1351, 0
        %v1359 = vsel %vm1223, %v1354, 0
        %1361 = vmatprep.subr.bf16.mxu0 0
        %1362 = vmatpush1.bf16.xpose.msra.mxu0 0
        %1363 = vmatprep.subr.bf16.mxu0 0
        %1364 = vmatpush1.bf16.xpose.msra.mxu0 0
        %1365 = vmatprep.subr.bf16.mxu0 0
        %1366 = vmatpush1.bf16.xpose.msra.mxu0 0
        %1367 = vmatprep.subr.bf16.mxu0 0
        %1368 = vmatpush1.bf16.xpose.msra.mxu0 0
        %1369 = vmatprep.subr.bf16.mxu0 0
        %1370 = vmatpush1.bf16.xpose.msra.mxu0 0
        %1371 = vmatprep.subr.bf16.mxu0 0
        %1372 = vmatpush1.bf16.xpose.msra.mxu0 0
        %1373 = vmatprep.subr.bf16.mxu0 0
        %1374 = vmatpush1.bf16.xpose.msra.mxu0 0
        %1375 = vmatprep.subr.bf16.mxu0 0
        %1376 = vmatpush1.bf16.xpose.msra.mxu0 %v1359
        %1377 = vmatprep.subr.bf16.mxu0 0
        %1378 = vmatpush2.bf16.xpose.msra.mxu0 0
        %1379 = vmatprep.subr.bf16.mxu0 0
        %1380 = vmatpush2.bf16.xpose.msra.mxu0 0
        %1381 = vmatprep.subr.bf16.mxu0 0
        %1382 = vmatpush2.bf16.xpose.msra.mxu0 0
        %1383 = vmatprep.subr.bf16.mxu0 0
        %1384 = vmatpush2.bf16.xpose.msra.mxu0 0
        %1385 = vmatprep.subr.bf16.mxu0 0
        %1386 = vmatpush2.bf16.xpose.msra.mxu0 0
        %1387 = vmatprep.subr.bf16.mxu0 0
        %1388 = vmatpush2.bf16.xpose.msra.mxu0 0
        %1389 = vmatprep.subr.bf16.mxu0 0
        %1390 = vmatpush2.bf16.xpose.msra.mxu0 0
        %1391 = vmatprep.subr.bf16.mxu0 0
        %1392 = vmatpush2.bf16.xpose.msra.mxu0 0
        %1393 = vmatprep.mubr.bf16.mxu0 0
        %1394 = vmatmul.mubr.bf16.gmra.mxu0 %v1356
        %v1395 = vpop.f32.mrf.mxu0
        %v1396 = vadd.f32 0.0, %v1395
        %v1397 = vpop.f32.mrf.mxu0
        %v1398 = vpop.f32.mrf.mxu0
        %v1399 = vadd.f32 0.0, %v1398
        %v1400 = vpop.f32.mrf.mxu0
        %1401 = vdwg.mxu0
        %v1402 = vsel %vm1271, %v1396, -inf
        %1403 = vmax.xlane.f32.xlu0 %v1402
        %v1404 = vpop.xlane.xlu0 %1403
        %v1405 = vsel %vm1271, %v1399, -inf
        %1406 = vmax.xlane.f32.xlu0 %v1405
        %v1407 = vpop.xlane.xlu0 %1406
        %v1408 = vsub.f32 %v1396, %v1404
        %v1409 = vsub.f32 %v1399, %v1407
        %v1410 = vmul.f32 %v1408, 1.442695
        %v1411 = vpow.pop %v1410
        %v1412 = vmul.f32 %v1409, 1.442695
        %v1413 = vpow.pop %v1412
        %v1414 = vsel %vm1271, %v1411, 0.0
        %1415 = vadd.xlane.f32.xlu0 %v1414
        %v1416 = vpop.xlane.xlu0 %1415
        %v1417 = vsel %vm1271, %v1413, 0.0
        %1418 = vadd.xlane.f32.xlu0 %v1417
        %v1419 = vpop.xlane.xlu0 %1418
        %v1420 = vrcp.pop %v1416
        %v1421 = vrcp.pop %v1419
        %v1422 = vmul.f32 %v1411, %v1420
        %v1423 = vmul.f32 %v1413, %v1421
        %v1424 = vpack.c.bf16 %v1423, %v1422
        %v1426 = vunpack.c.l.b16 %v1424
        %v1427 = vunpack.c.h.b16 %v1424
        %v1428 = vpack.c.b16 %v1426, %v1426
        %v1429 = vpack.c.b16 %v1427, %v1427
        %s1432 = scalar_lea.vmem %s922, 8 [#allocation18]
        %1433 = vst.msk [vmem:[%s1432] sm:$0xf] %vm1302, %v1428
        %1434 = vst.msk [vmem:[%s1432 + $0x4] sm:$0xf] %vm1302, %v1429
        %1436 = vrot.lane.b32.xlu0 %v1222, 96
        %v1437 = vpop.permute.xlu0 %1436
        %v1440 = vsel %vm1271, %v1424, 0
        %1442 = vmatprep.subr.bf16.mxu0 0
        %1443 = vmatpush1.bf16.msra.mxu0 0
        %1444 = vmatprep.subr.bf16.mxu0 0
        %1445 = vmatpush1.bf16.msra.mxu0 0
        %1446 = vmatprep.subr.bf16.mxu0 0
        %1447 = vmatpush1.bf16.msra.mxu0 0
        %1448 = vmatprep.subr.bf16.mxu0 0
        %1449 = vmatpush1.bf16.msra.mxu0 0
        %1450 = vmatprep.subr.bf16.mxu0 0
        %1451 = vmatpush1.bf16.msra.mxu0 0
        %1452 = vmatprep.subr.bf16.mxu0 0
        %1453 = vmatpush1.bf16.msra.mxu0 0
        %1454 = vmatprep.subr.bf16.mxu0 0
        %1455 = vmatpush1.bf16.msra.mxu0 0
        %1456 = vmatprep.subr.bf16.mxu0 0
        %1457 = vmatpush1.bf16.msra.mxu0 %v1437
        %1458 = vmatprep.subr.bf16.mxu0 0
        %1459 = vmatpush2.bf16.msra.mxu0 0
        %1460 = vmatprep.subr.bf16.mxu0 0
        %1461 = vmatpush2.bf16.msra.mxu0 0
        %1462 = vmatprep.subr.bf16.mxu0 0
        %1463 = vmatpush2.bf16.msra.mxu0 0
        %1464 = vmatprep.subr.bf16.mxu0 0
        %1465 = vmatpush2.bf16.msra.mxu0 0
        %1466 = vmatprep.subr.bf16.mxu0 0
        %1467 = vmatpush2.bf16.msra.mxu0 0
        %1468 = vmatprep.subr.bf16.mxu0 0
        %1469 = vmatpush2.bf16.msra.mxu0 0
        %1470 = vmatprep.subr.bf16.mxu0 0
        %1471 = vmatpush2.bf16.msra.mxu0 0
        %1472 = vmatprep.subr.bf16.mxu0 0
        %1473 = vmatpush2.bf16.msra.mxu0 0
        %1474 = vmatprep.mubr.bf16.mxu0 0
        %1475 = vmatmul.mubr.bf16.gmra.mxu0 %v1440
        %v1476 = vpop.f32.mrf.mxu0
        %v1477 = vadd.f32 0.0, %v1476
        %v1478 = vpop.f32.mrf.mxu0
        %v1479 = vpop.f32.mrf.mxu0
        %v1480 = vadd.f32 0.0, %v1479
        %v1481 = vpop.f32.mrf.mxu0
        %1482 = vdwg.mxu0
        %1483 = vrot.lane.b32.xlu0 %v1220, 64
        %v1484 = vpop.permute.xlu0 %1483
        %1485 = vrot.lane.b32.xlu0 %v1221, 64
        %v1486 = vpop.permute.xlu0 %1485
        %v1488 = vsel %vm1223, %v1484, 0
        %v1491 = vsel %vm1223, %v1486, 0
        %1493 = vmatprep.subr.bf16.mxu0 0
        %1494 = vmatpush1.bf16.xpose.msra.mxu0 0
        %1495 = vmatprep.subr.bf16.mxu0 0
        %1496 = vmatpush1.bf16.xpose.msra.mxu0 0
        %1497 = vmatprep.subr.bf16.mxu0 0
        %1498 = vmatpush1.bf16.xpose.msra.mxu0 0
        %1499 = vmatprep.subr.bf16.mxu0 0
        %1500 = vmatpush1.bf16.xpose.msra.mxu0 0
        %1501 = vmatprep.subr.bf16.mxu0 0
        %1502 = vmatpush1.bf16.xpose.msra.mxu0 0
        %1503 = vmatprep.subr.bf16.mxu0 0
        %1504 = vmatpush1.bf16.xpose.msra.mxu0 0
        %1505 = vmatprep.subr.bf16.mxu0 0
        %1506 = vmatpush1.bf16.xpose.msra.mxu0 0
        %1507 = vmatprep.subr.bf16.mxu0 0
        %1508 = vmatpush1.bf16.xpose.msra.mxu0 %v1491
        %1509 = vmatprep.subr.bf16.mxu0 0
        %1510 = vmatpush2.bf16.xpose.msra.mxu0 0
        %1511 = vmatprep.subr.bf16.mxu0 0
        %1512 = vmatpush2.bf16.xpose.msra.mxu0 0
        %1513 = vmatprep.subr.bf16.mxu0 0
        %1514 = vmatpush2.bf16.xpose.msra.mxu0 0
        %1515 = vmatprep.subr.bf16.mxu0 0
        %1516 = vmatpush2.bf16.xpose.msra.mxu0 0
        %1517 = vmatprep.subr.bf16.mxu0 0
        %1518 = vmatpush2.bf16.xpose.msra.mxu0 0
        %1519 = vmatprep.subr.bf16.mxu0 0
        %1520 = vmatpush2.bf16.xpose.msra.mxu0 0
        %1521 = vmatprep.subr.bf16.mxu0 0
        %1522 = vmatpush2.bf16.xpose.msra.mxu0 0
        %1523 = vmatprep.subr.bf16.mxu0 0
        %1524 = vmatpush2.bf16.xpose.msra.mxu0 0
        %1525 = vmatprep.mubr.bf16.mxu0 0
        %1526 = vmatmul.mubr.bf16.gmra.mxu0 %v1488
        %v1527 = vpop.f32.mrf.mxu0
        %v1528 = vadd.f32 0.0, %v1527
        %v1529 = vpop.f32.mrf.mxu0
        %v1530 = vpop.f32.mrf.mxu0
        %v1531 = vadd.f32 0.0, %v1530
        %v1532 = vpop.f32.mrf.mxu0
        %1533 = vdwg.mxu0
        %v1534 = vsel %vm1271, %v1528, -inf
        %1535 = vmax.xlane.f32.xlu0 %v1534
        %v1536 = vpop.xlane.xlu0 %1535
        %v1537 = vsel %vm1271, %v1531, -inf
        %1538 = vmax.xlane.f32.xlu0 %v1537
        %v1539 = vpop.xlane.xlu0 %1538
        %v1540 = vsub.f32 %v1528, %v1536
        %v1541 = vsub.f32 %v1531, %v1539
        %v1542 = vmul.f32 %v1540, 1.442695
        %v1543 = vpow.pop %v1542
        %v1544 = vmul.f32 %v1541, 1.442695
        %v1545 = vpow.pop %v1544
        %v1546 = vsel %vm1271, %v1543, 0.0
        %1547 = vadd.xlane.f32.xlu0 %v1546
        %v1548 = vpop.xlane.xlu0 %1547
        %v1549 = vsel %vm1271, %v1545, 0.0
        %1550 = vadd.xlane.f32.xlu0 %v1549
        %v1551 = vpop.xlane.xlu0 %1550
        %v1552 = vrcp.pop %v1548
        %v1553 = vrcp.pop %v1551
        %v1554 = vmul.f32 %v1543, %v1552
        %v1555 = vmul.f32 %v1545, %v1553
        %v1556 = vpack.c.bf16 %v1555, %v1554
        %v1558 = vunpack.c.l.b16 %v1556
        %v1559 = vunpack.c.h.b16 %v1556
        %v1560 = vpack.c.b16 %v1558, %v1558
        %v1561 = vpack.c.b16 %v1559, %v1559
        %s1564 = scalar_lea.vmem %s922, 16 [#allocation18]
        %1565 = vst.msk [vmem:[%s1564] sm:$0xf] %vm1302, %v1560
        %1566 = vst.msk [vmem:[%s1564 + $0x4] sm:$0xf] %vm1302, %v1561
        %1567 = vrot.lane.b32.xlu0 %v1222, 64
        %v1568 = vpop.permute.xlu0 %1567
        %v1571 = vsel %vm1271, %v1556, 0
        %1573 = vmatprep.subr.bf16.mxu0 0
        %1574 = vmatpush1.bf16.msra.mxu0 0
        %1575 = vmatprep.subr.bf16.mxu0 0
        %1576 = vmatpush1.bf16.msra.mxu0 0
        %1577 = vmatprep.subr.bf16.mxu0 0
        %1578 = vmatpush1.bf16.msra.mxu0 0
        %1579 = vmatprep.subr.bf16.mxu0 0
        %1580 = vmatpush1.bf16.msra.mxu0 0
        %1581 = vmatprep.subr.bf16.mxu0 0
        %1582 = vmatpush1.bf16.msra.mxu0 0
        %1583 = vmatprep.subr.bf16.mxu0 0
        %1584 = vmatpush1.bf16.msra.mxu0 0
        %1585 = vmatprep.subr.bf16.mxu0 0
        %1586 = vmatpush1.bf16.msra.mxu0 0
        %1587 = vmatprep.subr.bf16.mxu0 0
        %1588 = vmatpush1.bf16.msra.mxu0 %v1568
        %1589 = vmatprep.subr.bf16.mxu0 0
        %1590 = vmatpush2.bf16.msra.mxu0 0
        %1591 = vmatprep.subr.bf16.mxu0 0
        %1592 = vmatpush2.bf16.msra.mxu0 0
        %1593 = vmatprep.subr.bf16.mxu0 0
        %1594 = vmatpush2.bf16.msra.mxu0 0
        %1595 = vmatprep.subr.bf16.mxu0 0
        %1596 = vmatpush2.bf16.msra.mxu0 0
        %1597 = vmatprep.subr.bf16.mxu0 0
        %1598 = vmatpush2.bf16.msra.mxu0 0
        %1599 = vmatprep.subr.bf16.mxu0 0
        %1600 = vmatpush2.bf16.msra.mxu0 0
        %1601 = vmatprep.subr.bf16.mxu0 0
        %1602 = vmatpush2.bf16.msra.mxu0 0
        %1603 = vmatprep.subr.bf16.mxu0 0
        %1604 = vmatpush2.bf16.msra.mxu0 0
        %1605 = vmatprep.mubr.bf16.mxu0 0
        %1606 = vmatmul.mubr.bf16.gmra.mxu0 %v1571
        %v1607 = vpop.f32.mrf.mxu0
        %v1608 = vadd.f32 0.0, %v1607
        %v1609 = vpop.f32.mrf.mxu0
        %v1610 = vpop.f32.mrf.mxu0
        %v1611 = vadd.f32 0.0, %v1610
        %v1612 = vpop.f32.mrf.mxu0
        %1613 = vdwg.mxu0
        %1614 = vrot.lane.b32.xlu0 %v1220, 32
        %v1615 = vpop.permute.xlu0 %1614
        %1616 = vrot.lane.b32.xlu0 %v1221, 32
        %v1617 = vpop.permute.xlu0 %1616
        %v1619 = vsel %vm1223, %v1615, 0
        %v1622 = vsel %vm1223, %v1617, 0
        %1624 = vmatprep.subr.bf16.mxu0 0
        %1625 = vmatpush1.bf16.xpose.msra.mxu0 0
        %1626 = vmatprep.subr.bf16.mxu0 0
        %1627 = vmatpush1.bf16.xpose.msra.mxu0 0
        %1628 = vmatprep.subr.bf16.mxu0 0
        %1629 = vmatpush1.bf16.xpose.msra.mxu0 0
        %1630 = vmatprep.subr.bf16.mxu0 0
        %1631 = vmatpush1.bf16.xpose.msra.mxu0 0
        %1632 = vmatprep.subr.bf16.mxu0 0
        %1633 = vmatpush1.bf16.xpose.msra.mxu0 0
        %1634 = vmatprep.subr.bf16.mxu0 0
        %1635 = vmatpush1.bf16.xpose.msra.mxu0 0
        %1636 = vmatprep.subr.bf16.mxu0 0
        %1637 = vmatpush1.bf16.xpose.msra.mxu0 0
        %1638 = vmatprep.subr.bf16.mxu0 0
        %1639 = vmatpush1.bf16.xpose.msra.mxu0 %v1622
        %1640 = vmatprep.subr.bf16.mxu0 0
        %1641 = vmatpush2.bf16.xpose.msra.mxu0 0
        %1642 = vmatprep.subr.bf16.mxu0 0
        %1643 = vmatpush2.bf16.xpose.msra.mxu0 0
        %1644 = vmatprep.subr.bf16.mxu0 0
        %1645 = vmatpush2.bf16.xpose.msra.mxu0 0
        %1646 = vmatprep.subr.bf16.mxu0 0
        %1647 = vmatpush2.bf16.xpose.msra.mxu0 0
        %1648 = vmatprep.subr.bf16.mxu0 0
        %1649 = vmatpush2.bf16.xpose.msra.mxu0 0
        %1650 = vmatprep.subr.bf16.mxu0 0
        %1651 = vmatpush2.bf16.xpose.msra.mxu0 0
        %1652 = vmatprep.subr.bf16.mxu0 0
        %1653 = vmatpush2.bf16.xpose.msra.mxu0 0
        %1654 = vmatprep.subr.bf16.mxu0 0
        %1655 = vmatpush2.bf16.xpose.msra.mxu0 0
        %1656 = vmatprep.mubr.bf16.mxu0 0
        %1657 = vmatmul.mubr.bf16.gmra.mxu0 %v1619
        %v1658 = vpop.f32.mrf.mxu0
        %v1659 = vadd.f32 0.0, %v1658
        %v1660 = vpop.f32.mrf.mxu0
        %v1661 = vpop.f32.mrf.mxu0
        %v1662 = vadd.f32 0.0, %v1661
        %v1663 = vpop.f32.mrf.mxu0
        %1664 = vdwg.mxu0
        %v1665 = vsel %vm1271, %v1659, -inf
        %1666 = vmax.xlane.f32.xlu0 %v1665
        %v1667 = vpop.xlane.xlu0 %1666
        %v1668 = vsel %vm1271, %v1662, -inf
        %1669 = vmax.xlane.f32.xlu0 %v1668
        %v1670 = vpop.xlane.xlu0 %1669
        %v1671 = vsub.f32 %v1659, %v1667
        %v1672 = vsub.f32 %v1662, %v1670
        %v1673 = vmul.f32 %v1671, 1.442695
        %v1674 = vpow.pop %v1673
        %v1675 = vmul.f32 %v1672, 1.442695
        %v1676 = vpow.pop %v1675
        %v1677 = vsel %vm1271, %v1674, 0.0
        %1678 = vadd.xlane.f32.xlu0 %v1677
        %v1679 = vpop.xlane.xlu0 %1678
        %v1680 = vsel %vm1271, %v1676, 0.0
        %1681 = vadd.xlane.f32.xlu0 %v1680
        %v1682 = vpop.xlane.xlu0 %1681
        %v1683 = vrcp.pop %v1679
        %v1684 = vrcp.pop %v1682
        %v1685 = vmul.f32 %v1674, %v1683
        %v1686 = vmul.f32 %v1676, %v1684
        %v1687 = vpack.c.bf16 %v1686, %v1685
        %v1689 = vunpack.c.l.b16 %v1687
        %v1690 = vunpack.c.h.b16 %v1687
        %v1691 = vpack.c.b16 %v1689, %v1689
        %v1692 = vpack.c.b16 %v1690, %v1690
        %s1695 = scalar_lea.vmem %s922, 24 [#allocation18]
        %1696 = vst.msk [vmem:[%s1695] sm:$0xf] %vm1302, %v1691
        %1697 = vst.msk [vmem:[%s1695 + $0x4] sm:$0xf] %vm1302, %v1692
        %1698 = vrot.lane.b32.xlu0 %v1222, 32
        %v1699 = vpop.permute.xlu0 %1698
        %v1702 = vsel %vm1271, %v1687, 0
        %1704 = vmatprep.subr.bf16.mxu0 0
        %1705 = vmatpush1.bf16.msra.mxu0 0
        %1706 = vmatprep.subr.bf16.mxu0 0
        %1707 = vmatpush1.bf16.msra.mxu0 0
        %1708 = vmatprep.subr.bf16.mxu0 0
        %1709 = vmatpush1.bf16.msra.mxu0 0
        %1710 = vmatprep.subr.bf16.mxu0 0
        %1711 = vmatpush1.bf16.msra.mxu0 0
        %1712 = vmatprep.subr.bf16.mxu0 0
        %1713 = vmatpush1.bf16.msra.mxu0 0
        %1714 = vmatprep.subr.bf16.mxu0 0
        %1715 = vmatpush1.bf16.msra.mxu0 0
        %1716 = vmatprep.subr.bf16.mxu0 0
        %1717 = vmatpush1.bf16.msra.mxu0 0
        %1718 = vmatprep.subr.bf16.mxu0 0
        %1719 = vmatpush1.bf16.msra.mxu0 %v1699
        %1720 = vmatprep.subr.bf16.mxu0 0
        %1721 = vmatpush2.bf16.msra.mxu0 0
        %1722 = vmatprep.subr.bf16.mxu0 0
        %1723 = vmatpush2.bf16.msra.mxu0 0
        %1724 = vmatprep.subr.bf16.mxu0 0
        %1725 = vmatpush2.bf16.msra.mxu0 0
        %1726 = vmatprep.subr.bf16.mxu0 0
        %1727 = vmatpush2.bf16.msra.mxu0 0
        %1728 = vmatprep.subr.bf16.mxu0 0
        %1729 = vmatpush2.bf16.msra.mxu0 0
        %1730 = vmatprep.subr.bf16.mxu0 0
        %1731 = vmatpush2.bf16.msra.mxu0 0
        %1732 = vmatprep.subr.bf16.mxu0 0
        %1733 = vmatpush2.bf16.msra.mxu0 0
        %1734 = vmatprep.subr.bf16.mxu0 0
        %1735 = vmatpush2.bf16.msra.mxu0 0
        %1736 = vmatprep.mubr.bf16.mxu0 0
        %1737 = vmatmul.mubr.bf16.gmra.mxu0 %v1702
        %v1738 = vpop.f32.mrf.mxu0
        %v1739 = vadd.f32 0.0, %v1738
        %v1740 = vpop.f32.mrf.mxu0
        %v1741 = vpop.f32.mrf.mxu0
        %v1742 = vadd.f32 0.0, %v1741
        %v1743 = vpop.f32.mrf.mxu0
        %1744 = vdwg.mxu0
        %1747 = vrot.lane.b32.xlu0 %v1477, 32
        %v1748 = vpop.permute.xlu0 %1747
        %1749 = vrot.lane.b32.xlu0 %v1480, 32
        %v1750 = vpop.permute.xlu0 %1749
        %1755 = vrot.lane.b32.xlu0 %v1608, 64
        %v1756 = vpop.permute.xlu0 %1755
        %1757 = vrot.lane.b32.xlu0 %v1611, 64
        %v1758 = vpop.permute.xlu0 %1757
        %1763 = vrot.lane.b32.xlu0 %v1739, 96
        %v1764 = vpop.permute.xlu0 %1763
        %1765 = vrot.lane.b32.xlu0 %v1742, 96
        %v1766 = vpop.permute.xlu0 %1765
        %v1769 = vsel %vm1223, %v1343, %v1748
        %v1770 = vsel %vm1223, %v1346, %v1750
        %vm1771 = vcmask 523264
        %v1772 = vsel %vm1771, %v1769, %v1756
        %v1773 = vsel %vm1771, %v1770, %v1758
        %vm1774 = vcmask 785408
        %v1775 = vsel %vm1774, %v1772, %v1764
        %v1776 = vsel %vm1774, %v1773, %v1766
        %v1777 = vpack.c.bf16 %v1776, %v1775
        %v1778 = vld [vmem:[#allocation8] sm:$0xf]
        %v1779 = vld [vmem:[#allocation8 + $0x4] sm:$0xf]
        %v1780 = vld [vmem:[#allocation8 + $0x8] sm:$0xf]
        %v1781 = vld [vmem:[#allocation8 + $0xc] sm:$0xf]
        %v1782 = vld [vmem:[#allocation8 + $0x10] sm:$0xf]
        %v1783 = vld [vmem:[#allocation8 + $0x14] sm:$0xf]
        %v1784 = vld [vmem:[#allocation8 + $0x18] sm:$0xf]
        %v1785 = vld [vmem:[#allocation8 + $0x1c] sm:$0xf]
        %v1786 = vld [vmem:[#allocation8 + $0x20] sm:$0xf]
        %v1787 = vld [vmem:[#allocation8 + $0x24] sm:$0xf]
        %v1788 = vld [vmem:[#allocation8 + $0x28] sm:$0xf]
        %v1789 = vld [vmem:[#allocation8 + $0x2c] sm:$0xf]
        %v1790 = vld [vmem:[#allocation8 + $0x30] sm:$0xf]
        %v1791 = vld [vmem:[#allocation8 + $0x34] sm:$0xf]
        %v1792 = vld [vmem:[#allocation8 + $0x38] sm:$0xf]
        %v1793 = vld [vmem:[#allocation8 + $0x3c] sm:$0xf]
        %v1794 = vld [vmem:[%s5] sm:$0x1]
        %v1796 = vlaneseq
        %v1797 = vshrl.u32 %v1796, 7
        %v1798 = vsub.s32 0, %v1797
        %v1799 = vrot.slane %v1794, %v1798
        %v1817 = vunpack.c.l.b16 %v1778
        %v1818 = vunpack.c.l.b16 %v1779
        %v1819 = vunpack.c.l.b16 %v1780
        %v1820 = vunpack.c.l.b16 %v1781
        %v1821 = vunpack.c.l.b16 %v1782
        %v1822 = vunpack.c.l.b16 %v1783
        %v1823 = vunpack.c.l.b16 %v1784
        %v1824 = vunpack.c.l.b16 %v1785
        %v1825 = vunpack.c.l.b16 %v1786
        %v1826 = vunpack.c.l.b16 %v1787
        %v1827 = vunpack.c.l.b16 %v1788
        %v1828 = vunpack.c.l.b16 %v1789
        %v1829 = vunpack.c.l.b16 %v1790
        %v1830 = vunpack.c.l.b16 %v1791
        %v1831 = vunpack.c.l.b16 %v1792
        %v1832 = vunpack.c.l.b16 %v1793
        %v1833 = vpack.c.b16 %v1818, %v1817
        %v1834 = vpack.c.b16 %v1820, %v1819
        %v1835 = vpack.c.b16 %v1822, %v1821
        %v1836 = vpack.c.b16 %v1824, %v1823
        %v1837 = vpack.c.b16 %v1826, %v1825
        %v1838 = vpack.c.b16 %v1828, %v1827
        %v1839 = vpack.c.b16 %v1830, %v1829
        %v1840 = vpack.c.b16 %v1832, %v1831
        %1849 = vmatprep.subr.bf16.mxu0 0
        %1850 = vmatpush1.bf16.msra.mxu0 %v1840
        %1851 = vmatprep.subr.bf16.mxu0 0
        %1852 = vmatpush1.bf16.msra.mxu0 %v1839
        %1853 = vmatprep.subr.bf16.mxu0 0
        %1854 = vmatpush1.bf16.msra.mxu0 %v1838
        %1855 = vmatprep.subr.bf16.mxu0 0
        %1856 = vmatpush1.bf16.msra.mxu0 %v1837
        %1857 = vmatprep.subr.bf16.mxu0 0
        %1858 = vmatpush1.bf16.msra.mxu0 %v1836
        %1859 = vmatprep.subr.bf16.mxu0 0
        %1860 = vmatpush1.bf16.msra.mxu0 %v1835
        %1861 = vmatprep.subr.bf16.mxu0 0
        %1862 = vmatpush1.bf16.msra.mxu0 %v1834
        %1863 = vmatprep.subr.bf16.mxu0 0
        %1864 = vmatpush1.bf16.msra.mxu0 %v1833
        %1865 = vmatprep.subr.bf16.mxu0 0
        %1866 = vmatpush2.bf16.msra.mxu0 0
        %1867 = vmatprep.subr.bf16.mxu0 0
        %1868 = vmatpush2.bf16.msra.mxu0 0
        %1869 = vmatprep.subr.bf16.mxu0 0
        %1870 = vmatpush2.bf16.msra.mxu0 0
        %1871 = vmatprep.subr.bf16.mxu0 0
        %1872 = vmatpush2.bf16.msra.mxu0 0
        %1873 = vmatprep.subr.bf16.mxu0 0
        %1874 = vmatpush2.bf16.msra.mxu0 0
        %1875 = vmatprep.subr.bf16.mxu0 0
        %1876 = vmatpush2.bf16.msra.mxu0 0
        %1877 = vmatprep.subr.bf16.mxu0 0
        %1878 = vmatpush2.bf16.msra.mxu0 0
        %1879 = vmatprep.subr.bf16.mxu0 0
        %1880 = vmatpush2.bf16.msra.mxu0 0
        %1881 = vmatprep.mubr.bf16.mxu0 0
        %1882 = vmatmul.mubr.bf16.gmra.mxu0 %v1777
        %v1883 = vpop.f32.mrf.mxu0
        %v1884 = vadd.f32 %v1799, %v1883
        %v1885 = vpop.f32.mrf.mxu0
        %v1886 = vpop.f32.mrf.mxu0
        %v1887 = vadd.f32 %v1799, %v1886
        %v1888 = vpop.f32.mrf.mxu0
        %1889 = vdwg.mxu0
        %v1890 = vld [vmem:[%s6] sm:$0x1]
        %v1891 = vld [vmem:[%s7] sm:$0x1]
        %v1892 = vadd.f32 %v1884, %v1216
        %v1893 = vadd.f32 %v1887, %v1217
        %1894 = vadd.xlane.f32.xlu0 %v1892
        %v1895 = vpop.xlane.xlu0 %1894
        %1896 = vadd.xlane.f32.xlu0 %v1893
        %v1897 = vpop.xlane.xlu0 %1896
        %v1898 = vrcp.pop 128.0
        %v1899 = vmul.f32 %v1895, %v1898
        %v1900 = vmul.f32 %v1897, %v1898
        %v1901 = vsub.f32 %v1892, %v1899
        %v1902 = vsub.f32 %v1893, %v1900
        %v1903 = vmul.f32 %v1901, %v1901
        %v1904 = vmul.f32 %v1902, %v1902
        %1905 = vadd.xlane.f32.xlu0 %v1903
        %v1906 = vpop.xlane.xlu0 %1905
        %1907 = vadd.xlane.f32.xlu0 %v1904
        %v1908 = vpop.xlane.xlu0 %1907
        %v1909 = vmul.f32 %v1906, %v1898
        %v1910 = vmul.f32 %v1908, %v1898
        %v1911 = vadd.f32 %v1909, 1e-05
        %v1912 = vadd.f32 %v1910, 1e-05
        %v1913 = vrsqrt.pop %v1911
        %v1914 = vrsqrt.pop %v1912
        %v1915 = vmul.f32 %v1901, %v1913
        %v1916 = vmul.f32 %v1902, %v1914
        %v1918 = vlaneseq
        %v1919 = vshrl.u32 %v1918, 7
        %v1920 = vsub.s32 0, %v1919
        %v1921 = vrot.slane %v1890, %v1920
        %v1923 = vmul.f32 %v1915, %v1921
        %v1924 = vmul.f32 %v1916, %v1921
        %v1926 = vlaneseq
        %v1927 = vshrl.u32 %v1926, 7
        %v1928 = vsub.s32 0, %v1927
        %v1929 = vrot.slane %v1891, %v1928
        %v1931 = vadd.f32 %v1923, %v1929
        %v1932 = vadd.f32 %v1924, %v1929
        %v1933 = vld [vmem:[%s822] sm:$0xf]
        %v1934 = vpack.c.bf16 %v1932, %v1931
        %v1935 = vld [vmem:[#allocation10] sm:$0xf]
        %v1936 = vld [vmem:[#allocation10 + $0x4] sm:$0xf]
        %v1937 = vld [vmem:[#allocation10 + $0x8] sm:$0xf]
        %v1938 = vld [vmem:[#allocation10 + $0xc] sm:$0xf]
        %v1939 = vld [vmem:[#allocation10 + $0x10] sm:$0xf]
        %v1940 = vld [vmem:[#allocation10 + $0x14] sm:$0xf]
        %v1941 = vld [vmem:[#allocation10 + $0x18] sm:$0xf]
        %v1942 = vld [vmem:[#allocation10 + $0x1c] sm:$0xf]
        %v1943 = vld [vmem:[#allocation10 + $0x20] sm:$0xf]
        %v1944 = vld [vmem:[#allocation10 + $0x24] sm:$0xf]
        %v1945 = vld [vmem:[#allocation10 + $0x28] sm:$0xf]
        %v1946 = vld [vmem:[#allocation10 + $0x2c] sm:$0xf]
        %v1947 = vld [vmem:[#allocation10 + $0x30] sm:$0xf]
        %v1948 = vld [vmem:[#allocation10 + $0x34] sm:$0xf]
        %v1949 = vld [vmem:[#allocation10 + $0x38] sm:$0xf]
        %v1950 = vld [vmem:[#allocation10 + $0x3c] sm:$0xf]
        %v1951 = vld [vmem:[%s9] sm:$0x1]
        %v1953 = vlaneseq
        %v1954 = vshrl.u32 %v1953, 7
        %v1955 = vsub.s32 0, %v1954
        %v1956 = vrot.slane %v1951, %v1955
        %v1974 = vunpack.c.l.b16 %v1935
        %v1975 = vunpack.c.l.b16 %v1936
        %v1976 = vunpack.c.l.b16 %v1937
        %v1977 = vunpack.c.l.b16 %v1938
        %v1978 = vunpack.c.l.b16 %v1939
        %v1979 = vunpack.c.l.b16 %v1940
        %v1980 = vunpack.c.l.b16 %v1941
        %v1981 = vunpack.c.l.b16 %v1942
        %v1982 = vunpack.c.l.b16 %v1943
        %v1983 = vunpack.c.l.b16 %v1944
        %v1984 = vunpack.c.l.b16 %v1945
        %v1985 = vunpack.c.l.b16 %v1946
        %v1986 = vunpack.c.l.b16 %v1947
        %v1987 = vunpack.c.l.b16 %v1948
        %v1988 = vunpack.c.l.b16 %v1949
        %v1989 = vunpack.c.l.b16 %v1950
        %v1990 = vpack.c.b16 %v1975, %v1974
        %v1991 = vpack.c.b16 %v1977, %v1976
        %v1992 = vpack.c.b16 %v1979, %v1978
        %v1993 = vpack.c.b16 %v1981, %v1980
        %v1994 = vpack.c.b16 %v1983, %v1982
        %v1995 = vpack.c.b16 %v1985, %v1984
        %v1996 = vpack.c.b16 %v1987, %v1986
        %v1997 = vpack.c.b16 %v1989, %v1988
        %2006 = vmatprep.subr.bf16.mxu0 0
        %2007 = vmatpush1.bf16.msra.mxu0 %v1997
        %2008 = vmatprep.subr.bf16.mxu0 0
        %2009 = vmatpush1.bf16.msra.mxu0 %v1996
        %2010 = vmatprep.subr.bf16.mxu0 0
        %2011 = vmatpush1.bf16.msra.mxu0 %v1995
        %2012 = vmatprep.subr.bf16.mxu0 0
        %2013 = vmatpush1.bf16.msra.mxu0 %v1994
        %2014 = vmatprep.subr.bf16.mxu0 0
        %2015 = vmatpush1.bf16.msra.mxu0 %v1993
        %2016 = vmatprep.subr.bf16.mxu0 0
        %2017 = vmatpush1.bf16.msra.mxu0 %v1992
        %2018 = vmatprep.subr.bf16.mxu0 0
        %2019 = vmatpush1.bf16.msra.mxu0 %v1991
        %2020 = vmatprep.subr.bf16.mxu0 0
        %2021 = vmatpush1.bf16.msra.mxu0 %v1990
        %2022 = vmatprep.subr.bf16.mxu0 0
        %2023 = vmatpush2.bf16.msra.mxu0 0
        %2024 = vmatprep.subr.bf16.mxu0 0
        %2025 = vmatpush2.bf16.msra.mxu0 0
        %2026 = vmatprep.subr.bf16.mxu0 0
        %2027 = vmatpush2.bf16.msra.mxu0 0
        %2028 = vmatprep.subr.bf16.mxu0 0
        %2029 = vmatpush2.bf16.msra.mxu0 0
        %2030 = vmatprep.subr.bf16.mxu0 0
        %2031 = vmatpush2.bf16.msra.mxu0 0
        %2032 = vmatprep.subr.bf16.mxu0 0
        %2033 = vmatpush2.bf16.msra.mxu0 0
        %2034 = vmatprep.subr.bf16.mxu0 0
        %2035 = vmatpush2.bf16.msra.mxu0 0
        %2036 = vmatprep.subr.bf16.mxu0 0
        %2037 = vmatpush2.bf16.msra.mxu0 0
        %2038 = vmatprep.mubr.bf16.mxu0 0
        %2039 = vmatmul.mubr.bf16.gmra.mxu0 %v1934
        %v2040 = vpop.f32.mrf.mxu0
        %v2041 = vadd.f32 %v1956, %v2040
        %v2042 = vpop.f32.mrf.mxu0
        %v2043 = vpop.f32.mrf.mxu0
        %v2044 = vadd.f32 %v1956, %v2043
        %v2045 = vpop.f32.mrf.mxu0
        %2046 = vdwg.mxu0
        %v2047 = vld [vmem:[#allocation11] sm:$0xff]
        %v2048 = vld [vmem:[#allocation11 + $0x8] sm:$0xff]
        %v2049 = vld [vmem:[#allocation11 + $0x10] sm:$0xff]
        %v2050 = vld [vmem:[#allocation11 + $0x18] sm:$0xff]
        %v2051 = vld [vmem:[#allocation11 + $0x20] sm:$0xff]
        %v2052 = vld [vmem:[#allocation11 + $0x28] sm:$0xff]
        %v2053 = vld [vmem:[#allocation11 + $0x30] sm:$0xff]
        %v2054 = vld [vmem:[#allocation11 + $0x38] sm:$0xff]
        %v2055 = vld [vmem:[#allocation11 + $0x40] sm:$0xff]
        %v2056 = vld [vmem:[#allocation11 + $0x48] sm:$0xff]
        %v2057 = vld [vmem:[#allocation11 + $0x50] sm:$0xff]
        %v2058 = vld [vmem:[#allocation11 + $0x58] sm:$0xff]
        %v2059 = vld [vmem:[#allocation11 + $0x60] sm:$0xff]
        %v2060 = vld [vmem:[#allocation11 + $0x68] sm:$0xff]
        %v2061 = vld [vmem:[#allocation11 + $0x70] sm:$0xff]
        %v2062 = vld [vmem:[#allocation11 + $0x78] sm:$0xff]
        %v2063 = vld [vmem:[%s11] sm:$0x3]
        %v2065 = vlaneseq
        %v2066 = vshrl.u32 %v2065, 7
        %v2067 = vsub.s32 0, %v2066
        %v2068 = vrot.slane %v2063, %v2067
        %v2069 = vlaneseq
        %v2070 = vshrl.u32 %v2069, 7
        %v2071 = vsub.s32 1, %v2070
        %v2072 = vrot.slane %v2063, %v2071
        %v2091 = vunpack.c.l.b16 %v2047
        %v2092 = vunpack.c.h.b16 %v2047
        %v2093 = vunpack.c.l.b16 %v2048
        %v2094 = vunpack.c.h.b16 %v2048
        %v2095 = vunpack.c.l.b16 %v2049
        %v2096 = vunpack.c.h.b16 %v2049
        %v2097 = vunpack.c.l.b16 %v2050
        %v2098 = vunpack.c.h.b16 %v2050
        %v2099 = vunpack.c.l.b16 %v2051
        %v2100 = vunpack.c.h.b16 %v2051
        %v2101 = vunpack.c.l.b16 %v2052
        %v2102 = vunpack.c.h.b16 %v2052
        %v2103 = vunpack.c.l.b16 %v2053
        %v2104 = vunpack.c.h.b16 %v2053
        %v2105 = vunpack.c.l.b16 %v2054
        %v2106 = vunpack.c.h.b16 %v2054
        %v2107 = vunpack.c.l.b16 %v2055
        %v2108 = vunpack.c.h.b16 %v2055
        %v2109 = vunpack.c.l.b16 %v2056
        %v2110 = vunpack.c.h.b16 %v2056
        %v2111 = vunpack.c.l.b16 %v2057
        %v2112 = vunpack.c.h.b16 %v2057
        %v2113 = vunpack.c.l.b16 %v2058
        %v2114 = vunpack.c.h.b16 %v2058
        %v2115 = vunpack.c.l.b16 %v2059
        %v2116 = vunpack.c.h.b16 %v2059
        %v2117 = vunpack.c.l.b16 %v2060
        %v2118 = vunpack.c.h.b16 %v2060
        %v2119 = vunpack.c.l.b16 %v2061
        %v2120 = vunpack.c.h.b16 %v2061
        %v2121 = vunpack.c.l.b16 %v2062
        %v2122 = vunpack.c.h.b16 %v2062
        %v2123 = vpack.c.b16 %v2093, %v2091
        %v2124 = vpack.c.b16 %v2094, %v2092
        %v2125 = vpack.c.b16 %v2097, %v2095
        %v2126 = vpack.c.b16 %v2098, %v2096
        %v2127 = vpack.c.b16 %v2101, %v2099
        %v2128 = vpack.c.b16 %v2102, %v2100
        %v2129 = vpack.c.b16 %v2105, %v2103
        %v2130 = vpack.c.b16 %v2106, %v2104
        %v2131 = vpack.c.b16 %v2109, %v2107
        %v2132 = vpack.c.b16 %v2110, %v2108
        %v2133 = vpack.c.b16 %v2113, %v2111
        %v2134 = vpack.c.b16 %v2114, %v2112
        %v2135 = vpack.c.b16 %v2117, %v2115
        %v2136 = vpack.c.b16 %v2118, %v2116
        %v2137 = vpack.c.b16 %v2121, %v2119
        %v2138 = vpack.c.b16 %v2122, %v2120
        %2155 = vmatprep.subr.bf16.mxu0 %v2138
        %2156 = vmatpush1.bf16.msra.mxu0 %v2137
        %2157 = vmatprep.subr.bf16.mxu0 %v2136
        %2158 = vmatpush1.bf16.msra.mxu0 %v2135
        %2159 = vmatprep.subr.bf16.mxu0 %v2134
        %2160 = vmatpush1.bf16.msra.mxu0 %v2133
        %2161 = vmatprep.subr.bf16.mxu0 %v2132
        %2162 = vmatpush1.bf16.msra.mxu0 %v2131
        %2163 = vmatprep.subr.bf16.mxu0 %v2130
        %2164 = vmatpush1.bf16.msra.mxu0 %v2129
        %2165 = vmatprep.subr.bf16.mxu0 %v2128
        %2166 = vmatpush1.bf16.msra.mxu0 %v2127
        %2167 = vmatprep.subr.bf16.mxu0 %v2126
        %2168 = vmatpush1.bf16.msra.mxu0 %v2125
        %2169 = vmatprep.subr.bf16.mxu0 %v2124
        %2170 = vmatpush1.bf16.msra.mxu0 %v2123
        %2171 = vmatprep.subr.bf16.mxu0 0
        %2172 = vmatpush2.bf16.msra.mxu0 0
        %2173 = vmatprep.subr.bf16.mxu0 0
        %2174 = vmatpush2.bf16.msra.mxu0 0
        %2175 = vmatprep.subr.bf16.mxu0 0
        %2176 = vmatpush2.bf16.msra.mxu0 0
        %2177 = vmatprep.subr.bf16.mxu0 0
        %2178 = vmatpush2.bf16.msra.mxu0 0
        %2179 = vmatprep.subr.bf16.mxu0 0
        %2180 = vmatpush2.bf16.msra.mxu0 0
        %2181 = vmatprep.subr.bf16.mxu0 0
        %2182 = vmatpush2.bf16.msra.mxu0 0
        %2183 = vmatprep.subr.bf16.mxu0 0
        %2184 = vmatpush2.bf16.msra.mxu0 0
        %2185 = vmatprep.subr.bf16.mxu0 0
        %2186 = vmatpush2.bf16.msra.mxu0 0
        %2187 = vmatprep.mubr.bf16.mxu0 0
        %2188 = vmatmul.mubr.bf16.gmra.mxu0 %v1933
        %v2189 = vpop.f32.mrf.mxu0
        %v2190 = vadd.f32 %v2068, %v2189
        %v2191 = vpop.f32.mrf.mxu0
        %v2192 = vadd.f32 %v2072, %v2191
        %v2193 = vpop.f32.mrf.mxu0
        %v2194 = vpop.f32.mrf.mxu0
        %2195 = vdwg.mxu0
        %v2196 = vmul.f32 %v2041, 0.17677669
        %v2197 = vmul.f32 %v2044, 0.17677669
        %v2198 = vpack.c.bf16 %v2197, %v2196
        %v2199 = vpack.c.bf16 %v2190, %v2190
        %v2200 = vpack.c.bf16 %v2192, %v2192
        %v2202 = vsel %vm1223, %v2198, 0
        %v2205 = vsel %vm1223, %v2199, 0
        %2207 = vmatprep.subr.bf16.mxu0 0
        %2208 = vmatpush1.bf16.xpose.msra.mxu0 0
        %2209 = vmatprep.subr.bf16.mxu0 0
        %2210 = vmatpush1.bf16.xpose.msra.mxu0 0
        %2211 = vmatprep.subr.bf16.mxu0 0
        %2212 = vmatpush1.bf16.xpose.msra.mxu0 0
        %2213 = vmatprep.subr.bf16.mxu0 0
        %2214 = vmatpush1.bf16.xpose.msra.mxu0 0
        %2215 = vmatprep.subr.bf16.mxu0 0
        %2216 = vmatpush1.bf16.xpose.msra.mxu0 0
        %2217 = vmatprep.subr.bf16.mxu0 0
        %2218 = vmatpush1.bf16.xpose.msra.mxu0 0
        %2219 = vmatprep.subr.bf16.mxu0 0
        %2220 = vmatpush1.bf16.xpose.msra.mxu0 0
        %2221 = vmatprep.subr.bf16.mxu0 0
        %2222 = vmatpush1.bf16.xpose.msra.mxu0 %v2205
        %2223 = vmatprep.subr.bf16.mxu0 0
        %2224 = vmatpush2.bf16.xpose.msra.mxu0 0
        %2225 = vmatprep.subr.bf16.mxu0 0
        %2226 = vmatpush2.bf16.xpose.msra.mxu0 0
        %2227 = vmatprep.subr.bf16.mxu0 0
        %2228 = vmatpush2.bf16.xpose.msra.mxu0 0
        %2229 = vmatprep.subr.bf16.mxu0 0
        %2230 = vmatpush2.bf16.xpose.msra.mxu0 0
        %2231 = vmatprep.subr.bf16.mxu0 0
        %2232 = vmatpush2.bf16.xpose.msra.mxu0 0
        %2233 = vmatprep.subr.bf16.mxu0 0
        %2234 = vmatpush2.bf16.xpose.msra.mxu0 0
        %2235 = vmatprep.subr.bf16.mxu0 0
        %2236 = vmatpush2.bf16.xpose.msra.mxu0 0
        %2237 = vmatprep.subr.bf16.mxu0 0
        %2238 = vmatpush2.bf16.xpose.msra.mxu0 0
        %2239 = vmatprep.mubr.bf16.mxu0 0
        %2240 = vmatmul.mubr.bf16.gmra.mxu0 %v2202
        %v2241 = vpop.f32.mrf.mxu0
        %v2242 = vadd.f32 0.0, %v2241
        %v2243 = vpop.f32.mrf.mxu0
        %v2244 = vpop.f32.mrf.mxu0
        %v2245 = vadd.f32 0.0, %v2244
        %v2246 = vpop.f32.mrf.mxu0
        %2247 = vdwg.mxu0
        %vm2248 = vcmask 64512
        %v2249 = vsel %vm2248, %v2242, -inf
        %2250 = vmax.xlane.f32.xlu0 %v2249
        %v2251 = vpop.xlane.xlu0 %2250
        %v2252 = vsel %vm2248, %v2245, -inf
        %2253 = vmax.xlane.f32.xlu0 %v2252
        %v2254 = vpop.xlane.xlu0 %2253
        %v2255 = vsub.f32 %v2242, %v2251
        %v2256 = vsub.f32 %v2245, %v2254
        %v2257 = vmul.f32 %v2255, 1.442695
        %v2258 = vpow.pop %v2257
        %v2259 = vmul.f32 %v2256, 1.442695
        %v2260 = vpow.pop %v2259
        %v2261 = vsel %vm2248, %v2258, 0.0
        %2262 = vadd.xlane.f32.xlu0 %v2261
        %v2263 = vpop.xlane.xlu0 %2262
        %v2264 = vsel %vm2248, %v2260, 0.0
        %2265 = vadd.xlane.f32.xlu0 %v2264
        %v2266 = vpop.xlane.xlu0 %2265
        %v2267 = vrcp.pop %v2263
        %v2268 = vrcp.pop %v2266
        %v2269 = vmul.f32 %v2258, %v2267
        %v2270 = vmul.f32 %v2260, %v2268
        %v2271 = vpack.c.bf16 %v2270, %v2269
        %v2273 = vunpack.c.l.b16 %v2271
        %v2274 = vunpack.c.h.b16 %v2271
        %v2275 = vpack.c.b16 %v2273, %v2273
        %v2276 = vpack.c.b16 %v2274, %v2274
        %vm2279 = vcmask 60416
        %2280 = vst.msk [vmem:[%s944] sm:$0xf] %vm2279, %v2275
        %2281 = vst.msk [vmem:[%s944 + $0x4] sm:$0xf] %vm2279, %v2276
        %v2283 = vsel %vm2248, %v2271, 0
        %vm2285 = vcmask 1043456
        %v2287 = vsel %vm2285, %v2200, 0
        %2289 = vmatprep.subr.bf16.mxu0 0
        %2290 = vmatpush1.bf16.msra.mxu0 0
        %2291 = vmatprep.subr.bf16.mxu0 0
        %2292 = vmatpush1.bf16.msra.mxu0 0
        %2293 = vmatprep.subr.bf16.mxu0 0
        %2294 = vmatpush1.bf16.msra.mxu0 0
        %2295 = vmatprep.subr.bf16.mxu0 0
        %2296 = vmatpush1.bf16.msra.mxu0 0
        %2297 = vmatprep.subr.bf16.mxu0 0
        %2298 = vmatpush1.bf16.msra.mxu0 0
        %2299 = vmatprep.subr.bf16.mxu0 0
        %2300 = vmatpush1.bf16.msra.mxu0 0
        %2301 = vmatprep.subr.bf16.mxu0 0
        %2302 = vmatpush1.bf16.msra.mxu0 0
        %2303 = vmatprep.subr.bf16.mxu0 0
        %2304 = vmatpush1.bf16.msra.mxu0 %v2287
        %2305 = vmatprep.subr.bf16.mxu0 0
        %2306 = vmatpush2.bf16.msra.mxu0 0
        %2307 = vmatprep.subr.bf16.mxu0 0
        %2308 = vmatpush2.bf16.msra.mxu0 0
        %2309 = vmatprep.subr.bf16.mxu0 0
        %2310 = vmatpush2.bf16.msra.mxu0 0
        %2311 = vmatprep.subr.bf16.mxu0 0
        %2312 = vmatpush2.bf16.msra.mxu0 0
        %2313 = vmatprep.subr.bf16.mxu0 0
        %2314 = vmatpush2.bf16.msra.mxu0 0
        %2315 = vmatprep.subr.bf16.mxu0 0
        %2316 = vmatpush2.bf16.msra.mxu0 0
        %2317 = vmatprep.subr.bf16.mxu0 0
        %2318 = vmatpush2.bf16.msra.mxu0 0
        %2319 = vmatprep.subr.bf16.mxu0 0
        %2320 = vmatpush2.bf16.msra.mxu0 0
        %2321 = vmatprep.mubr.bf16.mxu0 0
        %2322 = vmatmul.mubr.bf16.gmra.mxu0 %v2283
        %v2323 = vpop.f32.mrf.mxu0
        %v2324 = vadd.f32 0.0, %v2323
        %v2325 = vpop.f32.mrf.mxu0
        %v2326 = vpop.f32.mrf.mxu0
        %v2327 = vadd.f32 0.0, %v2326
        %v2328 = vpop.f32.mrf.mxu0
        %2329 = vdwg.mxu0
        %2331 = vrot.lane.b32.xlu0 %v2198, 96
        %v2332 = vpop.permute.xlu0 %2331
        %2334 = vrot.lane.b32.xlu0 %v2199, 96
        %v2335 = vpop.permute.xlu0 %2334
        %v2337 = vsel %vm1223, %v2332, 0
        %v2340 = vsel %vm1223, %v2335, 0
        %2342 = vmatprep.subr.bf16.mxu0 0
        %2343 = vmatpush1.bf16.xpose.msra.mxu0 0
        %2344 = vmatprep.subr.bf16.mxu0 0
        %2345 = vmatpush1.bf16.xpose.msra.mxu0 0
        %2346 = vmatprep.subr.bf16.mxu0 0
        %2347 = vmatpush1.bf16.xpose.msra.mxu0 0
        %2348 = vmatprep.subr.bf16.mxu0 0
        %2349 = vmatpush1.bf16.xpose.msra.mxu0 0
        %2350 = vmatprep.subr.bf16.mxu0 0
        %2351 = vmatpush1.bf16.xpose.msra.mxu0 0
        %2352 = vmatprep.subr.bf16.mxu0 0
        %2353 = vmatpush1.bf16.xpose.msra.mxu0 0
        %2354 = vmatprep.subr.bf16.mxu0 0
        %2355 = vmatpush1.bf16.xpose.msra.mxu0 0
        %2356 = vmatprep.subr.bf16.mxu0 0
        %2357 = vmatpush1.bf16.xpose.msra.mxu0 %v2340
        %2358 = vmatprep.subr.bf16.mxu0 0
        %2359 = vmatpush2.bf16.xpose.msra.mxu0 0
        %2360 = vmatprep.subr.bf16.mxu0 0
        %2361 = vmatpush2.bf16.xpose.msra.mxu0 0
        %2362 = vmatprep.subr.bf16.mxu0 0
        %2363 = vmatpush2.bf16.xpose.msra.mxu0 0
        %2364 = vmatprep.subr.bf16.mxu0 0
        %2365 = vmatpush2.bf16.xpose.msra.mxu0 0
        %2366 = vmatprep.subr.bf16.mxu0 0
        %2367 = vmatpush2.bf16.xpose.msra.mxu0 0
        %2368 = vmatprep.subr.bf16.mxu0 0
        %2369 = vmatpush2.bf16.xpose.msra.mxu0 0
        %2370 = vmatprep.subr.bf16.mxu0 0
        %2371 = vmatpush2.bf16.xpose.msra.mxu0 0
        %2372 = vmatprep.subr.bf16.mxu0 0
        %2373 = vmatpush2.bf16.xpose.msra.mxu0 0
        %2374 = vmatprep.mubr.bf16.mxu0 0
        %2375 = vmatmul.mubr.bf16.gmra.mxu0 %v2337
        %v2376 = vpop.f32.mrf.mxu0
        %v2377 = vadd.f32 0.0, %v2376
        %v2378 = vpop.f32.mrf.mxu0
        %v2379 = vpop.f32.mrf.mxu0
        %v2380 = vadd.f32 0.0, %v2379
        %v2381 = vpop.f32.mrf.mxu0
        %2382 = vdwg.mxu0
        %v2383 = vsel %vm2248, %v2377, -inf
        %2384 = vmax.xlane.f32.xlu0 %v2383
        %v2385 = vpop.xlane.xlu0 %2384
        %v2386 = vsel %vm2248, %v2380, -inf
        %2387 = vmax.xlane.f32.xlu0 %v2386
        %v2388 = vpop.xlane.xlu0 %2387
        %v2389 = vsub.f32 %v2377, %v2385
        %v2390 = vsub.f32 %v2380, %v2388
        %v2391 = vmul.f32 %v2389, 1.442695
        %v2392 = vpow.pop %v2391
        %v2393 = vmul.f32 %v2390, 1.442695
        %v2394 = vpow.pop %v2393
        %v2395 = vsel %vm2248, %v2392, 0.0
        %2396 = vadd.xlane.f32.xlu0 %v2395
        %v2397 = vpop.xlane.xlu0 %2396
        %v2398 = vsel %vm2248, %v2394, 0.0
        %2399 = vadd.xlane.f32.xlu0 %v2398
        %v2400 = vpop.xlane.xlu0 %2399
        %v2401 = vrcp.pop %v2397
        %v2402 = vrcp.pop %v2400
        %v2403 = vmul.f32 %v2392, %v2401
        %v2404 = vmul.f32 %v2394, %v2402
        %v2405 = vpack.c.bf16 %v2404, %v2403
        %v2407 = vunpack.c.l.b16 %v2405
        %v2408 = vunpack.c.h.b16 %v2405
        %v2409 = vpack.c.b16 %v2407, %v2407
        %v2410 = vpack.c.b16 %v2408, %v2408
        %s2413 = scalar_lea.vmem %s944, 8
        %2414 = vst.msk [vmem:[%s2413] sm:$0xf] %vm2279, %v2409
        %2415 = vst.msk [vmem:[%s2413 + $0x4] sm:$0xf] %vm2279, %v2410
        %2417 = vrot.lane.b32.xlu0 %v2200, 96
        %v2418 = vpop.permute.xlu0 %2417
        %v2420 = vsel %vm2248, %v2405, 0
        %v2423 = vsel %vm2285, %v2418, 0
        %2425 = vmatprep.subr.bf16.mxu0 0
        %2426 = vmatpush1.bf16.msra.mxu0 0
        %2427 = vmatprep.subr.bf16.mxu0 0
        %2428 = vmatpush1.bf16.msra.mxu0 0
        %2429 = vmatprep.subr.bf16.mxu0 0
        %2430 = vmatpush1.bf16.msra.mxu0 0
        %2431 = vmatprep.subr.bf16.mxu0 0
        %2432 = vmatpush1.bf16.msra.mxu0 0
        %2433 = vmatprep.subr.bf16.mxu0 0
        %2434 = vmatpush1.bf16.msra.mxu0 0
        %2435 = vmatprep.subr.bf16.mxu0 0
        %2436 = vmatpush1.bf16.msra.mxu0 0
        %2437 = vmatprep.subr.bf16.mxu0 0
        %2438 = vmatpush1.bf16.msra.mxu0 0
        %2439 = vmatprep.subr.bf16.mxu0 0
        %2440 = vmatpush1.bf16.msra.mxu0 %v2423
        %2441 = vmatprep.subr.bf16.mxu0 0
        %2442 = vmatpush2.bf16.msra.mxu0 0
        %2443 = vmatprep.subr.bf16.mxu0 0
        %2444 = vmatpush2.bf16.msra.mxu0 0
        %2445 = vmatprep.subr.bf16.mxu0 0
        %2446 = vmatpush2.bf16.msra.mxu0 0
        %2447 = vmatprep.subr.bf16.mxu0 0
        %2448 = vmatpush2.bf16.msra.mxu0 0
        %2449 = vmatprep.subr.bf16.mxu0 0
        %2450 = vmatpush2.bf16.msra.mxu0 0
        %2451 = vmatprep.subr.bf16.mxu0 0
        %2452 = vmatpush2.bf16.msra.mxu0 0
        %2453 = vmatprep.subr.bf16.mxu0 0
        %2454 = vmatpush2.bf16.msra.mxu0 0
        %2455 = vmatprep.subr.bf16.mxu0 0
        %2456 = vmatpush2.bf16.msra.mxu0 0
        %2457 = vmatprep.mubr.bf16.mxu0 0
        %2458 = vmatmul.mubr.bf16.gmra.mxu0 %v2420
        %v2459 = vpop.f32.mrf.mxu0
        %v2460 = vadd.f32 0.0, %v2459
        %v2461 = vpop.f32.mrf.mxu0
        %v2462 = vpop.f32.mrf.mxu0
        %v2463 = vadd.f32 0.0, %v2462
        %v2464 = vpop.f32.mrf.mxu0
        %2465 = vdwg.mxu0
        %2466 = vrot.lane.b32.xlu0 %v2198, 64
        %v2467 = vpop.permute.xlu0 %2466
        %2468 = vrot.lane.b32.xlu0 %v2199, 64
        %v2469 = vpop.permute.xlu0 %2468
        %v2471 = vsel %vm1223, %v2467, 0
        %v2474 = vsel %vm1223, %v2469, 0
        %2476 = vmatprep.subr.bf16.mxu0 0
        %2477 = vmatpush1.bf16.xpose.msra.mxu0 0
        %2478 = vmatprep.subr.bf16.mxu0 0
        %2479 = vmatpush1.bf16.xpose.msra.mxu0 0
        %2480 = vmatprep.subr.bf16.mxu0 0
        %2481 = vmatpush1.bf16.xpose.msra.mxu0 0
        %2482 = vmatprep.subr.bf16.mxu0 0
        %2483 = vmatpush1.bf16.xpose.msra.mxu0 0
        %2484 = vmatprep.subr.bf16.mxu0 0
        %2485 = vmatpush1.bf16.xpose.msra.mxu0 0
        %2486 = vmatprep.subr.bf16.mxu0 0
        %2487 = vmatpush1.bf16.xpose.msra.mxu0 0
        %2488 = vmatprep.subr.bf16.mxu0 0
        %2489 = vmatpush1.bf16.xpose.msra.mxu0 0
        %2490 = vmatprep.subr.bf16.mxu0 0
        %2491 = vmatpush1.bf16.xpose.msra.mxu0 %v2474
        %2492 = vmatprep.subr.bf16.mxu0 0
        %2493 = vmatpush2.bf16.xpose.msra.mxu0 0
        %2494 = vmatprep.subr.bf16.mxu0 0
        %2495 = vmatpush2.bf16.xpose.msra.mxu0 0
        %2496 = vmatprep.subr.bf16.mxu0 0
        %2497 = vmatpush2.bf16.xpose.msra.mxu0 0
        %2498 = vmatprep.subr.bf16.mxu0 0
        %2499 = vmatpush2.bf16.xpose.msra.mxu0 0
        %2500 = vmatprep.subr.bf16.mxu0 0
        %2501 = vmatpush2.bf16.xpose.msra.mxu0 0
        %2502 = vmatprep.subr.bf16.mxu0 0
        %2503 = vmatpush2.bf16.xpose.msra.mxu0 0
        %2504 = vmatprep.subr.bf16.mxu0 0
        %2505 = vmatpush2.bf16.xpose.msra.mxu0 0
        %2506 = vmatprep.subr.bf16.mxu0 0
        %2507 = vmatpush2.bf16.xpose.msra.mxu0 0
        %2508 = vmatprep.mubr.bf16.mxu0 0
        %2509 = vmatmul.mubr.bf16.gmra.mxu0 %v2471
        %v2510 = vpop.f32.mrf.mxu0
        %v2511 = vadd.f32 0.0, %v2510
        %v2512 = vpop.f32.mrf.mxu0
        %v2513 = vpop.f32.mrf.mxu0
        %v2514 = vadd.f32 0.0, %v2513
        %v2515 = vpop.f32.mrf.mxu0
        %2516 = vdwg.mxu0
        %v2517 = vsel %vm2248, %v2511, -inf
        %2518 = vmax.xlane.f32.xlu0 %v2517
        %v2519 = vpop.xlane.xlu0 %2518
        %v2520 = vsel %vm2248, %v2514, -inf
        %2521 = vmax.xlane.f32.xlu0 %v2520
        %v2522 = vpop.xlane.xlu0 %2521
        %v2523 = vsub.f32 %v2511, %v2519
        %v2524 = vsub.f32 %v2514, %v2522
        %v2525 = vmul.f32 %v2523, 1.442695
        %v2526 = vpow.pop %v2525
        %v2527 = vmul.f32 %v2524, 1.442695
        %v2528 = vpow.pop %v2527
        %v2529 = vsel %vm2248, %v2526, 0.0
        %2530 = vadd.xlane.f32.xlu0 %v2529
        %v2531 = vpop.xlane.xlu0 %2530
        %v2532 = vsel %vm2248, %v2528, 0.0
        %2533 = vadd.xlane.f32.xlu0 %v2532
        %v2534 = vpop.xlane.xlu0 %2533
        %v2535 = vrcp.pop %v2531
        %v2536 = vrcp.pop %v2534
        %v2537 = vmul.f32 %v2526, %v2535
        %v2538 = vmul.f32 %v2528, %v2536
        %v2539 = vpack.c.bf16 %v2538, %v2537
        %v2541 = vunpack.c.l.b16 %v2539
        %v2542 = vunpack.c.h.b16 %v2539
        %v2543 = vpack.c.b16 %v2541, %v2541
        %v2544 = vpack.c.b16 %v2542, %v2542
        %s2547 = scalar_lea.vmem %s944, 16
        %2548 = vst.msk [vmem:[%s2547] sm:$0xf] %vm2279, %v2543
        %2549 = vst.msk [vmem:[%s2547 + $0x4] sm:$0xf] %vm2279, %v2544
        %2550 = vrot.lane.b32.xlu0 %v2200, 64
        %v2551 = vpop.permute.xlu0 %2550
        %v2553 = vsel %vm2248, %v2539, 0
        %v2556 = vsel %vm2285, %v2551, 0
        %2558 = vmatprep.subr.bf16.mxu0 0
        %2559 = vmatpush1.bf16.msra.mxu0 0
        %2560 = vmatprep.subr.bf16.mxu0 0
        %2561 = vmatpush1.bf16.msra.mxu0 0
        %2562 = vmatprep.subr.bf16.mxu0 0
        %2563 = vmatpush1.bf16.msra.mxu0 0
        %2564 = vmatprep.subr.bf16.mxu0 0
        %2565 = vmatpush1.bf16.msra.mxu0 0
        %2566 = vmatprep.subr.bf16.mxu0 0
        %2567 = vmatpush1.bf16.msra.mxu0 0
        %2568 = vmatprep.subr.bf16.mxu0 0
        %2569 = vmatpush1.bf16.msra.mxu0 0
        %2570 = vmatprep.subr.bf16.mxu0 0
        %2571 = vmatpush1.bf16.msra.mxu0 0
        %2572 = vmatprep.subr.bf16.mxu0 0
        %2573 = vmatpush1.bf16.msra.mxu0 %v2556
        %2574 = vmatprep.subr.bf16.mxu0 0
        %2575 = vmatpush2.bf16.msra.mxu0 0
        %2576 = vmatprep.subr.bf16.mxu0 0
        %2577 = vmatpush2.bf16.msra.mxu0 0
        %2578 = vmatprep.subr.bf16.mxu0 0
        %2579 = vmatpush2.bf16.msra.mxu0 0
        %2580 = vmatprep.subr.bf16.mxu0 0
        %2581 = vmatpush2.bf16.msra.mxu0 0
        %2582 = vmatprep.subr.bf16.mxu0 0
        %2583 = vmatpush2.bf16.msra.mxu0 0
        %2584 = vmatprep.subr.bf16.mxu0 0
        %2585 = vmatpush2.bf16.msra.mxu0 0
        %2586 = vmatprep.subr.bf16.mxu0 0
        %2587 = vmatpush2.bf16.msra.mxu0 0
        %2588 = vmatprep.subr.bf16.mxu0 0
        %2589 = vmatpush2.bf16.msra.mxu0 0
        %2590 = vmatprep.mubr.bf16.mxu0 0
        %2591 = vmatmul.mubr.bf16.gmra.mxu0 %v2553
        %v2592 = vpop.f32.mrf.mxu0
        %v2593 = vadd.f32 0.0, %v2592
        %v2594 = vpop.f32.mrf.mxu0
        %v2595 = vpop.f32.mrf.mxu0
        %v2596 = vadd.f32 0.0, %v2595
        %v2597 = vpop.f32.mrf.mxu0
        %2598 = vdwg.mxu0
        %2599 = vrot.lane.b32.xlu0 %v2198, 32
        %v2600 = vpop.permute.xlu0 %2599
        %2601 = vrot.lane.b32.xlu0 %v2199, 32
        %v2602 = vpop.permute.xlu0 %2601
        %v2604 = vsel %vm1223, %v2600, 0
        %v2607 = vsel %vm1223, %v2602, 0
        %2609 = vmatprep.subr.bf16.mxu0 0
        %2610 = vmatpush1.bf16.xpose.msra.mxu0 0
        %2611 = vmatprep.subr.bf16.mxu0 0
        %2612 = vmatpush1.bf16.xpose.msra.mxu0 0
        %2613 = vmatprep.subr.bf16.mxu0 0
        %2614 = vmatpush1.bf16.xpose.msra.mxu0 0
        %2615 = vmatprep.subr.bf16.mxu0 0
        %2616 = vmatpush1.bf16.xpose.msra.mxu0 0
        %2617 = vmatprep.subr.bf16.mxu0 0
        %2618 = vmatpush1.bf16.xpose.msra.mxu0 0
        %2619 = vmatprep.subr.bf16.mxu0 0
        %2620 = vmatpush1.bf16.xpose.msra.mxu0 0
        %2621 = vmatprep.subr.bf16.mxu0 0
        %2622 = vmatpush1.bf16.xpose.msra.mxu0 0
        %2623 = vmatprep.subr.bf16.mxu0 0
        %2624 = vmatpush1.bf16.xpose.msra.mxu0 %v2607
        %2625 = vmatprep.subr.bf16.mxu0 0
        %2626 = vmatpush2.bf16.xpose.msra.mxu0 0
        %2627 = vmatprep.subr.bf16.mxu0 0
        %2628 = vmatpush2.bf16.xpose.msra.mxu0 0
        %2629 = vmatprep.subr.bf16.mxu0 0
        %2630 = vmatpush2.bf16.xpose.msra.mxu0 0
        %2631 = vmatprep.subr.bf16.mxu0 0
        %2632 = vmatpush2.bf16.xpose.msra.mxu0 0
        %2633 = vmatprep.subr.bf16.mxu0 0
        %2634 = vmatpush2.bf16.xpose.msra.mxu0 0
        %2635 = vmatprep.subr.bf16.mxu0 0
        %2636 = vmatpush2.bf16.xpose.msra.mxu0 0
        %2637 = vmatprep.subr.bf16.mxu0 0
        %2638 = vmatpush2.bf16.xpose.msra.mxu0 0
        %2639 = vmatprep.subr.bf16.mxu0 0
        %2640 = vmatpush2.bf16.xpose.msra.mxu0 0
        %2641 = vmatprep.mubr.bf16.mxu0 0
        %2642 = vmatmul.mubr.bf16.gmra.mxu0 %v2604
        %v2643 = vpop.f32.mrf.mxu0
        %v2644 = vadd.f32 0.0, %v2643
        %v2645 = vpop.f32.mrf.mxu0
        %v2646 = vpop.f32.mrf.mxu0
        %v2647 = vadd.f32 0.0, %v2646
        %v2648 = vpop.f32.mrf.mxu0
        %2649 = vdwg.mxu0
        %v2650 = vsel %vm2248, %v2644, -inf
        %2651 = vmax.xlane.f32.xlu0 %v2650
        %v2652 = vpop.xlane.xlu0 %2651
        %v2653 = vsel %vm2248, %v2647, -inf
        %2654 = vmax.xlane.f32.xlu0 %v2653
        %v2655 = vpop.xlane.xlu0 %2654
        %v2656 = vsub.f32 %v2644, %v2652
        %v2657 = vsub.f32 %v2647, %v2655
        %v2658 = vmul.f32 %v2656, 1.442695
        %v2659 = vpow.pop %v2658
        %v2660 = vmul.f32 %v2657, 1.442695
        %v2661 = vpow.pop %v2660
        %v2662 = vsel %vm2248, %v2659, 0.0
        %2663 = vadd.xlane.f32.xlu0 %v2662
        %v2664 = vpop.xlane.xlu0 %2663
        %v2665 = vsel %vm2248, %v2661, 0.0
        %2666 = vadd.xlane.f32.xlu0 %v2665
        %v2667 = vpop.xlane.xlu0 %2666
        %v2668 = vrcp.pop %v2664
        %v2669 = vrcp.pop %v2667
        %v2670 = vmul.f32 %v2659, %v2668
        %v2671 = vmul.f32 %v2661, %v2669
        %v2672 = vpack.c.bf16 %v2671, %v2670
        %v2674 = vunpack.c.l.b16 %v2672
        %v2675 = vunpack.c.h.b16 %v2672
        %v2676 = vpack.c.b16 %v2674, %v2674
        %v2677 = vpack.c.b16 %v2675, %v2675
        %s2680 = scalar_lea.vmem %s944, 24
        %2681 = vst.msk [vmem:[%s2680] sm:$0xf] %vm2279, %v2676
        %2682 = vst.msk [vmem:[%s2680 + $0x4] sm:$0xf] %vm2279, %v2677
        %2683 = vrot.lane.b32.xlu0 %v2200, 32
        %v2684 = vpop.permute.xlu0 %2683
        %v2686 = vsel %vm2248, %v2672, 0
        %v2689 = vsel %vm2285, %v2684, 0
        %2691 = vmatprep.subr.bf16.mxu0 0
        %2692 = vmatpush1.bf16.msra.mxu0 0
        %2693 = vmatprep.subr.bf16.mxu0 0
        %2694 = vmatpush1.bf16.msra.mxu0 0
        %2695 = vmatprep.subr.bf16.mxu0 0
        %2696 = vmatpush1.bf16.msra.mxu0 0
        %2697 = vmatprep.subr.bf16.mxu0 0
        %2698 = vmatpush1.bf16.msra.mxu0 0
        %2699 = vmatprep.subr.bf16.mxu0 0
        %2700 = vmatpush1.bf16.msra.mxu0 0
        %2701 = vmatprep.subr.bf16.mxu0 0
        %2702 = vmatpush1.bf16.msra.mxu0 0
        %2703 = vmatprep.subr.bf16.mxu0 0
        %2704 = vmatpush1.bf16.msra.mxu0 0
        %2705 = vmatprep.subr.bf16.mxu0 0
        %2706 = vmatpush1.bf16.msra.mxu0 %v2689
        %2707 = vmatprep.subr.bf16.mxu0 0
        %2708 = vmatpush2.bf16.msra.mxu0 0
        %2709 = vmatprep.subr.bf16.mxu0 0
        %2710 = vmatpush2.bf16.msra.mxu0 0
        %2711 = vmatprep.subr.bf16.mxu0 0
        %2712 = vmatpush2.bf16.msra.mxu0 0
        %2713 = vmatprep.subr.bf16.mxu0 0
        %2714 = vmatpush2.bf16.msra.mxu0 0
        %2715 = vmatprep.subr.bf16.mxu0 0
        %2716 = vmatpush2.bf16.msra.mxu0 0
        %2717 = vmatprep.subr.bf16.mxu0 0
        %2718 = vmatpush2.bf16.msra.mxu0 0
        %2719 = vmatprep.subr.bf16.mxu0 0
        %2720 = vmatpush2.bf16.msra.mxu0 0
        %2721 = vmatprep.subr.bf16.mxu0 0
        %2722 = vmatpush2.bf16.msra.mxu0 0
        %2723 = vmatprep.mubr.bf16.mxu0 0
        %2724 = vmatmul.mubr.bf16.gmra.mxu0 %v2686
        %v2725 = vpop.f32.mrf.mxu0
        %v2726 = vadd.f32 0.0, %v2725
        %v2727 = vpop.f32.mrf.mxu0
        %v2728 = vpop.f32.mrf.mxu0
        %v2729 = vadd.f32 0.0, %v2728
        %v2730 = vpop.f32.mrf.mxu0
        %2731 = vdwg.mxu0
        %2734 = vrot.lane.b32.xlu0 %v2460, 32
        %v2735 = vpop.permute.xlu0 %2734
        %2736 = vrot.lane.b32.xlu0 %v2463, 32
        %v2737 = vpop.permute.xlu0 %2736
        %2742 = vrot.lane.b32.xlu0 %v2593, 64
        %v2743 = vpop.permute.xlu0 %2742
        %2744 = vrot.lane.b32.xlu0 %v2596, 64
        %v2745 = vpop.permute.xlu0 %2744
        %2750 = vrot.lane.b32.xlu0 %v2726, 96
        %v2751 = vpop.permute.xlu0 %2750
        %2752 = vrot.lane.b32.xlu0 %v2729, 96
        %v2753 = vpop.permute.xlu0 %2752
        %v2756 = vsel %vm1223, %v2324, %v2735
        %v2757 = vsel %vm1223, %v2327, %v2737
        %v2758 = vsel %vm1771, %v2756, %v2743
        %v2759 = vsel %vm1771, %v2757, %v2745
        %v2760 = vsel %vm1774, %v2758, %v2751
        %v2761 = vsel %vm1774, %v2759, %v2753
        %v2762 = vpack.c.bf16 %v2761, %v2760
        %v2763 = vld [vmem:[#allocation13] sm:$0xf]
        %v2764 = vld [vmem:[#allocation13 + $0x4] sm:$0xf]
        %v2765 = vld [vmem:[#allocation13 + $0x8] sm:$0xf]
        %v2766 = vld [vmem:[#allocation13 + $0xc] sm:$0xf]
        %v2767 = vld [vmem:[#allocation13 + $0x10] sm:$0xf]
        %v2768 = vld [vmem:[#allocation13 + $0x14] sm:$0xf]
        %v2769 = vld [vmem:[#allocation13 + $0x18] sm:$0xf]
        %v2770 = vld [vmem:[#allocation13 + $0x1c] sm:$0xf]
        %v2771 = vld [vmem:[#allocation13 + $0x20] sm:$0xf]
        %v2772 = vld [vmem:[#allocation13 + $0x24] sm:$0xf]
        %v2773 = vld [vmem:[#allocation13 + $0x28] sm:$0xf]
        %v2774 = vld [vmem:[#allocation13 + $0x2c] sm:$0xf]
        %v2775 = vld [vmem:[#allocation13 + $0x30] sm:$0xf]
        %v2776 = vld [vmem:[#allocation13 + $0x34] sm:$0xf]
        %v2777 = vld [vmem:[#allocation13 + $0x38] sm:$0xf]
        %v2778 = vld [vmem:[#allocation13 + $0x3c] sm:$0xf]
        %v2779 = vld [vmem:[%s13] sm:$0x1]
        %v2781 = vlaneseq
        %v2782 = vshrl.u32 %v2781, 7
        %v2783 = vsub.s32 0, %v2782
        %v2784 = vrot.slane %v2779, %v2783
        %v2802 = vunpack.c.l.b16 %v2763
        %v2803 = vunpack.c.l.b16 %v2764
        %v2804 = vunpack.c.l.b16 %v2765
        %v2805 = vunpack.c.l.b16 %v2766
        %v2806 = vunpack.c.l.b16 %v2767
        %v2807 = vunpack.c.l.b16 %v2768
        %v2808 = vunpack.c.l.b16 %v2769
        %v2809 = vunpack.c.l.b16 %v2770
        %v2810 = vunpack.c.l.b16 %v2771
        %v2811 = vunpack.c.l.b16 %v2772
        %v2812 = vunpack.c.l.b16 %v2773
        %v2813 = vunpack.c.l.b16 %v2774
        %v2814 = vunpack.c.l.b16 %v2775
        %v2815 = vunpack.c.l.b16 %v2776
        %v2816 = vunpack.c.l.b16 %v2777
        %v2817 = vunpack.c.l.b16 %v2778
        %v2818 = vpack.c.b16 %v2803, %v2802
        %v2819 = vpack.c.b16 %v2805, %v2804
        %v2820 = vpack.c.b16 %v2807, %v2806
        %v2821 = vpack.c.b16 %v2809, %v2808
        %v2822 = vpack.c.b16 %v2811, %v2810
        %v2823 = vpack.c.b16 %v2813, %v2812
        %v2824 = vpack.c.b16 %v2815, %v2814
        %v2825 = vpack.c.b16 %v2817, %v2816
        %2834 = vmatprep.subr.bf16.mxu0 0
        %2835 = vmatpush1.bf16.msra.mxu0 %v2825
        %2836 = vmatprep.subr.bf16.mxu0 0
        %2837 = vmatpush1.bf16.msra.mxu0 %v2824
        %2838 = vmatprep.subr.bf16.mxu0 0
        %2839 = vmatpush1.bf16.msra.mxu0 %v2823
        %2840 = vmatprep.subr.bf16.mxu0 0
        %2841 = vmatpush1.bf16.msra.mxu0 %v2822
        %2842 = vmatprep.subr.bf16.mxu0 0
        %2843 = vmatpush1.bf16.msra.mxu0 %v2821
        %2844 = vmatprep.subr.bf16.mxu0 0
        %2845 = vmatpush1.bf16.msra.mxu0 %v2820
        %2846 = vmatprep.subr.bf16.mxu0 0
        %2847 = vmatpush1.bf16.msra.mxu0 %v2819
        %2848 = vmatprep.subr.bf16.mxu0 0
        %2849 = vmatpush1.bf16.msra.mxu0 %v2818
        %2850 = vmatprep.subr.bf16.mxu0 0
        %2851 = vmatpush2.bf16.msra.mxu0 0
        %2852 = vmatprep.subr.bf16.mxu0 0
        %2853 = vmatpush2.bf16.msra.mxu0 0
        %2854 = vmatprep.subr.bf16.mxu0 0
        %2855 = vmatpush2.bf16.msra.mxu0 0
        %2856 = vmatprep.subr.bf16.mxu0 0
        %2857 = vmatpush2.bf16.msra.mxu0 0
        %2858 = vmatprep.subr.bf16.mxu0 0
        %2859 = vmatpush2.bf16.msra.mxu0 0
        %2860 = vmatprep.subr.bf16.mxu0 0
        %2861 = vmatpush2.bf16.msra.mxu0 0
        %2862 = vmatprep.subr.bf16.mxu0 0
        %2863 = vmatpush2.bf16.msra.mxu0 0
        %2864 = vmatprep.subr.bf16.mxu0 0
        %2865 = vmatpush2.bf16.msra.mxu0 0
        %2866 = vmatprep.mubr.bf16.mxu0 0
        %2867 = vmatmul.mubr.bf16.gmra.mxu0 %v2762
        %v2868 = vpop.f32.mrf.mxu0
        %v2869 = vadd.f32 %v2784, %v2868
        %v2870 = vpop.f32.mrf.mxu0
        %v2871 = vpop.f32.mrf.mxu0
        %v2872 = vadd.f32 %v2784, %v2871
        %v2873 = vpop.f32.mrf.mxu0
        %2874 = vdwg.mxu0
        %v2875 = vld [vmem:[%s14] sm:$0x1]
        %v2876 = vld [vmem:[%s15] sm:$0x1]
        %v2877 = vadd.f32 %v2869, %v1931
        %v2878 = vadd.f32 %v2872, %v1932
        %2879 = vadd.xlane.f32.xlu0 %v2877
        %v2880 = vpop.xlane.xlu0 %2879
        %2881 = vadd.xlane.f32.xlu0 %v2878
        %v2882 = vpop.xlane.xlu0 %2881
        %v2883 = vmul.f32 %v2880, %v1898
        %v2884 = vmul.f32 %v2882, %v1898
        %v2885 = vsub.f32 %v2877, %v2883
        %v2886 = vsub.f32 %v2878, %v2884
        %v2887 = vmul.f32 %v2885, %v2885
        %v2888 = vmul.f32 %v2886, %v2886
        %2889 = vadd.xlane.f32.xlu0 %v2887
        %v2890 = vpop.xlane.xlu0 %2889
        %2891 = vadd.xlane.f32.xlu0 %v2888
        %v2892 = vpop.xlane.xlu0 %2891
        %v2893 = vmul.f32 %v2890, %v1898
        %v2894 = vmul.f32 %v2892, %v1898
        %v2895 = vadd.f32 %v2893, 1e-05
        %v2896 = vadd.f32 %v2894, 1e-05
        %v2897 = vrsqrt.pop %v2895
        %v2898 = vrsqrt.pop %v2896
        %v2899 = vmul.f32 %v2885, %v2897
        %v2900 = vmul.f32 %v2886, %v2898
        %v2902 = vlaneseq
        %v2903 = vshrl.u32 %v2902, 7
        %v2904 = vsub.s32 0, %v2903
        %v2905 = vrot.slane %v2875, %v2904
        %v2907 = vmul.f32 %v2899, %v2905
        %v2908 = vmul.f32 %v2900, %v2905
        %v2910 = vlaneseq
        %v2911 = vshrl.u32 %v2910, 7
        %v2912 = vsub.s32 0, %v2911
        %v2913 = vrot.slane %v2876, %v2912
        %v2915 = vadd.f32 %v2907, %v2913
        %v2916 = vadd.f32 %v2908, %v2913
        %v2917 = vpack.c.bf16 %v2916, %v2915
        %v2918 = vld [vmem:[#allocation14] sm:$0xff]
        %v2919 = vld [vmem:[#allocation14 + $0x8] sm:$0xff]
        %v2920 = vld [vmem:[#allocation14 + $0x10] sm:$0xff]
        %v2921 = vld [vmem:[#allocation14 + $0x18] sm:$0xff]
        %v2922 = vld [vmem:[#allocation14 + $0x20] sm:$0xff]
        %v2923 = vld [vmem:[#allocation14 + $0x28] sm:$0xff]
        %v2924 = vld [vmem:[#allocation14 + $0x30] sm:$0xff]
        %v2925 = vld [vmem:[#allocation14 + $0x38] sm:$0xff]
        %v2926 = vld [vmem:[#allocation14 + $0x40] sm:$0xff]
        %v2927 = vld [vmem:[#allocation14 + $0x48] sm:$0xff]
        %v2928 = vld [vmem:[#allocation14 + $0x50] sm:$0xff]
        %v2929 = vld [vmem:[#allocation14 + $0x58] sm:$0xff]
        %v2930 = vld [vmem:[#allocation14 + $0x60] sm:$0xff]
        %v2931 = vld [vmem:[#allocation14 + $0x68] sm:$0xff]
        %v2932 = vld [vmem:[#allocation14 + $0x70] sm:$0xff]
        %v2933 = vld [vmem:[#allocation14 + $0x78] sm:$0xff]
        %v2934 = vld [vmem:[%s17] sm:$0x3]
        %v2936 = vlaneseq
        %v2937 = vshrl.u32 %v2936, 7
        %v2938 = vsub.s32 0, %v2937
        %v2939 = vrot.slane %v2934, %v2938
        %v2940 = vlaneseq
        %v2941 = vshrl.u32 %v2940, 7
        %v2942 = vsub.s32 1, %v2941
        %v2943 = vrot.slane %v2934, %v2942
        %v2962 = vunpack.c.l.b16 %v2918
        %v2963 = vunpack.c.h.b16 %v2918
        %v2964 = vunpack.c.l.b16 %v2919
        %v2965 = vunpack.c.h.b16 %v2919
        %v2966 = vunpack.c.l.b16 %v2920
        %v2967 = vunpack.c.h.b16 %v2920
        %v2968 = vunpack.c.l.b16 %v2921
        %v2969 = vunpack.c.h.b16 %v2921
        %v2970 = vunpack.c.l.b16 %v2922
        %v2971 = vunpack.c.h.b16 %v2922
        %v2972 = vunpack.c.l.b16 %v2923
        %v2973 = vunpack.c.h.b16 %v2923
        %v2974 = vunpack.c.l.b16 %v2924
        %v2975 = vunpack.c.h.b16 %v2924
        %v2976 = vunpack.c.l.b16 %v2925
        %v2977 = vunpack.c.h.b16 %v2925
        %v2978 = vunpack.c.l.b16 %v2926
        %v2979 = vunpack.c.h.b16 %v2926
        %v2980 = vunpack.c.l.b16 %v2927
        %v2981 = vunpack.c.h.b16 %v2927
        %v2982 = vunpack.c.l.b16 %v2928
        %v2983 = vunpack.c.h.b16 %v2928
        %v2984 = vunpack.c.l.b16 %v2929
        %v2985 = vunpack.c.h.b16 %v2929
        %v2986 = vunpack.c.l.b16 %v2930
        %v2987 = vunpack.c.h.b16 %v2930
        %v2988 = vunpack.c.l.b16 %v2931
        %v2989 = vunpack.c.h.b16 %v2931
        %v2990 = vunpack.c.l.b16 %v2932
        %v2991 = vunpack.c.h.b16 %v2932
        %v2992 = vunpack.c.l.b16 %v2933
        %v2993 = vunpack.c.h.b16 %v2933
        %v2994 = vpack.c.b16 %v2964, %v2962
        %v2995 = vpack.c.b16 %v2965, %v2963
        %v2996 = vpack.c.b16 %v2968, %v2966
        %v2997 = vpack.c.b16 %v2969, %v2967
        %v2998 = vpack.c.b16 %v2972, %v2970
        %v2999 = vpack.c.b16 %v2973, %v2971
        %v3000 = vpack.c.b16 %v2976, %v2974
        %v3001 = vpack.c.b16 %v2977, %v2975
        %v3002 = vpack.c.b16 %v2980, %v2978
        %v3003 = vpack.c.b16 %v2981, %v2979
        %v3004 = vpack.c.b16 %v2984, %v2982
        %v3005 = vpack.c.b16 %v2985, %v2983
        %v3006 = vpack.c.b16 %v2988, %v2986
        %v3007 = vpack.c.b16 %v2989, %v2987
        %v3008 = vpack.c.b16 %v2992, %v2990
        %v3009 = vpack.c.b16 %v2993, %v2991
        %3026 = vmatprep.subr.bf16.mxu0 %v3009
        %3027 = vmatpush1.bf16.msra.mxu0 %v3008
        %3028 = vmatprep.subr.bf16.mxu0 %v3007
        %3029 = vmatpush1.bf16.msra.mxu0 %v3006
        %3030 = vmatprep.subr.bf16.mxu0 %v3005
        %3031 = vmatpush1.bf16.msra.mxu0 %v3004
        %3032 = vmatprep.subr.bf16.mxu0 %v3003
        %3033 = vmatpush1.bf16.msra.mxu0 %v3002
        %3034 = vmatprep.subr.bf16.mxu0 %v3001
        %3035 = vmatpush1.bf16.msra.mxu0 %v3000
        %3036 = vmatprep.subr.bf16.mxu0 %v2999
        %3037 = vmatpush1.bf16.msra.mxu0 %v2998
        %3038 = vmatprep.subr.bf16.mxu0 %v2997
        %3039 = vmatpush1.bf16.msra.mxu0 %v2996
        %3040 = vmatprep.subr.bf16.mxu0 %v2995
        %3041 = vmatpush1.bf16.msra.mxu0 %v2994
        %3042 = vmatprep.subr.bf16.mxu0 0
        %3043 = vmatpush2.bf16.msra.mxu0 0
        %3044 = vmatprep.subr.bf16.mxu0 0
        %3045 = vmatpush2.bf16.msra.mxu0 0
        %3046 = vmatprep.subr.bf16.mxu0 0
        %3047 = vmatpush2.bf16.msra.mxu0 0
        %3048 = vmatprep.subr.bf16.mxu0 0
        %3049 = vmatpush2.bf16.msra.mxu0 0
        %3050 = vmatprep.subr.bf16.mxu0 0
        %3051 = vmatpush2.bf16.msra.mxu0 0
        %3052 = vmatprep.subr.bf16.mxu0 0
        %3053 = vmatpush2.bf16.msra.mxu0 0
        %3054 = vmatprep.subr.bf16.mxu0 0
        %3055 = vmatpush2.bf16.msra.mxu0 0
        %3056 = vmatprep.subr.bf16.mxu0 0
        %3057 = vmatpush2.bf16.msra.mxu0 0
        %3058 = vmatprep.mubr.bf16.mxu0 0
        %3059 = vmatmul.mubr.bf16.gmra.mxu0 %v2917
        %v3060 = vpop.f32.mrf.mxu0
        %v3061 = vadd.f32 %v2939, %v3060
        %v3062 = vpop.f32.mrf.mxu0
        %v3063 = vadd.f32 %v2943, %v3062
        %v3064 = vpop.f32.mrf.mxu0
        %v3065 = vadd.f32 %v2939, %v3064
        %v3066 = vpop.f32.mrf.mxu0
        %v3067 = vadd.f32 %v2943, %v3066
        %3068 = vdwg.mxu0
        %v3069 = vmax.f32 %v3061, 0.0
        %v3070 = vmax.f32 %v3063, 0.0
        %v3071 = vmax.f32 %v3065, 0.0
        %v3072 = vmax.f32 %v3067, 0.0
        %v3073 = vpack.c.bf16 %v3071, %v3069
        %v3074 = vpack.c.bf16 %v3072, %v3070
        %v3075 = vld [vmem:[#allocation16] sm:$0xf]
        %v3076 = vld [vmem:[#allocation16 + $0x4] sm:$0xf]
        %v3077 = vld [vmem:[#allocation16 + $0x8] sm:$0xf]
        %v3078 = vld [vmem:[#allocation16 + $0xc] sm:$0xf]
        %v3079 = vld [vmem:[#allocation16 + $0x10] sm:$0xf]
        %v3080 = vld [vmem:[#allocation16 + $0x14] sm:$0xf]
        %v3081 = vld [vmem:[#allocation16 + $0x18] sm:$0xf]
        %v3082 = vld [vmem:[#allocation16 + $0x1c] sm:$0xf]
        %v3083 = vld [vmem:[#allocation16 + $0x20] sm:$0xf]
        %v3084 = vld [vmem:[#allocation16 + $0x24] sm:$0xf]
        %v3085 = vld [vmem:[#allocation16 + $0x28] sm:$0xf]
        %v3086 = vld [vmem:[#allocation16 + $0x2c] sm:$0xf]
        %v3087 = vld [vmem:[#allocation16 + $0x30] sm:$0xf]
        %v3088 = vld [vmem:[#allocation16 + $0x34] sm:$0xf]
        %v3089 = vld [vmem:[#allocation16 + $0x38] sm:$0xf]
        %v3090 = vld [vmem:[#allocation16 + $0x3c] sm:$0xf]
        %v3091 = vld [vmem:[#allocation16 + $0x40] sm:$0xf]
        %v3092 = vld [vmem:[#allocation16 + $0x44] sm:$0xf]
        %v3093 = vld [vmem:[#allocation16 + $0x48] sm:$0xf]
        %v3094 = vld [vmem:[#allocation16 + $0x4c] sm:$0xf]
        %v3095 = vld [vmem:[#allocation16 + $0x50] sm:$0xf]
        %v3096 = vld [vmem:[#allocation16 + $0x54] sm:$0xf]
        %v3097 = vld [vmem:[#allocation16 + $0x58] sm:$0xf]
        %v3098 = vld [vmem:[#allocation16 + $0x5c] sm:$0xf]
        %v3099 = vld [vmem:[#allocation16 + $0x60] sm:$0xf]
        %v3100 = vld [vmem:[#allocation16 + $0x64] sm:$0xf]
        %v3101 = vld [vmem:[#allocation16 + $0x68] sm:$0xf]
        %v3102 = vld [vmem:[#allocation16 + $0x6c] sm:$0xf]
        %v3103 = vld [vmem:[#allocation16 + $0x70] sm:$0xf]
        %v3104 = vld [vmem:[#allocation16 + $0x74] sm:$0xf]
        %v3105 = vld [vmem:[#allocation16 + $0x78] sm:$0xf]
        %v3106 = vld [vmem:[#allocation16 + $0x7c] sm:$0xf]
        %v3107 = vld [vmem:[%s19] sm:$0x1]
        %v3109 = vlaneseq
        %v3110 = vshrl.u32 %v3109, 7
        %v3111 = vsub.s32 0, %v3110
        %v3112 = vrot.slane %v3107, %v3111
        %v3146 = vunpack.c.l.b16 %v3075
        %v3147 = vunpack.c.l.b16 %v3076
        %v3148 = vunpack.c.l.b16 %v3077
        %v3149 = vunpack.c.l.b16 %v3078
        %v3150 = vunpack.c.l.b16 %v3079
        %v3151 = vunpack.c.l.b16 %v3080
        %v3152 = vunpack.c.l.b16 %v3081
        %v3153 = vunpack.c.l.b16 %v3082
        %v3154 = vunpack.c.l.b16 %v3083
        %v3155 = vunpack.c.l.b16 %v3084
        %v3156 = vunpack.c.l.b16 %v3085
        %v3157 = vunpack.c.l.b16 %v3086
        %v3158 = vunpack.c.l.b16 %v3087
        %v3159 = vunpack.c.l.b16 %v3088
        %v3160 = vunpack.c.l.b16 %v3089
        %v3161 = vunpack.c.l.b16 %v3090
        %v3162 = vunpack.c.l.b16 %v3091
        %v3163 = vunpack.c.l.b16 %v3092
        %v3164 = vunpack.c.l.b16 %v3093
        %v3165 = vunpack.c.l.b16 %v3094
        %v3166 = vunpack.c.l.b16 %v3095
        %v3167 = vunpack.c.l.b16 %v3096
        %v3168 = vunpack.c.l.b16 %v3097
        %v3169 = vunpack.c.l.b16 %v3098
        %v3170 = vunpack.c.l.b16 %v3099
        %v3171 = vunpack.c.l.b16 %v3100
        %v3172 = vunpack.c.l.b16 %v3101
        %v3173 = vunpack.c.l.b16 %v3102
        %v3174 = vunpack.c.l.b16 %v3103
        %v3175 = vunpack.c.l.b16 %v3104
        %v3176 = vunpack.c.l.b16 %v3105
        %v3177 = vunpack.c.l.b16 %v3106
        %v3178 = vpack.c.b16 %v3147, %v3146
        %v3179 = vpack.c.b16 %v3149, %v3148
        %v3180 = vpack.c.b16 %v3151, %v3150
        %v3181 = vpack.c.b16 %v3153, %v3152
        %v3182 = vpack.c.b16 %v3155, %v3154
        %v3183 = vpack.c.b16 %v3157, %v3156
        %v3184 = vpack.c.b16 %v3159, %v3158
        %v3185 = vpack.c.b16 %v3161, %v3160
        %v3186 = vpack.c.b16 %v3163, %v3162
        %v3187 = vpack.c.b16 %v3165, %v3164
        %v3188 = vpack.c.b16 %v3167, %v3166
        %v3189 = vpack.c.b16 %v3169, %v3168
        %v3190 = vpack.c.b16 %v3171, %v3170
        %v3191 = vpack.c.b16 %v3173, %v3172
        %v3192 = vpack.c.b16 %v3175, %v3174
        %v3193 = vpack.c.b16 %v3177, %v3176
        %3210 = vmatprep.subr.bf16.mxu0 0
        %3211 = vmatpush1.bf16.msra.mxu0 %v3185
        %3212 = vmatprep.subr.bf16.mxu0 0
        %3213 = vmatpush1.bf16.msra.mxu0 %v3184
        %3214 = vmatprep.subr.bf16.mxu0 0
        %3215 = vmatpush1.bf16.msra.mxu0 %v3183
        %3216 = vmatprep.subr.bf16.mxu0 0
        %3217 = vmatpush1.bf16.msra.mxu0 %v3182
        %3218 = vmatprep.subr.bf16.mxu0 0
        %3219 = vmatpush1.bf16.msra.mxu0 %v3181
        %3220 = vmatprep.subr.bf16.mxu0 0
        %3221 = vmatpush1.bf16.msra.mxu0 %v3180
        %3222 = vmatprep.subr.bf16.mxu0 0
        %3223 = vmatpush1.bf16.msra.mxu0 %v3179
        %3224 = vmatprep.subr.bf16.mxu0 0
        %3225 = vmatpush1.bf16.msra.mxu0 %v3178
        %3226 = vmatprep.subr.bf16.mxu0 0
        %3227 = vmatpush2.bf16.msra.mxu0 %v3193
        %3228 = vmatprep.subr.bf16.mxu0 0
        %3229 = vmatpush2.bf16.msra.mxu0 %v3192
        %3230 = vmatprep.subr.bf16.mxu0 0
        %3231 = vmatpush2.bf16.msra.mxu0 %v3191
        %3232 = vmatprep.subr.bf16.mxu0 0
        %3233 = vmatpush2.bf16.msra.mxu0 %v3190
        %3234 = vmatprep.subr.bf16.mxu0 0
        %3235 = vmatpush2.bf16.msra.mxu0 %v3189
        %3236 = vmatprep.subr.bf16.mxu0 0
        %3237 = vmatpush2.bf16.msra.mxu0 %v3188
        %3238 = vmatprep.subr.bf16.mxu0 0
        %3239 = vmatpush2.bf16.msra.mxu0 %v3187
        %3240 = vmatprep.subr.bf16.mxu0 0
        %3241 = vmatpush2.bf16.msra.mxu0 %v3186
        %3242 = vmatprep.mubr.bf16.mxu0 %v3074
        %3243 = vmatmul.mubr.bf16.gmra.mxu0 %v3073
        %v3244 = vpop.f32.mrf.mxu0
        %v3245 = vadd.f32 %v3112, %v3244
        %v3246 = vpop.f32.mrf.mxu0
        %v3247 = vpop.f32.mrf.mxu0
        %v3248 = vadd.f32 %v3112, %v3247
        %v3249 = vpop.f32.mrf.mxu0
        %3250 = vdwg.mxu0
        %v3251 = vld [vmem:[%s20] sm:$0x1]
        %v3252 = vld [vmem:[%s21] sm:$0x1]
        %v3253 = vadd.f32 %v3245, %v2915
        %v3254 = vadd.f32 %v3248, %v2916
        %3255 = vadd.xlane.f32.xlu0 %v3253
        %v3256 = vpop.xlane.xlu0 %3255
        %3257 = vadd.xlane.f32.xlu0 %v3254
        %v3258 = vpop.xlane.xlu0 %3257
        %v3259 = vmul.f32 %v3256, %v1898
        %v3260 = vmul.f32 %v3258, %v1898
        %v3261 = vsub.f32 %v3253, %v3259
        %v3262 = vsub.f32 %v3254, %v3260
        %v3263 = vmul.f32 %v3261, %v3261
        %v3264 = vmul.f32 %v3262, %v3262
        %3265 = vadd.xlane.f32.xlu0 %v3263
        %v3266 = vpop.xlane.xlu0 %3265
        %3267 = vadd.xlane.f32.xlu0 %v3264
        %v3268 = vpop.xlane.xlu0 %3267
        %v3269 = vmul.f32 %v3266, %v1898
        %v3270 = vmul.f32 %v3268, %v1898
        %v3271 = vadd.f32 %v3269, 1e-05
        %v3272 = vadd.f32 %v3270, 1e-05
        %v3273 = vrsqrt.pop %v3271
        %v3274 = vrsqrt.pop %v3272
        %v3275 = vmul.f32 %v3261, %v3273
        %v3276 = vmul.f32 %v3262, %v3274
        %v3278 = vlaneseq
        %v3279 = vshrl.u32 %v3278, 7
        %v3280 = vsub.s32 0, %v3279
        %v3281 = vrot.slane %v3251, %v3280
        %v3283 = vmul.f32 %v3275, %v3281
        %v3284 = vmul.f32 %v3276, %v3281
        %v3286 = vlaneseq
        %v3287 = vshrl.u32 %v3286, 7
        %v3288 = vsub.s32 0, %v3287
        %v3289 = vrot.slane %v3252, %v3288
        %v3291 = vadd.f32 %v3283, %v3289
        %v3292 = vadd.f32 %v3284, %v3289
        %3293 = vst [vmem:[%s915] sm:$0xff] %v3291
        %3294 = vst [vmem:[%s915 + $0x8] sm:$0xff] %v3292
        %s3295 = sand.u32 %s545, 1
        %s3296 = scalar_lea.sflag [#allocation4], %s3295
        %s3297 = sand.u32 %s545, 1
        %s3298 = smul.addr %s3297, 16
        %s3299 = scalar_lea.vmem [#allocation17], %s3298
        %s3300 = sand.u32 %s573, 1
        %s3301 = scalar_lea.sflag [#allocation19], %s3300
        %s3302 = sand.u32 %s573, 1
        %s3303 = smul.addr %s3302, 32
        %s3304 = scalar_lea.vmem [#allocation18], %s3303
        %s3305 = smul.u32 2, %s56
        %p3306 = scmp.lt.s32.totalorder %s55, 1
        %s3307 = scalar_select %p3306, %s55, 1
        %p3308 = scmp.lt.s32.totalorder %s3305, 1
        %s3309 = scalar_select %p3308, %s3305, 1
        %s3310 = smul.addr %s3307, 8
        %s3311 = sadd.s32 %s3309, %s3310
        %s3312 = smul.addr %s3311, 4
        %s3313 = scalar_lea.vmem %s24, %s3312
        // Predicated region
        $region145: #{tpu_custom_call.1} parent=107 // pred_check
          %p3314 = pneg %p555
        $region146: #{tpu_custom_call.1} parent=107 // pred_check_branch
          %3316 = sbr.rel (%p3314) target = $region148
        $region147: #{tpu_custom_call.1} parent=107 // pred_region
          %s3317 = smul.u32 2, %s56
          %s3319 = ssub.s32 256, 256
          %3320 = vsyncadd %s3296, %s3319
          %s3321 = smul.addr %s55, 2
          %s3322 = sadd.s32 %s3317, %s3321
          %s3323 = smul.addr %s3322, 128
          %s3324 = scalar_lea.hbm %s22, %s3323
          %s3325 = sshll.u32 %s3299, 4
          %s3326 = int_to_ptr.vmem [resolvable:$true] %s3325
          %3331 = dma.vmem_to_hbm [thread:$0]  %s3326, 256, %s3324, %s3296, 128, 128, 8
        $region148: #{tpu_custom_call.1} parent=107 // pred_fallthru
          _
        // Predicated region
        $region149: #{tpu_custom_call.1} parent=107 // pred_check
          %p3332 = pneg %p583
        $region150: #{tpu_custom_call.1} parent=107 // pred_check_branch
          %3334 = sbr.rel (%p3332) target = $region152
        $region151: #{tpu_custom_call.1} parent=107 // pred_region
          %s3335 = smul.u32 2, %s56
          %s3337 = ssub.s32 512, 512
          %3338 = vsyncadd %s3301, %s3337
          %s3339 = smul.addr %s55, 8
          %s3340 = sadd.s32 %s3335, %s3339
          %s3341 = smul.addr %s3340, 64
          %s3342 = scalar_lea.hbm %s23, %s3341
          %s3343 = sshll.u32 %s3304, 4
          %s3344 = int_to_ptr.vmem [resolvable:$true] %s3343
          %3349 = dma.vmem_to_hbm [thread:$0]  %s3344, 512, %s3342, %s3301, 64, 64, 4
        $region152: #{tpu_custom_call.1} parent=107 // pred_fallthru
          _
        // Predicated region
        $region153: #{tpu_custom_call.1} parent=107 // pred_check
          %p3350 = pneg %p611
        $region154: #{tpu_custom_call.1} parent=107 // pred_check_branch
          %3352 = sbr.rel (%p3350) target = $region156
        $region155: #{tpu_custom_call.1} parent=107 // pred_region
          %s3353 = smul.u32 2, %s56
        $region156: #{tpu_custom_call.1} parent=107 // pred_fallthru
          _
      $region108: #{tpu_custom_call.1} parent=5 // pred_fallthru
        _
      %p3354 = scmp.le.s32.totalorder 2, %s46
      // Predicated region
      $region157: #{tpu_custom_call.1} parent=5 // pred_check
        %p3355 = pneg %p3354
      $region158: #{tpu_custom_call.1} parent=5 // pred_check_branch
        %3357 = sbr.rel (%p3355) target = $region160
      $region159: #{tpu_custom_call.1} parent=5 // pred_region
        %s3358 = ssub.s32 %s46, 2
        // Predicated region
        $region161: #{tpu_custom_call.1} parent=159 // pred_check
          %p3359 = pneg %p561
        $region162: #{tpu_custom_call.1} parent=159 // pred_check_branch
          %3361 = sbr.rel (%p3359) target = $region164
        $region163: #{tpu_custom_call.1} parent=159 // pred_region
          %s3362 = sand.u32 %s546, 1
          %s3363 = scalar_lea.sflag [#allocation4], %s3362
          %s3364 = sand.u32 %s546, 1
          %s3365 = smul.addr %s3364, 16
          %s3366 = scalar_lea.vmem [#allocation17], %s3365
          %3367 = dma.done %s3363, 256
        $region164: #{tpu_custom_call.1} parent=159 // pred_fallthru
          _
        // Predicated region
        $region165: #{tpu_custom_call.1} parent=159 // pred_check
          %p3368 = pneg %p589
        $region166: #{tpu_custom_call.1} parent=159 // pred_check_branch
          %3370 = sbr.rel (%p3368) target = $region168
        $region167: #{tpu_custom_call.1} parent=159 // pred_region
          %s3371 = sand.u32 %s574, 1
          %s3372 = scalar_lea.sflag [#allocation19], %s3371
          %s3373 = sand.u32 %s574, 1
          %s3374 = smul.addr %s3373, 32
          %s3375 = scalar_lea.vmem [#allocation18], %s3374
          %3376 = dma.done %s3372, 512
        $region168: #{tpu_custom_call.1} parent=159 // pred_fallthru
          _
        // Predicated region
        $region169: #{tpu_custom_call.1} parent=159 // pred_check
          %p3377 = pneg %p617
        $region170: #{tpu_custom_call.1} parent=159 // pred_check_branch
          %3379 = sbr.rel (%p3377) target = $region172
        $region171: #{tpu_custom_call.1} parent=159 // pred_region
          %s3380 = smul.u32 2, %s58
          %p3381 = scmp.lt.s32.totalorder %s57, 1
          %s3382 = scalar_select %p3381, %s57, 1
          %p3383 = scmp.lt.s32.totalorder %s3380, 1
          %s3384 = scalar_select %p3383, %s3380, 1
          %s3385 = smul.addr %s3382, 8
          %s3386 = sadd.s32 %s3384, %s3385
          %s3387 = smul.addr %s3386, 4
          %s3388 = scalar_lea.vmem %s24, %s3387
        $region172: #{tpu_custom_call.1} parent=159 // pred_fallthru
          _
      $region160: #{tpu_custom_call.1} parent=5 // pred_fallthru
        _
    $region6: #{tpu_custom_call.1} parent=1 // loop_footer
      %s50 = sadd.s32 1, %s46
    $region7: #{tpu_custom_call.1} parent=1 // loop_footer_branch
      %45 = sbr.rel target = $region3
    $region8: #{tpu_custom_call.1} parent=1 // loop_exit
      _
    %3389 = vsyncpa [#allocation3], 1
    %s3390 = scalar_lea.sflag [#allocation3], 1
    %3391 = vsyncpa %s3390, 1
    %3392 = vsyncpa [#allocation6], 1
    %s3393 = scalar_lea.sflag [#allocation6], 1
    %3394 = vsyncpa %s3393, 1
    %3395 = vsyncpa [#allocation9], 1
    %3396 = vsyncpa [#allocation12], 1
    %3397 = vsyncpa [#allocation15], 1
    %3398 = vsyncpa [#allocation4], 1
    %s3399 = scalar_lea.sflag [#allocation4], 1
    %3400 = vsyncpa %s3399, 1
    %3401 = vsyncpa [#allocation19], 1
    %s3402 = scalar_lea.sflag [#allocation19], 1
    %3403 = vsyncpa %s3402, 1

</llo_original>
